<compile_context>
chip_gen: v5e
topology: v5e:2x2
jax: 0.10.0
libtpu: 0.0.40
codegen_flags: <defaults>
</compile_context>

<pallas_src>
import jax
import jax.numpy as jnp
from jax.experimental import pallas as pl
from jax.experimental.pallas import tpu as pltpu


B_TILE = 128  # rows (windows) per grid step; multiple of 8 sublanes, full MXU M on v5e


def _omni_kernel(
    # batched activations (one tile of B_TILE rows)
    x_ref, h0_ref, eps_ref,
    # GRU layer 0 / layer 1 (weights stored as (in, 3H), gate order [r | z | n])
    w_ih0_ref, w_hh0_ref, b_ih0_ref, b_hh0_ref,
    w_ih1_ref, w_hh1_ref, b_ih1_ref, b_hh1_ref,
    # encoder: Linear(H,H) PReLU Linear(H,H) PReLU Linear(H, 2L)
    w_e1_ref, b_e1_ref, w_e2_ref, b_e2_ref, w_e3_ref, b_e3_ref,
    a_e1_ref, a_e2_ref,
    # decoder: Linear(L,H) PReLU Linear(H,H) PReLU Linear(H, FP) Sigmoid
    w_d1_ref, b_d1_ref, w_d2_ref, b_d2_ref, w_d3_ref, b_d3_ref,
    a_d1_ref, a_d2_ref,
    # outputs
    x_rec_ref, mu_logvar_ref, hidden_ref,
):
    H = w_hh0_ref.shape[0]          # n_hidden (32)
    L = eps_ref.shape[1]            # n_latent (8)

    def linear(v, w_ref, b_ref):
        return jnp.dot(v, w_ref[...], preferred_element_type=jnp.float32) + b_ref[...]

    def sigmoid(t):
        # NOTE(perf): once MXU-bound this can become
        # pl.reciprocal(1.0 + jnp.exp(-t), approx=True) to push the divide onto
        # the EUP slot; kept exact here so the correctness check is tight.
        return 1.0 / (1.0 + jnp.exp(-t))

    def prelu(t, a_ref):
        a = a_ref[...]              # (1, 1), broadcast over the tile
        return jnp.where(t >= 0.0, t, a * t)

    def gru_cell(inp, h_prev, w_ih_ref, w_hh_ref, b_ih_ref, b_hh_ref):
        gi = linear(inp, w_ih_ref, b_ih_ref)        # (B, 3H)
        gh = linear(h_prev, w_hh_ref, b_hh_ref)     # (B, 3H)
        r = sigmoid(gi[:, 0:H] + gh[:, 0:H])
        z = sigmoid(gi[:, H:2 * H] + gh[:, H:2 * H])
        n = jnp.tanh(gi[:, 2 * H:3 * H] + r * gh[:, 2 * H:3 * H])
        return (1.0 - z) * n + z * h_prev

    x = x_ref[...]                  # (B, FP), lane-padded features
    h0 = h0_ref[...]                # (B, 2H), [layer-1 state | layer-2 state]

    # 2-layer GRU, seq_len = 1 (matches x.view(1, 1, -1) in the PyTorch forward)
    h1 = gru_cell(x, h0[:, 0:H], w_ih0_ref, w_hh0_ref, b_ih0_ref, b_hh0_ref)
    h2 = gru_cell(h1, h0[:, H:2 * H], w_ih1_ref, w_hh1_ref, b_ih1_ref, b_hh1_ref)

    # encoder -> (mu, logvar)
    e = prelu(linear(h2, w_e1_ref, b_e1_ref), a_e1_ref)
    e = prelu(linear(e, w_e2_ref, b_e2_ref), a_e2_ref)
    mu_logvar = linear(e, w_e3_ref, b_e3_ref)       # (B, 2L)
    mu = mu_logvar[:, 0:L]
    logvar = mu_logvar[:, L:2 * L]

    # reparameterization: z = mu + eps * exp(0.5 * logvar)
    z = mu + eps_ref[...] * jnp.exp(0.5 * logvar)

    # decoder -> reconstruction (FP lanes; wrapper slices back to n_feats)
    d = prelu(linear(z, w_d1_ref, b_d1_ref), a_d1_ref)
    d = prelu(linear(d, w_d2_ref, b_d2_ref), a_d2_ref)
    x_rec_ref[...] = sigmoid(linear(d, w_d3_ref, b_d3_ref))

    mu_logvar_ref[...] = mu_logvar
    hidden_ref[:, 0:H] = h1
    hidden_ref[:, H:2 * H] = h2


def init_omni_params(key, n_feats, n_hidden=32, n_latent=8, dtype=jnp.float32):
    """Deterministic synthetic parameters, stored as (in, out) and lane-padded."""
    H, L = n_hidden, n_latent
    FP = ((n_feats + 127) // 128) * 128     # lane-padded feature dim

    keys = iter(jax.random.split(key, 24))

    def uni(shape, fan_in):
        s = 1.0 / jnp.sqrt(jnp.array(fan_in, dtype))
        return jax.random.uniform(next(keys), shape, dtype, -s, s)

    p = {}
    # GRU layer 0 (input = n_feats); rows n_feats..FP-1 of w_ih0 are zero so the
    # zero-padded input lanes do not contribute.
    w = uni((n_feats, 3 * H), H)
    p["w_ih0"] = jnp.zeros((FP, 3 * H), dtype).at[:n_feats].set(w)
    p["w_hh0"] = uni((H, 3 * H), H)
    p["b_ih0"] = uni((1, 3 * H), H)
    p["b_hh0"] = uni((1, 3 * H), H)
    # GRU layer 1 (input = H)
    p["w_ih1"] = uni((H, 3 * H), H)
    p["w_hh1"] = uni((H, 3 * H), H)
    p["b_ih1"] = uni((1, 3 * H), H)
    p["b_hh1"] = uni((1, 3 * H), H)
    # encoder
    p["w_e1"] = uni((H, H), H); p["b_e1"] = uni((1, H), H)
    p["w_e2"] = uni((H, H), H); p["b_e2"] = uni((1, H), H)
    p["w_e3"] = uni((H, 2 * L), H); p["b_e3"] = uni((1, 2 * L), H)
    p["a_e1"] = jnp.full((1, 1), 0.25, dtype)   # PReLU (default init 0.25)
    p["a_e2"] = jnp.full((1, 1), 0.25, dtype)
    # decoder (last layer lane-padded n_feats -> FP with zero columns)
    p["w_d1"] = uni((L, H), L); p["b_d1"] = uni((1, H), L)
    p["w_d2"] = uni((H, H), H); p["b_d2"] = uni((1, H), H)
    w3 = uni((H, n_feats), H)
    b3 = uni((1, n_feats), H)
    p["w_d3"] = jnp.zeros((H, FP), dtype).at[:, :n_feats].set(w3)
    p["b_d3"] = jnp.zeros((1, FP), dtype).at[:, :n_feats].set(b3)
    p["a_d1"] = jnp.full((1, 1), 0.25, dtype)   # decoder PReLU params (were missing)
    p["a_d2"] = jnp.full((1, 1), 0.25, dtype)
    return p


_PARAM_ORDER = (
    "w_ih0", "w_hh0", "b_ih0", "b_hh0",
    "w_ih1", "w_hh1", "b_ih1", "b_hh1",
    "w_e1", "b_e1", "w_e2", "b_e2", "w_e3", "b_e3",
    "a_e1", "a_e2",
    "w_d1", "b_d1", "w_d2", "b_d2", "w_d3", "b_d3",
    "a_d1", "a_d2",
)


def omni_anomaly_forward(x, eps, params, n_feats, h0=None, *, b_tile=B_TILE):
    """Batched OmniAnomaly forward.

    Each row of `x` (shape (B, n_feats)) is one independent forward() call of
    the PyTorch module (seq_len = 1).  `eps` (B, n_latent) is the N(0,1) sample
    for the reparameterization trick.  `h0` (B, 2*n_hidden) is the optional
    initial GRU state per row (zeros when None, matching hidden=None).
    Returns (x_rec (B, n_feats), mu (B, L), logvar (B, L), hidden (B, 2H)).
    """
    H = params["w_hh0"].shape[0]
    L = params["w_d1"].shape[0]
    FP = params["w_ih0"].shape[0]
    B = x.shape[0]
    Bp = ((B + b_tile - 1) // b_tile) * b_tile

    # Pad batch to a multiple of the row tile and features to FP lanes.
    xp = jnp.zeros((Bp, FP), jnp.float32).at[:B, :n_feats].set(x.astype(jnp.float32))
    if h0 is None:
        h0 = jnp.zeros((B, 2 * H), jnp.float32)
    h0p = jnp.zeros((Bp, 2 * H), jnp.float32).at[:B].set(h0.astype(jnp.float32))
    epsp = jnp.zeros((Bp, L), jnp.float32).at[:B].set(eps.astype(jnp.float32))

    plist = [params[k] for k in _PARAM_ORDER]

    grid = (Bp // b_tile,)

    def batch_spec(width):
        return pl.BlockSpec((b_tile, width), lambda i: (i, 0))

    in_specs = [batch_spec(FP), batch_spec(2 * H), batch_spec(L)]
    # Parameters: constant index_map -> stay VMEM-resident across grid steps.
    in_specs += [pl.BlockSpec(p.shape, lambda i: (0, 0)) for p in plist]
    out_specs = (batch_spec(FP), batch_spec(2 * L), batch_spec(2 * H))

    # Advisory cost estimate so XLA schedules this small fused call sensibly.
    per_row_flops = 2 * (FP * 3 * H + H * 3 * H          # GRU layer 0
                         + H * 3 * H + H * 3 * H         # GRU layer 1
                         + H * H + H * H + H * 2 * L     # encoder
                         + L * H + H * H + H * FP)       # decoder
    per_row_trans = 2 * 3 * H + L + FP                   # sigmoids/tanh/exp
    param_bytes = sum(int(p.size) for p in plist) * 4
    ce = pl.CostEstimate(
        flops=int(Bp * per_row_flops),
        transcendentals=int(Bp * per_row_trans),
        bytes_accessed=int(param_bytes
                           + 4 * (int(xp.size) + int(h0p.size) + int(epsp.size))
                           + 4 * Bp * (FP + 2 * L + 2 * H)),
    )

    x_rec_p, mu_logvar_p, hidden_p = pl.pallas_call(
        _omni_kernel,
        out_shape=(
            jax.ShapeDtypeStruct((Bp, FP), jnp.float32),
            jax.ShapeDtypeStruct((Bp, 2 * L), jnp.float32),
            jax.ShapeDtypeStruct((Bp, 2 * H), jnp.float32),
        ),
        grid=grid,
        in_specs=in_specs,
        out_specs=out_specs,
        compiler_params=pltpu.CompilerParams(
            dimension_semantics=("parallel",)),   # shard batch tiles over TCs (v7x)
        cost_estimate=ce,
    )(xp, h0p, epsp, *plist)

    x_rec = x_rec_p[:B, :n_feats]
    mu = mu_logvar_p[:B, :L]
    logvar = mu_logvar_p[:B, L:]
    hidden = hidden_p[:B]          # (B, 2H): [layer-1 state | layer-2 state]
    return x_rec, mu, logvar, hidden


def _reference_forward(x, eps, params, n_feats, h0=None):
    """Pure-JAX reference (unpadded), mirrors OmniAnomaly.forward with hidden=None."""
    H = params["w_hh0"].shape[0]
    L = params["w_d1"].shape[0]
    B = x.shape[0]
    if h0 is None:
        h0 = jnp.zeros((B, 2 * H), jnp.float32)
    hi = jax.lax.Precision.HIGHEST

    def lin(v, w, b):
        return jnp.dot(v, w, precision=hi) + b

    def sig(t):
        return 1.0 / (1.0 + jnp.exp(-t))

    def prelu(t, a):
        return jnp.where(t >= 0.0, t, a * t)

    def cell(inp, hp, wih, whh, bih, bhh):
        gi = lin(inp, wih, bih)
        gh = lin(hp, whh, bhh)
        r = sig(gi[:, :H] + gh[:, :H])
        z = sig(gi[:, H:2 * H] + gh[:, H:2 * H])
        n = jnp.tanh(gi[:, 2 * H:] + r * gh[:, 2 * H:])
        return (1.0 - z) * n + z * hp

    h1 = cell(x.astype(jnp.float32), h0[:, :H],
              params["w_ih0"][:n_feats], params["w_hh0"],
              params["b_ih0"], params["b_hh0"])
    h2 = cell(h1, h0[:, H:],
              params["w_ih1"], params["w_hh1"], params["b_ih1"], params["b_hh1"])

    e = prelu(lin(h2, params["w_e1"], params["b_e1"]), params["a_e1"])
    e = prelu(lin(e, params["w_e2"], params["b_e2"]), params["a_e2"])
    mu_logvar = lin(e, params["w_e3"], params["b_e3"])
    mu, logvar = mu_logvar[:, :L], mu_logvar[:, L:]
    z = mu + eps * jnp.exp(0.5 * logvar)

    d = prelu(lin(z, params["w_d1"], params["b_d1"]), params["a_d1"])
    d = prelu(lin(d, params["w_d2"], params["b_d2"]), params["a_d2"])
    x_rec = sig(lin(d, params["w_d3"][:, :n_feats], params["b_d3"][:, :n_feats]))
    return x_rec, mu, logvar, jnp.concatenate([h1, h2], axis=-1)


if __name__ == "__main__":
    n_feats = 25     # sensor channels
    n_latent = 8
    batch = 4        # four independent windows (rows); wrapper pads rows to 128

    key = jax.random.PRNGKey(0)
    kx, keps, kp = jax.random.split(key, 3)
    x = jax.random.uniform(kx, (batch, n_feats), jnp.float32)       # scaled sensor data
    eps = jax.random.normal(keps, (batch, n_latent), jnp.float32)   # reparam noise
    params = init_omni_params(kp, n_feats)

    x_rec, mu, logvar, hidden = omni_anomaly_forward(x, eps, params, n_feats)
    jax.block_until_ready((x_rec, mu, logvar, hidden))

    r_x, r_mu, r_lv, r_h = _reference_forward(x, eps, params, n_feats)
    assert x_rec.shape == (batch, n_feats)
    assert mu.shape == (batch, n_latent) and logvar.shape == (batch, n_latent)
    assert hidden.shape == (batch, 2 * 32)
    assert jnp.allclose(x_rec, r_x, atol=1e-4, rtol=1e-4)
    assert jnp.allclose(mu, r_mu, atol=1e-4, rtol=1e-4)
    assert jnp.allclose(logvar, r_lv, atol=1e-4, rtol=1e-4)
    assert jnp.allclose(hidden, r_h, atol=1e-4, rtol=1e-4)

    print("KERNEL_OK")
</pallas_src>

<mosaic_0001>
module attributes {stable_mosaic.version = 11 : i64} {
  func.func @_omni_kernel(%arg0: i32, %arg1: memref<128x128xf32, #tpu.memory_space<vmem>>, %arg2: memref<128x64xf32, #tpu.memory_space<vmem>>, %arg3: memref<128x8xf32, #tpu.memory_space<vmem>>, %arg4: memref<128x96xf32, #tpu.memory_space<vmem>>, %arg5: memref<32x96xf32, #tpu.memory_space<vmem>>, %arg6: memref<1x96xf32, #tpu.memory_space<vmem>>, %arg7: memref<1x96xf32, #tpu.memory_space<vmem>>, %arg8: memref<32x96xf32, #tpu.memory_space<vmem>>, %arg9: memref<32x96xf32, #tpu.memory_space<vmem>>, %arg10: memref<1x96xf32, #tpu.memory_space<vmem>>, %arg11: memref<1x96xf32, #tpu.memory_space<vmem>>, %arg12: memref<32x32xf32, #tpu.memory_space<vmem>>, %arg13: memref<1x32xf32, #tpu.memory_space<vmem>>, %arg14: memref<32x32xf32, #tpu.memory_space<vmem>>, %arg15: memref<1x32xf32, #tpu.memory_space<vmem>>, %arg16: memref<32x16xf32, #tpu.memory_space<vmem>>, %arg17: memref<1x16xf32, #tpu.memory_space<vmem>>, %arg18: memref<1x1xf32, #tpu.memory_space<vmem>>, %arg19: memref<1x1xf32, #tpu.memory_space<vmem>>, %arg20: memref<8x32xf32, #tpu.memory_space<vmem>>, %arg21: memref<1x32xf32, #tpu.memory_space<vmem>>, %arg22: memref<32x32xf32, #tpu.memory_space<vmem>>, %arg23: memref<1x32xf32, #tpu.memory_space<vmem>>, %arg24: memref<32x128xf32, #tpu.memory_space<vmem>>, %arg25: memref<1x128xf32, #tpu.memory_space<vmem>>, %arg26: memref<1x1xf32, #tpu.memory_space<vmem>>, %arg27: memref<1x1xf32, #tpu.memory_space<vmem>>, %arg28: memref<128x128xf32, #tpu.memory_space<vmem>>, %arg29: memref<128x16xf32, #tpu.memory_space<vmem>>, %arg30: memref<128x64xf32, #tpu.memory_space<vmem>>) attributes {dimension_semantics = [#tpu.dimension_semantics<parallel>], iteration_bounds = array<i64: 1>, scalar_prefetch = 0 : i64, scratch_operands = 0 : i64, tpu.core_type = #tpu.core_type<tc>, window_params = [{transform_indices = @transform_0, window_bounds = array<i64: 128, 128>}, {transform_indices = @transform_1, window_bounds = array<i64: 128, 64>}, {transform_indices = @transform_2, window_bounds = array<i64: 128, 8>}, {pipeline_mode = #tpu.pipeline_mode<synchronous>, transform_indices = @transform_3, window_bounds = array<i64: 128, 96>}, {pipeline_mode = #tpu.pipeline_mode<synchronous>, transform_indices = @transform_4, window_bounds = array<i64: 32, 96>}, {pipeline_mode = #tpu.pipeline_mode<synchronous>, transform_indices = @transform_5, window_bounds = array<i64: 1, 96>}, {pipeline_mode = #tpu.pipeline_mode<synchronous>, transform_indices = @transform_6, window_bounds = array<i64: 1, 96>}, {pipeline_mode = #tpu.pipeline_mode<synchronous>, transform_indices = @transform_7, window_bounds = array<i64: 32, 96>}, {pipeline_mode = #tpu.pipeline_mode<synchronous>, transform_indices = @transform_8, window_bounds = array<i64: 32, 96>}, {pipeline_mode = #tpu.pipeline_mode<synchronous>, transform_indices = @transform_9, window_bounds = array<i64: 1, 96>}, {pipeline_mode = #tpu.pipeline_mode<synchronous>, transform_indices = @transform_10, window_bounds = array<i64: 1, 96>}, {pipeline_mode = #tpu.pipeline_mode<synchronous>, transform_indices = @transform_11, window_bounds = array<i64: 32, 32>}, {pipeline_mode = #tpu.pipeline_mode<synchronous>, transform_indices = @transform_12, window_bounds = array<i64: 1, 32>}, {pipeline_mode = #tpu.pipeline_mode<synchronous>, transform_indices = @transform_13, window_bounds = array<i64: 32, 32>}, {pipeline_mode = #tpu.pipeline_mode<synchronous>, transform_indices = @transform_14, window_bounds = array<i64: 1, 32>}, {pipeline_mode = #tpu.pipeline_mode<synchronous>, transform_indices = @transform_15, window_bounds = array<i64: 32, 16>}, {pipeline_mode = #tpu.pipeline_mode<synchronous>, transform_indices = @transform_16, window_bounds = array<i64: 1, 16>}, {pipeline_mode = #tpu.pipeline_mode<synchronous>, transform_indices = @transform_17, window_bounds = array<i64: 1, 1>}, {pipeline_mode = #tpu.pipeline_mode<synchronous>, transform_indices = @transform_18, window_bounds = array<i64: 1, 1>}, {pipeline_mode = #tpu.pipeline_mode<synchronous>, transform_indices = @transform_19, window_bounds = array<i64: 8, 32>}, {pipeline_mode = #tpu.pipeline_mode<synchronous>, transform_indices = @transform_20, window_bounds = array<i64: 1, 32>}, {pipeline_mode = #tpu.pipeline_mode<synchronous>, transform_indices = @transform_21, window_bounds = array<i64: 32, 32>}, {pipeline_mode = #tpu.pipeline_mode<synchronous>, transform_indices = @transform_22, window_bounds = array<i64: 1, 32>}, {pipeline_mode = #tpu.pipeline_mode<synchronous>, transform_indices = @transform_23, window_bounds = array<i64: 32, 128>}, {pipeline_mode = #tpu.pipeline_mode<synchronous>, transform_indices = @transform_24, window_bounds = array<i64: 1, 128>}, {pipeline_mode = #tpu.pipeline_mode<synchronous>, transform_indices = @transform_25, window_bounds = array<i64: 1, 1>}, {pipeline_mode = #tpu.pipeline_mode<synchronous>, transform_indices = @transform_26, window_bounds = array<i64: 1, 1>}, {transform_indices = @transform_27, window_bounds = array<i64: 128, 128>}, {transform_indices = @transform_28, window_bounds = array<i64: 128, 16>}, {transform_indices = @transform_29, window_bounds = array<i64: 128, 64>}]} {
    %c0 = arith.constant 0 : index
    %c0_0 = arith.constant 0 : index
    %0 = vector.load %arg1[%c0, %c0_0] : memref<128x128xf32, #tpu.memory_space<vmem>>, vector<128x128xf32>
    %c0_1 = arith.constant 0 : index
    %c0_2 = arith.constant 0 : index
    %1 = vector.load %arg2[%c0_1, %c0_2] : memref<128x64xf32, #tpu.memory_space<vmem>>, vector<128x64xf32>
    %2 = vector.extract_strided_slice %1 {offsets = [0, 0], sizes = [128, 32], strides = [1, 1]} : vector<128x64xf32> to vector<128x32xf32>
    %c0_3 = arith.constant 0 : index
    %c0_4 = arith.constant 0 : index
    %3 = vector.load %arg4[%c0_3, %c0_4] : memref<128x96xf32, #tpu.memory_space<vmem>>, vector<128x96xf32>
    %cst = arith.constant dense<0.000000e+00> : vector<128x96xf32>
    %4 = tpu.matmul %0, %3, %cst {dimension_numbers = #tpu.dot_dimension_numbers<[1], [0], [0], [1], [0, 0, 1, 1], [], []>} : vector<128x128xf32>, vector<128x96xf32>, vector<128x96xf32> -> vector<128x96xf32>
    %c0_5 = arith.constant 0 : index
    %c0_6 = arith.constant 0 : index
    %5 = vector.load %arg6[%c0_5, %c0_6] : memref<1x96xf32, #tpu.memory_space<vmem>>, vector<1x96xf32>
    %6 = vector.broadcast %5 : vector<1x96xf32> to vector<128x96xf32>
    %7 = arith.addf %4, %6 : vector<128x96xf32>
    %c0_7 = arith.constant 0 : index
    %c0_8 = arith.constant 0 : index
    %8 = vector.load %arg5[%c0_7, %c0_8] : memref<32x96xf32, #tpu.memory_space<vmem>>, vector<32x96xf32>
    %cst_9 = arith.constant dense<0.000000e+00> : vector<128x96xf32>
    %9 = tpu.matmul %2, %8, %cst_9 {dimension_numbers = #tpu.dot_dimension_numbers<[1], [0], [0], [1], [0, 0, 1, 1], [], []>} : vector<128x32xf32>, vector<32x96xf32>, vector<128x96xf32> -> vector<128x96xf32>
    %c0_10 = arith.constant 0 : index
    %c0_11 = arith.constant 0 : index
    %10 = vector.load %arg7[%c0_10, %c0_11] : memref<1x96xf32, #tpu.memory_space<vmem>>, vector<1x96xf32>
    %11 = vector.broadcast %10 : vector<1x96xf32> to vector<128x96xf32>
    %12 = arith.addf %9, %11 : vector<128x96xf32>
    %13 = vector.extract_strided_slice %7 {offsets = [0, 0], sizes = [128, 32], strides = [1, 1]} : vector<128x96xf32> to vector<128x32xf32>
    %14 = vector.extract_strided_slice %12 {offsets = [0, 0], sizes = [128, 32], strides = [1, 1]} : vector<128x96xf32> to vector<128x32xf32>
    %15 = arith.addf %13, %14 : vector<128x32xf32>
    %cst_12 = arith.constant 0.000000e+00 : f32
    %16 = vector.broadcast %cst_12 : f32 to vector<128x32xf32>
    %17 = arith.subf %16, %15 : vector<128x32xf32>
    %18 = math.exp %17 : vector<128x32xf32>
    %cst_13 = arith.constant 1.000000e+00 : f32
    %19 = vector.broadcast %cst_13 : f32 to vector<128x32xf32>
    %20 = arith.addf %19, %18 : vector<128x32xf32>
    %cst_14 = arith.constant 1.000000e+00 : f32
    %21 = vector.broadcast %cst_14 : f32 to vector<128x32xf32>
    %22 = arith.divf %21, %20 : vector<128x32xf32>
    %23 = vector.extract_strided_slice %7 {offsets = [0, 32], sizes = [128, 32], strides = [1, 1]} : vector<128x96xf32> to vector<128x32xf32>
    %24 = vector.extract_strided_slice %12 {offsets = [0, 32], sizes = [128, 32], strides = [1, 1]} : vector<128x96xf32> to vector<128x32xf32>
    %25 = arith.addf %23, %24 : vector<128x32xf32>
    %cst_15 = arith.constant 0.000000e+00 : f32
    %26 = vector.broadcast %cst_15 : f32 to vector<128x32xf32>
    %27 = arith.subf %26, %25 : vector<128x32xf32>
    %28 = math.exp %27 : vector<128x32xf32>
    %cst_16 = arith.constant 1.000000e+00 : f32
    %29 = vector.broadcast %cst_16 : f32 to vector<128x32xf32>
    %30 = arith.addf %29, %28 : vector<128x32xf32>
    %cst_17 = arith.constant 1.000000e+00 : f32
    %31 = vector.broadcast %cst_17 : f32 to vector<128x32xf32>
    %32 = arith.divf %31, %30 : vector<128x32xf32>
    %33 = vector.extract_strided_slice %7 {offsets = [0, 64], sizes = [128, 32], strides = [1, 1]} : vector<128x96xf32> to vector<128x32xf32>
    %34 = vector.extract_strided_slice %12 {offsets = [0, 64], sizes = [128, 32], strides = [1, 1]} : vector<128x96xf32> to vector<128x32xf32>
    %35 = arith.mulf %22, %34 : vector<128x32xf32>
    %36 = arith.addf %33, %35 : vector<128x32xf32>
    %37 = math.tanh %36 : vector<128x32xf32>
    %cst_18 = arith.constant 1.000000e+00 : f32
    %38 = vector.broadcast %cst_18 : f32 to vector<128x32xf32>
    %39 = arith.subf %38, %32 : vector<128x32xf32>
    %40 = arith.mulf %39, %37 : vector<128x32xf32>
    %41 = arith.mulf %32, %2 : vector<128x32xf32>
    %42 = arith.addf %40, %41 : vector<128x32xf32>
    %43 = vector.extract_strided_slice %1 {offsets = [0, 32], sizes = [128, 32], strides = [1, 1]} : vector<128x64xf32> to vector<128x32xf32>
    %c0_19 = arith.constant 0 : index
    %c0_20 = arith.constant 0 : index
    %44 = vector.load %arg8[%c0_19, %c0_20] : memref<32x96xf32, #tpu.memory_space<vmem>>, vector<32x96xf32>
    %cst_21 = arith.constant dense<0.000000e+00> : vector<128x96xf32>
    %45 = tpu.matmul %42, %44, %cst_21 {dimension_numbers = #tpu.dot_dimension_numbers<[1], [0], [0], [1], [0, 0, 1, 1], [], []>} : vector<128x32xf32>, vector<32x96xf32>, vector<128x96xf32> -> vector<128x96xf32>
    %c0_22 = arith.constant 0 : index
    %c0_23 = arith.constant 0 : index
    %46 = vector.load %arg10[%c0_22, %c0_23] : memref<1x96xf32, #tpu.memory_space<vmem>>, vector<1x96xf32>
    %47 = vector.broadcast %46 : vector<1x96xf32> to vector<128x96xf32>
    %48 = arith.addf %45, %47 : vector<128x96xf32>
    %c0_24 = arith.constant 0 : index
    %c0_25 = arith.constant 0 : index
    %49 = vector.load %arg9[%c0_24, %c0_25] : memref<32x96xf32, #tpu.memory_space<vmem>>, vector<32x96xf32>
    %cst_26 = arith.constant dense<0.000000e+00> : vector<128x96xf32>
    %50 = tpu.matmul %43, %49, %cst_26 {dimension_numbers = #tpu.dot_dimension_numbers<[1], [0], [0], [1], [0, 0, 1, 1], [], []>} : vector<128x32xf32>, vector<32x96xf32>, vector<128x96xf32> -> vector<128x96xf32>
    %c0_27 = arith.constant 0 : index
    %c0_28 = arith.constant 0 : index
    %51 = vector.load %arg11[%c0_27, %c0_28] : memref<1x96xf32, #tpu.memory_space<vmem>>, vector<1x96xf32>
    %52 = vector.broadcast %51 : vector<1x96xf32> to vector<128x96xf32>
    %53 = arith.addf %50, %52 : vector<128x96xf32>
    %54 = vector.extract_strided_slice %48 {offsets = [0, 0], sizes = [128, 32], strides = [1, 1]} : vector<128x96xf32> to vector<128x32xf32>
    %55 = vector.extract_strided_slice %53 {offsets = [0, 0], sizes = [128, 32], strides = [1, 1]} : vector<128x96xf32> to vector<128x32xf32>
    %56 = arith.addf %54, %55 : vector<128x32xf32>
    %cst_29 = arith.constant 0.000000e+00 : f32
    %57 = vector.broadcast %cst_29 : f32 to vector<128x32xf32>
    %58 = arith.subf %57, %56 : vector<128x32xf32>
    %59 = math.exp %58 : vector<128x32xf32>
    %cst_30 = arith.constant 1.000000e+00 : f32
    %60 = vector.broadcast %cst_30 : f32 to vector<128x32xf32>
    %61 = arith.addf %60, %59 : vector<128x32xf32>
    %cst_31 = arith.constant 1.000000e+00 : f32
    %62 = vector.broadcast %cst_31 : f32 to vector<128x32xf32>
    %63 = arith.divf %62, %61 : vector<128x32xf32>
    %64 = vector.extract_strided_slice %48 {offsets = [0, 32], sizes = [128, 32], strides = [1, 1]} : vector<128x96xf32> to vector<128x32xf32>
    %65 = vector.extract_strided_slice %53 {offsets = [0, 32], sizes = [128, 32], strides = [1, 1]} : vector<128x96xf32> to vector<128x32xf32>
    %66 = arith.addf %64, %65 : vector<128x32xf32>
    %cst_32 = arith.constant 0.000000e+00 : f32
    %67 = vector.broadcast %cst_32 : f32 to vector<128x32xf32>
    %68 = arith.subf %67, %66 : vector<128x32xf32>
    %69 = math.exp %68 : vector<128x32xf32>
    %cst_33 = arith.constant 1.000000e+00 : f32
    %70 = vector.broadcast %cst_33 : f32 to vector<128x32xf32>
    %71 = arith.addf %70, %69 : vector<128x32xf32>
    %cst_34 = arith.constant 1.000000e+00 : f32
    %72 = vector.broadcast %cst_34 : f32 to vector<128x32xf32>
    %73 = arith.divf %72, %71 : vector<128x32xf32>
    %74 = vector.extract_strided_slice %48 {offsets = [0, 64], sizes = [128, 32], strides = [1, 1]} : vector<128x96xf32> to vector<128x32xf32>
    %75 = vector.extract_strided_slice %53 {offsets = [0, 64], sizes = [128, 32], strides = [1, 1]} : vector<128x96xf32> to vector<128x32xf32>
    %76 = arith.mulf %63, %75 : vector<128x32xf32>
    %77 = arith.addf %74, %76 : vector<128x32xf32>
    %78 = math.tanh %77 : vector<128x32xf32>
    %cst_35 = arith.constant 1.000000e+00 : f32
    %79 = vector.broadcast %cst_35 : f32 to vector<128x32xf32>
    %80 = arith.subf %79, %73 : vector<128x32xf32>
    %81 = arith.mulf %80, %78 : vector<128x32xf32>
    %82 = arith.mulf %73, %43 : vector<128x32xf32>
    %83 = arith.addf %81, %82 : vector<128x32xf32>
    %c0_36 = arith.constant 0 : index
    %c0_37 = arith.constant 0 : index
    %84 = vector.load %arg12[%c0_36, %c0_37] : memref<32x32xf32, #tpu.memory_space<vmem>>, vector<32x32xf32>
    %cst_38 = arith.constant dense<0.000000e+00> : vector<128x32xf32>
    %85 = tpu.matmul %83, %84, %cst_38 {dimension_numbers = #tpu.dot_dimension_numbers<[1], [0], [0], [1], [0, 0, 1, 1], [], []>} : vector<128x32xf32>, vector<32x32xf32>, vector<128x32xf32> -> vector<128x32xf32>
    %c0_39 = arith.constant 0 : index
    %c0_40 = arith.constant 0 : index
    %86 = vector.load %arg13[%c0_39, %c0_40] : memref<1x32xf32, #tpu.memory_space<vmem>>, vector<1x32xf32>
    %87 = vector.broadcast %86 : vector<1x32xf32> to vector<128x32xf32>
    %88 = arith.addf %85, %87 : vector<128x32xf32>
    %c0_41 = arith.constant 0 : index
    %c0_42 = arith.constant 0 : index
    %89 = vector.load %arg18[%c0_41, %c0_42] : memref<1x1xf32, #tpu.memory_space<vmem>>, vector<1x1xf32>
    %cst_43 = arith.constant 0.000000e+00 : f32
    %90 = vector.broadcast %cst_43 : f32 to vector<128x32xf32>
    %91 = arith.cmpf oge, %88, %90 : vector<128x32xf32>
    %92 = vector.broadcast %89 : vector<1x1xf32> to vector<128x32xf32>
    %93 = arith.mulf %92, %88 : vector<128x32xf32>
    %94 = arith.select %91, %88, %93 : vector<128x32xi1>, vector<128x32xf32>
    %c0_44 = arith.constant 0 : index
    %c0_45 = arith.constant 0 : index
    %95 = vector.load %arg14[%c0_44, %c0_45] : memref<32x32xf32, #tpu.memory_space<vmem>>, vector<32x32xf32>
    %cst_46 = arith.constant dense<0.000000e+00> : vector<128x32xf32>
    %96 = tpu.matmul %94, %95, %cst_46 {dimension_numbers = #tpu.dot_dimension_numbers<[1], [0], [0], [1], [0, 0, 1, 1], [], []>} : vector<128x32xf32>, vector<32x32xf32>, vector<128x32xf32> -> vector<128x32xf32>
    %c0_47 = arith.constant 0 : index
    %c0_48 = arith.constant 0 : index
    %97 = vector.load %arg15[%c0_47, %c0_48] : memref<1x32xf32, #tpu.memory_space<vmem>>, vector<1x32xf32>
    %98 = vector.broadcast %97 : vector<1x32xf32> to vector<128x32xf32>
    %99 = arith.addf %96, %98 : vector<128x32xf32>
    %c0_49 = arith.constant 0 : index
    %c0_50 = arith.constant 0 : index
    %100 = vector.load %arg19[%c0_49, %c0_50] : memref<1x1xf32, #tpu.memory_space<vmem>>, vector<1x1xf32>
    %cst_51 = arith.constant 0.000000e+00 : f32
    %101 = vector.broadcast %cst_51 : f32 to vector<128x32xf32>
    %102 = arith.cmpf oge, %99, %101 : vector<128x32xf32>
    %103 = vector.broadcast %100 : vector<1x1xf32> to vector<128x32xf32>
    %104 = arith.mulf %103, %99 : vector<128x32xf32>
    %105 = arith.select %102, %99, %104 : vector<128x32xi1>, vector<128x32xf32>
    %c0_52 = arith.constant 0 : index
    %c0_53 = arith.constant 0 : index
    %106 = vector.load %arg16[%c0_52, %c0_53] : memref<32x16xf32, #tpu.memory_space<vmem>>, vector<32x16xf32>
    %cst_54 = arith.constant dense<0.000000e+00> : vector<128x16xf32>
    %107 = tpu.matmul %105, %106, %cst_54 {dimension_numbers = #tpu.dot_dimension_numbers<[1], [0], [0], [1], [0, 0, 1, 1], [], []>} : vector<128x32xf32>, vector<32x16xf32>, vector<128x16xf32> -> vector<128x16xf32>
    %c0_55 = arith.constant 0 : index
    %c0_56 = arith.constant 0 : index
    %108 = vector.load %arg17[%c0_55, %c0_56] : memref<1x16xf32, #tpu.memory_space<vmem>>, vector<1x16xf32>
    %109 = vector.broadcast %108 : vector<1x16xf32> to vector<128x16xf32>
    %110 = arith.addf %107, %109 : vector<128x16xf32>
    %111 = vector.extract_strided_slice %110 {offsets = [0, 0], sizes = [128, 8], strides = [1, 1]} : vector<128x16xf32> to vector<128x8xf32>
    %112 = vector.extract_strided_slice %110 {offsets = [0, 8], sizes = [128, 8], strides = [1, 1]} : vector<128x16xf32> to vector<128x8xf32>
    %c0_57 = arith.constant 0 : index
    %c0_58 = arith.constant 0 : index
    %113 = vector.load %arg3[%c0_57, %c0_58] : memref<128x8xf32, #tpu.memory_space<vmem>>, vector<128x8xf32>
    %cst_59 = arith.constant 5.000000e-01 : f32
    %114 = vector.broadcast %cst_59 : f32 to vector<128x8xf32>
    %115 = arith.mulf %114, %112 : vector<128x8xf32>
    %116 = math.exp %115 : vector<128x8xf32>
    %117 = arith.mulf %113, %116 : vector<128x8xf32>
    %118 = arith.addf %111, %117 : vector<128x8xf32>
    %c0_60 = arith.constant 0 : index
    %c0_61 = arith.constant 0 : index
    %119 = vector.load %arg20[%c0_60, %c0_61] : memref<8x32xf32, #tpu.memory_space<vmem>>, vector<8x32xf32>
    %cst_62 = arith.constant dense<0.000000e+00> : vector<128x32xf32>
    %120 = tpu.matmul %118, %119, %cst_62 {dimension_numbers = #tpu.dot_dimension_numbers<[1], [0], [0], [1], [0, 0, 1, 1], [], []>} : vector<128x8xf32>, vector<8x32xf32>, vector<128x32xf32> -> vector<128x32xf32>
    %c0_63 = arith.constant 0 : index
    %c0_64 = arith.constant 0 : index
    %121 = vector.load %arg21[%c0_63, %c0_64] : memref<1x32xf32, #tpu.memory_space<vmem>>, vector<1x32xf32>
    %122 = vector.broadcast %121 : vector<1x32xf32> to vector<128x32xf32>
    %123 = arith.addf %120, %122 : vector<128x32xf32>
    %c0_65 = arith.constant 0 : index
    %c0_66 = arith.constant 0 : index
    %124 = vector.load %arg26[%c0_65, %c0_66] : memref<1x1xf32, #tpu.memory_space<vmem>>, vector<1x1xf32>
    %cst_67 = arith.constant 0.000000e+00 : f32
    %125 = vector.broadcast %cst_67 : f32 to vector<128x32xf32>
    %126 = arith.cmpf oge, %123, %125 : vector<128x32xf32>
    %127 = vector.broadcast %124 : vector<1x1xf32> to vector<128x32xf32>
    %128 = arith.mulf %127, %123 : vector<128x32xf32>
    %129 = arith.select %126, %123, %128 : vector<128x32xi1>, vector<128x32xf32>
    %c0_68 = arith.constant 0 : index
    %c0_69 = arith.constant 0 : index
    %130 = vector.load %arg22[%c0_68, %c0_69] : memref<32x32xf32, #tpu.memory_space<vmem>>, vector<32x32xf32>
    %cst_70 = arith.constant dense<0.000000e+00> : vector<128x32xf32>
    %131 = tpu.matmul %129, %130, %cst_70 {dimension_numbers = #tpu.dot_dimension_numbers<[1], [0], [0], [1], [0, 0, 1, 1], [], []>} : vector<128x32xf32>, vector<32x32xf32>, vector<128x32xf32> -> vector<128x32xf32>
    %c0_71 = arith.constant 0 : index
    %c0_72 = arith.constant 0 : index
    %132 = vector.load %arg23[%c0_71, %c0_72] : memref<1x32xf32, #tpu.memory_space<vmem>>, vector<1x32xf32>
    %133 = vector.broadcast %132 : vector<1x32xf32> to vector<128x32xf32>
    %134 = arith.addf %131, %133 : vector<128x32xf32>
    %c0_73 = arith.constant 0 : index
    %c0_74 = arith.constant 0 : index
    %135 = vector.load %arg27[%c0_73, %c0_74] : memref<1x1xf32, #tpu.memory_space<vmem>>, vector<1x1xf32>
    %cst_75 = arith.constant 0.000000e+00 : f32
    %136 = vector.broadcast %cst_75 : f32 to vector<128x32xf32>
    %137 = arith.cmpf oge, %134, %136 : vector<128x32xf32>
    %138 = vector.broadcast %135 : vector<1x1xf32> to vector<128x32xf32>
    %139 = arith.mulf %138, %134 : vector<128x32xf32>
    %140 = arith.select %137, %134, %139 : vector<128x32xi1>, vector<128x32xf32>
    %c0_76 = arith.constant 0 : index
    %c0_77 = arith.constant 0 : index
    %141 = vector.load %arg24[%c0_76, %c0_77] : memref<32x128xf32, #tpu.memory_space<vmem>>, vector<32x128xf32>
    %cst_78 = arith.constant dense<0.000000e+00> : vector<128x128xf32>
    %142 = tpu.matmul %140, %141, %cst_78 {dimension_numbers = #tpu.dot_dimension_numbers<[1], [0], [0], [1], [0, 0, 1, 1], [], []>} : vector<128x32xf32>, vector<32x128xf32>, vector<128x128xf32> -> vector<128x128xf32>
    %c0_79 = arith.constant 0 : index
    %c0_80 = arith.constant 0 : index
    %143 = vector.load %arg25[%c0_79, %c0_80] : memref<1x128xf32, #tpu.memory_space<vmem>>, vector<1x128xf32>
    %144 = vector.broadcast %143 : vector<1x128xf32> to vector<128x128xf32>
    %145 = arith.addf %142, %144 : vector<128x128xf32>
    %cst_81 = arith.constant 0.000000e+00 : f32
    %146 = vector.broadcast %cst_81 : f32 to vector<128x128xf32>
    %147 = arith.subf %146, %145 : vector<128x128xf32>
    %148 = math.exp %147 : vector<128x128xf32>
    %cst_82 = arith.constant 1.000000e+00 : f32
    %149 = vector.broadcast %cst_82 : f32 to vector<128x128xf32>
    %150 = arith.addf %149, %148 : vector<128x128xf32>
    %cst_83 = arith.constant 1.000000e+00 : f32
    %151 = vector.broadcast %cst_83 : f32 to vector<128x128xf32>
    %152 = arith.divf %151, %150 : vector<128x128xf32>
    %c0_84 = arith.constant 0 : index
    %c0_85 = arith.constant 0 : index
    %153 = vector.load %arg28[%c0_84, %c0_85] : memref<128x128xf32, #tpu.memory_space<vmem>>, vector<128x128xf32>
    tpu.vector_store %arg28[%c0_84, %c0_85], %152 {strides = array<i32>} : memref<128x128xf32, #tpu.memory_space<vmem>>, vector<128x128xf32>,
    %c0_86 = arith.constant 0 : index
    %c0_87 = arith.constant 0 : index
    %154 = vector.load %arg29[%c0_86, %c0_87] : memref<128x16xf32, #tpu.memory_space<vmem>>, vector<128x16xf32>
    tpu.vector_store %arg29[%c0_86, %c0_87], %110 {strides = array<i32>} : memref<128x16xf32, #tpu.memory_space<vmem>>, vector<128x16xf32>,
    %c0_88 = arith.constant 0 : index
    %c0_89 = arith.constant 0 : index
    %155 = vector.load %arg30[%c0_88, %c0_89] : memref<128x64xf32, #tpu.memory_space<vmem>>, vector<128x32xf32>
    tpu.vector_store %arg30[%c0_88, %c0_89], %42 {strides = array<i32>} : memref<128x64xf32, #tpu.memory_space<vmem>>, vector<128x32xf32>,
    %c0_90 = arith.constant 0 : index
    %c32 = arith.constant 32 : index
    %156 = vector.load %arg30[%c0_90, %c32] : memref<128x64xf32, #tpu.memory_space<vmem>>, vector<128x32xf32>
    tpu.vector_store %arg30[%c0_90, %c32], %83 {strides = array<i32>} : memref<128x64xf32, #tpu.memory_space<vmem>>, vector<128x32xf32>,
    return
  }
  func.func @transform_0(%arg0: i32) -> (i32, i32) {
    %c0_i32 = arith.constant 0 : i32
    %c0_i32_0 = arith.constant 0 : i32
    return %arg0, %c0_i32 : i32, i32
  }
  func.func @transform_1(%arg0: i32) -> (i32, i32) {
    %c0_i32 = arith.constant 0 : i32
    %c0_i32_0 = arith.constant 0 : i32
    return %arg0, %c0_i32 : i32, i32
  }
  func.func @transform_2(%arg0: i32) -> (i32, i32) {
    %c0_i32 = arith.constant 0 : i32
    %c0_i32_0 = arith.constant 0 : i32
    return %arg0, %c0_i32 : i32, i32
  }
  func.func @transform_3(%arg0: i32) -> (i32, i32) {
    %c0_i32 = arith.constant 0 : i32
    %c0_i32_0 = arith.constant 0 : i32
    %c0_i32_1 = arith.constant 0 : i32
    return %c0_i32, %c0_i32_0 : i32, i32
  }
  func.func @transform_4(%arg0: i32) -> (i32, i32) {
    %c0_i32 = arith.constant 0 : i32
    %c0_i32_0 = arith.constant 0 : i32
    %c0_i32_1 = arith.constant 0 : i32
    return %c0_i32, %c0_i32_0 : i32, i32
  }
  func.func @transform_5(%arg0: i32) -> (i32, i32) {
    %c0_i32 = arith.constant 0 : i32
    %c0_i32_0 = arith.constant 0 : i32
    %c0_i32_1 = arith.constant 0 : i32
    return %c0_i32, %c0_i32_0 : i32, i32
  }
  func.func @transform_6(%arg0: i32) -> (i32, i32) {
    %c0_i32 = arith.constant 0 : i32
    %c0_i32_0 = arith.constant 0 : i32
    %c0_i32_1 = arith.constant 0 : i32
    return %c0_i32, %c0_i32_0 : i32, i32
  }
  func.func @transform_7(%arg0: i32) -> (i32, i32) {
    %c0_i32 = arith.constant 0 : i32
    %c0_i32_0 = arith.constant 0 : i32
    %c0_i32_1 = arith.constant 0 : i32
    return %c0_i32, %c0_i32_0 : i32, i32
  }
  func.func @transform_8(%arg0: i32) -> (i32, i32) {
    %c0_i32 = arith.constant 0 : i32
    %c0_i32_0 = arith.constant 0 : i32
    %c0_i32_1 = arith.constant 0 : i32
    return %c0_i32, %c0_i32_0 : i32, i32
  }
  func.func @transform_9(%arg0: i32) -> (i32, i32) {
    %c0_i32 = arith.constant 0 : i32
    %c0_i32_0 = arith.constant 0 : i32
    %c0_i32_1 = arith.constant 0 : i32
    return %c0_i32, %c0_i32_0 : i32, i32
  }
  func.func @transform_10(%arg0: i32) -> (i32, i32) {
    %c0_i32 = arith.constant 0 : i32
    %c0_i32_0 = arith.constant 0 : i32
    %c0_i32_1 = arith.constant 0 : i32
    return %c0_i32, %c0_i32_0 : i32, i32
  }
  func.func @transform_11(%arg0: i32) -> (i32, i32) {
    %c0_i32 = arith.constant 0 : i32
    %c0_i32_0 = arith.constant 0 : i32
    %c0_i32_1 = arith.constant 0 : i32
    return %c0_i32, %c0_i32_0 : i32, i32
  }
  func.func @transform_12(%arg0: i32) -> (i32, i32) {
    %c0_i32 = arith.constant 0 : i32
    %c0_i32_0 = arith.constant 0 : i32
    %c0_i32_1 = arith.constant 0 : i32
    return %c0_i32, %c0_i32_0 : i32, i32
  }
  func.func @transform_13(%arg0: i32) -> (i32, i32) {
    %c0_i32 = arith.constant 0 : i32
    %c0_i32_0 = arith.constant 0 : i32
    %c0_i32_1 = arith.constant 0 : i32
    return %c0_i32, %c0_i32_0 : i32, i32
  }
  func.func @transform_14(%arg0: i32) -> (i32, i32) {
    %c0_i32 = arith.constant 0 : i32
    %c0_i32_0 = arith.constant 0 : i32
    %c0_i32_1 = arith.constant 0 : i32
    return %c0_i32, %c0_i32_0 : i32, i32
  }
  func.func @transform_15(%arg0: i32) -> (i32, i32) {
    %c0_i32 = arith.constant 0 : i32
    %c0_i32_0 = arith.constant 0 : i32
    %c0_i32_1 = arith.constant 0 : i32
    return %c0_i32, %c0_i32_0 : i32, i32
  }
  func.func @transform_16(%arg0: i32) -> (i32, i32) {
    %c0_i32 = arith.constant 0 : i32
    %c0_i32_0 = arith.constant 0 : i32
    %c0_i32_1 = arith.constant 0 : i32
    return %c0_i32, %c0_i32_0 : i32, i32
  }
  func.func @transform_17(%arg0: i32) -> (i32, i32) {
    %c0_i32 = arith.constant 0 : i32
    %c0_i32_0 = arith.constant 0 : i32
    %c0_i32_1 = arith.constant 0 : i32
    return %c0_i32, %c0_i32_0 : i32, i32
  }
  func.func @transform_18(%arg0: i32) -> (i32, i32) {
    %c0_i32 = arith.constant 0 : i32
    %c0_i32_0 = arith.constant 0 : i32
    %c0_i32_1 = arith.constant 0 : i32
    return %c0_i32, %c0_i32_0 : i32, i32
  }
  func.func @transform_19(%arg0: i32) -> (i32, i32) {
    %c0_i32 = arith.constant 0 : i32
    %c0_i32_0 = arith.constant 0 : i32
    %c0_i32_1 = arith.constant 0 : i32
    return %c0_i32, %c0_i32_0 : i32, i32
  }
  func.func @transform_20(%arg0: i32) -> (i32, i32) {
    %c0_i32 = arith.constant 0 : i32
    %c0_i32_0 = arith.constant 0 : i32
    %c0_i32_1 = arith.constant 0 : i32
    return %c0_i32, %c0_i32_0 : i32, i32
  }
  func.func @transform_21(%arg0: i32) -> (i32, i32) {
    %c0_i32 = arith.constant 0 : i32
    %c0_i32_0 = arith.constant 0 : i32
    %c0_i32_1 = arith.constant 0 : i32
    return %c0_i32, %c0_i32_0 : i32, i32
  }
  func.func @transform_22(%arg0: i32) -> (i32, i32) {
    %c0_i32 = arith.constant 0 : i32
    %c0_i32_0 = arith.constant 0 : i32
    %c0_i32_1 = arith.constant 0 : i32
    return %c0_i32, %c0_i32_0 : i32, i32
  }
  func.func @transform_23(%arg0: i32) -> (i32, i32) {
    %c0_i32 = arith.constant 0 : i32
    %c0_i32_0 = arith.constant 0 : i32
    %c0_i32_1 = arith.constant 0 : i32
    return %c0_i32, %c0_i32_0 : i32, i32
  }
  func.func @transform_24(%arg0: i32) -> (i32, i32) {
    %c0_i32 = arith.constant 0 : i32
    %c0_i32_0 = arith.constant 0 : i32
    %c0_i32_1 = arith.constant 0 : i32
    return %c0_i32, %c0_i32_0 : i32, i32
  }
  func.func @transform_25(%arg0: i32) -> (i32, i32) {
    %c0_i32 = arith.constant 0 : i32
    %c0_i32_0 = arith.constant 0 : i32
    %c0_i32_1 = arith.constant 0 : i32
    return %c0_i32, %c0_i32_0 : i32, i32
  }
  func.func @transform_26(%arg0: i32) -> (i32, i32) {
    %c0_i32 = arith.constant 0 : i32
    %c0_i32_0 = arith.constant 0 : i32
    %c0_i32_1 = arith.constant 0 : i32
    return %c0_i32, %c0_i32_0 : i32, i32
  }
  func.func @transform_27(%arg0: i32) -> (i32, i32) {
    %c0_i32 = arith.constant 0 : i32
    %c0_i32_0 = arith.constant 0 : i32
    return %arg0, %c0_i32 : i32, i32
  }
  func.func @transform_28(%arg0: i32) -> (i32, i32) {
    %c0_i32 = arith.constant 0 : i32
    %c0_i32_0 = arith.constant 0 : i32
    return %arg0, %c0_i32 : i32, i32
  }
  func.func @transform_29(%arg0: i32) -> (i32, i32) {
    %c0_i32 = arith.constant 0 : i32
    %c0_i32_0 = arith.constant 0 : i32
    return %arg0, %c0_i32 : i32, i32
  }
}

</mosaic_0001>

<llo_original>
// kernel: tpu_custom_call.1
$region0: #{tpu_custom_call.1}
  #allocation0 [shape = 'u32[]', space=smem, size = 0x4, offset = 0x4, fixed_abs, tag = 'smem constant byte address 0x4 - core index']
  #allocation1 [shape = 'u32[72,128]{1,0:T(1,128)}', space=vmem, size = 0x9000, scoped, tag = 'internal scratch']
  #allocation2 [shape = 'f32[1,1]{1,0:T(1,128)S(1)}', space=vmem, size = 0x200, scoped, tag = 'scoped memory for tpu_custom_call.1']
  #allocation3 [shape = 'f32[1,1]{1,0:T(1,128)S(1)}', space=vmem, size = 0x200, scoped, tag = 'scoped memory for tpu_custom_call.1']
  #allocation4 [shape = 'f32[1,1]{1,0:T(1,128)S(1)}', space=vmem, size = 0x200, scoped, tag = 'scoped memory for tpu_custom_call.1']
  #allocation5 [shape = 'f32[1,1]{1,0:T(1,128)S(1)}', space=vmem, size = 0x200, scoped, tag = 'scoped memory for tpu_custom_call.1']
  %s0 = inlined_call_operand.smem [shape: u32[30], index: -1, kind: input, shape index: {}]
  %s1 = sld [smem:[%s0]]
  %s2 = scalar_lea.smem %s0, 1
  %s3 = sld [smem:[%s2]]
  %s4 = scalar_lea.smem %s0, 2
  %s5 = sld [smem:[%s4]]
  %s6 = scalar_lea.smem %s0, 3
  %s7 = sld [smem:[%s6]]
  %s8 = scalar_lea.smem %s0, 4
  %s9 = sld [smem:[%s8]]
  %s10 = scalar_lea.smem %s0, 5
  %s11 = sld [smem:[%s10]]
  %s12 = scalar_lea.smem %s0, 6
  %s13 = sld [smem:[%s12]]
  %s14 = scalar_lea.smem %s0, 7
  %s15 = sld [smem:[%s14]]
  %s16 = scalar_lea.smem %s0, 8
  %s17 = sld [smem:[%s16]]
  %s18 = scalar_lea.smem %s0, 9
  %s19 = sld [smem:[%s18]]
  %s20 = scalar_lea.smem %s0, 10
  %s21 = sld [smem:[%s20]]
  %s22 = scalar_lea.smem %s0, 11
  %s23 = sld [smem:[%s22]]
  %s24 = scalar_lea.smem %s0, 12
  %s25 = sld [smem:[%s24]]
  %s26 = scalar_lea.smem %s0, 13
  %s27 = sld [smem:[%s26]]
  %s28 = scalar_lea.smem %s0, 14
  %s29 = sld [smem:[%s28]]
  %s30 = scalar_lea.smem %s0, 15
  %s31 = sld [smem:[%s30]]
  %s32 = scalar_lea.smem %s0, 16
  %s33 = sld [smem:[%s32]]
  %s34 = scalar_lea.smem %s0, 17
  %s35 = sld [smem:[%s34]]
  %s36 = scalar_lea.smem %s0, 18
  %s37 = sld [smem:[%s36]]
  %s38 = scalar_lea.smem %s0, 19
  %s39 = sld [smem:[%s38]]
  %s40 = scalar_lea.smem %s0, 20
  %s41 = sld [smem:[%s40]]
  %s42 = scalar_lea.smem %s0, 21
  %s43 = sld [smem:[%s42]]
  %s44 = scalar_lea.smem %s0, 22
  %s45 = sld [smem:[%s44]]
  %s46 = scalar_lea.smem %s0, 23
  %s47 = sld [smem:[%s46]]
  %s48 = scalar_lea.smem %s0, 24
  %s49 = sld [smem:[%s48]]
  %s50 = scalar_lea.smem %s0, 25
  %s51 = sld [smem:[%s50]]
  %s52 = scalar_lea.smem %s0, 26
  %s53 = sld [smem:[%s52]]
  %s54 = scalar_lea.smem %s0, 27
  %s55 = sld [smem:[%s54]]
  %s56 = scalar_lea.smem %s0, 28
  %s57 = sld [smem:[%s56]]
  %s58 = scalar_lea.smem %s0, 29
  %s59 = sld [smem:[%s58]]
  %60 = xla_tuple %s55, %s57, %s59
  %s61 = sld [smem:[#allocation0]]
  $region134: #{tpu_custom_call.1} parent=0
    _
  %s63 = ssub.s32 1, %s61
  %s64 = scalar_select 0, %s63, %s61
  %v65 = vstv %s35
  %66 = vst [vmem:[#allocation2] sm:$0x1] %v65
  %v67 = vstv %s37
  %68 = vst [vmem:[#allocation3] sm:$0x1] %v67
  %v69 = vstv %s51
  %70 = vst [vmem:[#allocation4] sm:$0x1] %v69
  %v71 = vstv %s53
  %72 = vst [vmem:[#allocation5] sm:$0x1] %v71
  $region1: #{tpu_custom_call.1} parent=0
    #allocation6 [shape = 'u8[65536]{0}', space=vmem, size = 0x10000, scoped, tag = 'output window, operand 0, single buffered']
    #allocation7 [shape = 's32[1]{0}', space=sflag, size = 0x4, scoped, tag = 'scoped memory for tpu_custom_call.1']
    %73 = vsyncpa [#allocation7], 0
    // Predicated region
    $region2: #{tpu_custom_call.1} parent=1 // pred_check
      _
    $region3: #{tpu_custom_call.1} parent=1 // pred_check_branch
      %75 = sbr.rel (0) target = $region5
    $region4: #{tpu_custom_call.1} parent=1 // pred_region
      _
    $region5: #{tpu_custom_call.1} parent=1 // pred_fallthru
      _
    // Predicated region
    $region6: #{tpu_custom_call.1} parent=1 // pred_check
      _
    $region7: #{tpu_custom_call.1} parent=1 // pred_check_branch
      %77 = sbr.rel (0) target = $region9
    $region8: #{tpu_custom_call.1} parent=1 // pred_region
      _
    $region9: #{tpu_custom_call.1} parent=1 // pred_fallthru
      _
    // Predicated region
    $region10: #{tpu_custom_call.1} parent=1 // pred_check
      _
    $region11: #{tpu_custom_call.1} parent=1 // pred_check_branch
      %79 = sbr.rel (0) target = $region13
    $region12: #{tpu_custom_call.1} parent=1 // pred_region
      _
    $region13: #{tpu_custom_call.1} parent=1 // pred_fallthru
      _
    // Predicated region
    $region14: #{tpu_custom_call.1} parent=1 // pred_check
      _
    $region15: #{tpu_custom_call.1} parent=1 // pred_check_branch
      %81 = sbr.rel (0) target = $region17
    $region16: #{tpu_custom_call.1} parent=1 // pred_region
      _
    $region17: #{tpu_custom_call.1} parent=1 // pred_fallthru
      _
    // Predicated region
    $region18: #{tpu_custom_call.1} parent=1 // pred_check
      _
    $region19: #{tpu_custom_call.1} parent=1 // pred_check_branch
      %83 = sbr.rel (0) target = $region21
    $region20: #{tpu_custom_call.1} parent=1 // pred_region
      _
    $region21: #{tpu_custom_call.1} parent=1 // pred_fallthru
      _
    // Predicated region
    $region22: #{tpu_custom_call.1} parent=1 // pred_check
      _
    $region23: #{tpu_custom_call.1} parent=1 // pred_check_branch
      %85 = sbr.rel (0) target = $region25
    $region24: #{tpu_custom_call.1} parent=1 // pred_region
      _
    $region25: #{tpu_custom_call.1} parent=1 // pred_fallthru
      _
    // Predicated region
    $region26: #{tpu_custom_call.1} parent=1 // pred_check
      _
    $region27: #{tpu_custom_call.1} parent=1 // pred_check_branch
      %87 = sbr.rel (0) target = $region29
    $region28: #{tpu_custom_call.1} parent=1 // pred_region
      _
    $region29: #{tpu_custom_call.1} parent=1 // pred_fallthru
      _
    // Predicated region
    $region30: #{tpu_custom_call.1} parent=1 // pred_check
      _
    $region31: #{tpu_custom_call.1} parent=1 // pred_check_branch
      %89 = sbr.rel (0) target = $region33
    $region32: #{tpu_custom_call.1} parent=1 // pred_region
      _
    $region33: #{tpu_custom_call.1} parent=1 // pred_fallthru
      _
    // Predicated region
    $region34: #{tpu_custom_call.1} parent=1 // pred_check
      _
    $region35: #{tpu_custom_call.1} parent=1 // pred_check_branch
      %91 = sbr.rel (0) target = $region37
    $region36: #{tpu_custom_call.1} parent=1 // pred_region
      _
    $region37: #{tpu_custom_call.1} parent=1 // pred_fallthru
      _
    // Predicated region
    $region38: #{tpu_custom_call.1} parent=1 // pred_check
      _
    $region39: #{tpu_custom_call.1} parent=1 // pred_check_branch
      %93 = sbr.rel (0) target = $region41
    $region40: #{tpu_custom_call.1} parent=1 // pred_region
      _
    $region41: #{tpu_custom_call.1} parent=1 // pred_fallthru
      _
    // Predicated region
    $region42: #{tpu_custom_call.1} parent=1 // pred_check
      _
    $region43: #{tpu_custom_call.1} parent=1 // pred_check_branch
      %95 = sbr.rel (0) target = $region45
    $region44: #{tpu_custom_call.1} parent=1 // pred_region
      _
    $region45: #{tpu_custom_call.1} parent=1 // pred_fallthru
      _
    // Predicated region
    $region46: #{tpu_custom_call.1} parent=1 // pred_check
      _
    $region47: #{tpu_custom_call.1} parent=1 // pred_check_branch
      %97 = sbr.rel (0) target = $region49
    $region48: #{tpu_custom_call.1} parent=1 // pred_region
      _
    $region49: #{tpu_custom_call.1} parent=1 // pred_fallthru
      _
    // Predicated region
    $region50: #{tpu_custom_call.1} parent=1 // pred_check
      _
    $region51: #{tpu_custom_call.1} parent=1 // pred_check_branch
      %99 = sbr.rel (0) target = $region53
    $region52: #{tpu_custom_call.1} parent=1 // pred_region
      _
    $region53: #{tpu_custom_call.1} parent=1 // pred_fallthru
      _
    // Predicated region
    $region54: #{tpu_custom_call.1} parent=1 // pred_check
      _
    $region55: #{tpu_custom_call.1} parent=1 // pred_check_branch
      %101 = sbr.rel (0) target = $region57
    $region56: #{tpu_custom_call.1} parent=1 // pred_region
      _
    $region57: #{tpu_custom_call.1} parent=1 // pred_fallthru
      _
    // Predicated region
    $region58: #{tpu_custom_call.1} parent=1 // pred_check
      _
    $region59: #{tpu_custom_call.1} parent=1 // pred_check_branch
      %103 = sbr.rel (0) target = $region61
    $region60: #{tpu_custom_call.1} parent=1 // pred_region
      _
    $region61: #{tpu_custom_call.1} parent=1 // pred_fallthru
      _
    // Predicated region
    $region62: #{tpu_custom_call.1} parent=1 // pred_check
      _
    $region63: #{tpu_custom_call.1} parent=1 // pred_check_branch
      %105 = sbr.rel (0) target = $region65
    $region64: #{tpu_custom_call.1} parent=1 // pred_region
      _
    $region65: #{tpu_custom_call.1} parent=1 // pred_fallthru
      _
    // Predicated region
    $region66: #{tpu_custom_call.1} parent=1 // pred_check
      _
    $region67: #{tpu_custom_call.1} parent=1 // pred_check_branch
      %107 = sbr.rel (0) target = $region69
    $region68: #{tpu_custom_call.1} parent=1 // pred_region
      _
    $region69: #{tpu_custom_call.1} parent=1 // pred_fallthru
      _
    // Predicated region
    $region70: #{tpu_custom_call.1} parent=1 // pred_check
      _
    $region71: #{tpu_custom_call.1} parent=1 // pred_check_branch
      %109 = sbr.rel (0) target = $region73
    $region72: #{tpu_custom_call.1} parent=1 // pred_region
      _
    $region73: #{tpu_custom_call.1} parent=1 // pred_fallthru
      _
    // Predicated region
    $region74: #{tpu_custom_call.1} parent=1 // pred_check
      _
    $region75: #{tpu_custom_call.1} parent=1 // pred_check_branch
      %111 = sbr.rel (0) target = $region77
    $region76: #{tpu_custom_call.1} parent=1 // pred_region
      _
    $region77: #{tpu_custom_call.1} parent=1 // pred_fallthru
      _
    // Predicated region
    $region78: #{tpu_custom_call.1} parent=1 // pred_check
      _
    $region79: #{tpu_custom_call.1} parent=1 // pred_check_branch
      %113 = sbr.rel (0) target = $region81
    $region80: #{tpu_custom_call.1} parent=1 // pred_region
      _
    $region81: #{tpu_custom_call.1} parent=1 // pred_fallthru
      _
    // Predicated region
    $region82: #{tpu_custom_call.1} parent=1 // pred_check
      _
    $region83: #{tpu_custom_call.1} parent=1 // pred_check_branch
      %115 = sbr.rel (0) target = $region85
    $region84: #{tpu_custom_call.1} parent=1 // pred_region
      _
    $region85: #{tpu_custom_call.1} parent=1 // pred_fallthru
      _
    // Predicated region
    $region86: #{tpu_custom_call.1} parent=1 // pred_check
      _
    $region87: #{tpu_custom_call.1} parent=1 // pred_check_branch
      %117 = sbr.rel (0) target = $region89
    $region88: #{tpu_custom_call.1} parent=1 // pred_region
      _
    $region89: #{tpu_custom_call.1} parent=1 // pred_fallthru
      _
    // Predicated region
    $region90: #{tpu_custom_call.1} parent=1 // pred_check
      _
    $region91: #{tpu_custom_call.1} parent=1 // pred_check_branch
      %119 = sbr.rel (0) target = $region93
    $region92: #{tpu_custom_call.1} parent=1 // pred_region
      _
    $region93: #{tpu_custom_call.1} parent=1 // pred_fallthru
      _
    // Predicated region
    $region94: #{tpu_custom_call.1} parent=1 // pred_check
      _
    $region95: #{tpu_custom_call.1} parent=1 // pred_check_branch
      %121 = sbr.rel (0) target = $region97
    $region96: #{tpu_custom_call.1} parent=1 // pred_region
      _
    $region97: #{tpu_custom_call.1} parent=1 // pred_fallthru
      _
    // Predicated region
    $region98: #{tpu_custom_call.1} parent=1 // pred_check
      _
    $region99: #{tpu_custom_call.1} parent=1 // pred_check_branch
      %123 = sbr.rel (0) target = $region101
    $region100: #{tpu_custom_call.1} parent=1 // pred_region
      _
    $region101: #{tpu_custom_call.1} parent=1 // pred_fallthru
      _
    // Predicated region
    $region102: #{tpu_custom_call.1} parent=1 // pred_check
      _
    $region103: #{tpu_custom_call.1} parent=1 // pred_check_branch
      %125 = sbr.rel (0) target = $region105
    $region104: #{tpu_custom_call.1} parent=1 // pred_region
      _
    $region105: #{tpu_custom_call.1} parent=1 // pred_fallthru
      _
    // Predicated region
    $region106: #{tpu_custom_call.1} parent=1 // pred_check
      _
    $region107: #{tpu_custom_call.1} parent=1 // pred_check_branch
      %127 = sbr.rel (0) target = $region109
    $region108: #{tpu_custom_call.1} parent=1 // pred_region
      _
    $region109: #{tpu_custom_call.1} parent=1 // pred_fallthru
      _
    %v128 = vld [vmem:[%s1] sm:$0xff]
    %v129 = vld [vmem:[%s1 + $0x8] sm:$0xff]
    %v130 = vld [vmem:[%s1 + $0x10] sm:$0xff]
    %v131 = vld [vmem:[%s1 + $0x18] sm:$0xff]
    %v132 = vld [vmem:[%s1 + $0x20] sm:$0xff]
    %v133 = vld [vmem:[%s1 + $0x28] sm:$0xff]
    %v134 = vld [vmem:[%s1 + $0x30] sm:$0xff]
    %v135 = vld [vmem:[%s1 + $0x38] sm:$0xff]
    %v136 = vld [vmem:[%s1 + $0x40] sm:$0xff]
    %v137 = vld [vmem:[%s1 + $0x48] sm:$0xff]
    %v138 = vld [vmem:[%s1 + $0x50] sm:$0xff]
    %v139 = vld [vmem:[%s1 + $0x58] sm:$0xff]
    %v140 = vld [vmem:[%s1 + $0x60] sm:$0xff]
    %v141 = vld [vmem:[%s1 + $0x68] sm:$0xff]
    %v142 = vld [vmem:[%s1 + $0x70] sm:$0xff]
    %v143 = vld [vmem:[%s1 + $0x78] sm:$0xff]
    %v144 = vld [vmem:[%s3] sm:$0xff]
    %v145 = vld [vmem:[%s3 + $0x8] sm:$0xff]
    %v146 = vld [vmem:[%s3 + $0x10] sm:$0xff]
    %v147 = vld [vmem:[%s3 + $0x18] sm:$0xff]
    %v148 = vld [vmem:[%s3 + $0x20] sm:$0xff]
    %v149 = vld [vmem:[%s3 + $0x28] sm:$0xff]
    %v150 = vld [vmem:[%s3 + $0x30] sm:$0xff]
    %v151 = vld [vmem:[%s3 + $0x38] sm:$0xff]
    %v152 = vld [vmem:[%s3 + $0x40] sm:$0xff]
    %v153 = vld [vmem:[%s3 + $0x48] sm:$0xff]
    %v154 = vld [vmem:[%s3 + $0x50] sm:$0xff]
    %v155 = vld [vmem:[%s3 + $0x58] sm:$0xff]
    %v156 = vld [vmem:[%s3 + $0x60] sm:$0xff]
    %v157 = vld [vmem:[%s3 + $0x68] sm:$0xff]
    %v158 = vld [vmem:[%s3 + $0x70] sm:$0xff]
    %v159 = vld [vmem:[%s3 + $0x78] sm:$0xff]
    %v160 = vld [vmem:[%s7] sm:$0xff]
    %v161 = vld [vmem:[%s7 + $0x8] sm:$0xff]
    %v162 = vld [vmem:[%s7 + $0x10] sm:$0xff]
    %v163 = vld [vmem:[%s7 + $0x18] sm:$0xff]
    %v164 = vld [vmem:[%s7 + $0x20] sm:$0xff]
    %v165 = vld [vmem:[%s7 + $0x28] sm:$0xff]
    %v166 = vld [vmem:[%s7 + $0x30] sm:$0xff]
    %v167 = vld [vmem:[%s7 + $0x38] sm:$0xff]
    %v168 = vld [vmem:[%s7 + $0x40] sm:$0xff]
    %v169 = vld [vmem:[%s7 + $0x48] sm:$0xff]
    %v170 = vld [vmem:[%s7 + $0x50] sm:$0xff]
    %v171 = vld [vmem:[%s7 + $0x58] sm:$0xff]
    %v172 = vld [vmem:[%s7 + $0x60] sm:$0xff]
    %v173 = vld [vmem:[%s7 + $0x68] sm:$0xff]
    %v174 = vld [vmem:[%s7 + $0x70] sm:$0xff]
    %v175 = vld [vmem:[%s7 + $0x78] sm:$0xff]
    %v176 = vld [vmem:[%s11] sm:$0x1]
    %v178 = vperm.slane %v176, 0
    %180 = vmatpush.msra.mxu0 %v175
    %181 = vmatpush.msra.mxu0 %v174
    %182 = vmatpush.msra.mxu0 %v173
    %183 = vmatpush.msra.mxu0 %v172
    %184 = vmatpush.msra.mxu0 %v171
    %185 = vmatpush.msra.mxu0 %v170
    %186 = vmatpush.msra.mxu0 %v169
    %187 = vmatpush.msra.mxu0 %v168
    %188 = vmatpush.msra.mxu0 %v167
    %189 = vmatpush.msra.mxu0 %v166
    %190 = vmatpush.msra.mxu0 %v165
    %191 = vmatpush.msra.mxu0 %v164
    %192 = vmatpush.msra.mxu0 %v163
    %193 = vmatpush.msra.mxu0 %v162
    %194 = vmatpush.msra.mxu0 %v161
    %195 = vmatpush.msra.mxu0 %v160
    %196 = vmatmul.f32.gmra.mxu0 %v128
    %v197 = vpop.f32.mrf.mxu0
    %v198 = vadd.f32 %v178, %v197
    %199 = vmatmul.f32.gmra.mxu0 %v129
    %v200 = vpop.f32.mrf.mxu0
    %v201 = vadd.f32 %v178, %v200
    %202 = vmatmul.f32.gmra.mxu0 %v130
    %v203 = vpop.f32.mrf.mxu0
    %v204 = vadd.f32 %v178, %v203
    %205 = vmatmul.f32.gmra.mxu0 %v131
    %v206 = vpop.f32.mrf.mxu0
    %v207 = vadd.f32 %v178, %v206
    %208 = vmatmul.f32.gmra.mxu0 %v132
    %v209 = vpop.f32.mrf.mxu0
    %v210 = vadd.f32 %v178, %v209
    %211 = vmatmul.f32.gmra.mxu0 %v133
    %v212 = vpop.f32.mrf.mxu0
    %v213 = vadd.f32 %v178, %v212
    %214 = vmatmul.f32.gmra.mxu0 %v134
    %v215 = vpop.f32.mrf.mxu0
    %v216 = vadd.f32 %v178, %v215
    %217 = vmatmul.f32.gmra.mxu0 %v135
    %v218 = vpop.f32.mrf.mxu0
    %v219 = vadd.f32 %v178, %v218
    %220 = vmatmul.f32.gmra.mxu0 %v136
    %v221 = vpop.f32.mrf.mxu0
    %v222 = vadd.f32 %v178, %v221
    %223 = vmatmul.f32.gmra.mxu0 %v137
    %v224 = vpop.f32.mrf.mxu0
    %v225 = vadd.f32 %v178, %v224
    %226 = vmatmul.f32.gmra.mxu0 %v138
    %v227 = vpop.f32.mrf.mxu0
    %v228 = vadd.f32 %v178, %v227
    %229 = vmatmul.f32.gmra.mxu0 %v139
    %v230 = vpop.f32.mrf.mxu0
    %v231 = vadd.f32 %v178, %v230
    %232 = vmatmul.f32.gmra.mxu0 %v140
    %v233 = vpop.f32.mrf.mxu0
    %v234 = vadd.f32 %v178, %v233
    %235 = vmatmul.f32.gmra.mxu0 %v141
    %v236 = vpop.f32.mrf.mxu0
    %v237 = vadd.f32 %v178, %v236
    %238 = vmatmul.f32.gmra.mxu0 %v142
    %v239 = vpop.f32.mrf.mxu0
    %v240 = vadd.f32 %v178, %v239
    %241 = vmatmul.f32.gmra.mxu0 %v143
    %v242 = vpop.f32.mrf.mxu0
    %v243 = vadd.f32 %v178, %v242
    %244 = vdwg.mxu0
    %v245 = vld [vmem:[%s9] sm:$0xff]
    %v246 = vld [vmem:[%s9 + $0x8] sm:$0xff]
    %v247 = vld [vmem:[%s9 + $0x10] sm:$0xff]
    %v248 = vld [vmem:[%s9 + $0x18] sm:$0xff]
    %v249 = vld [vmem:[%s13] sm:$0x1]
    %v251 = vperm.slane %v249, 0
    %vm253 = vcmask 261120
    %v255 = vsel %vm253, %v144, 0
    %v258 = vsel %vm253, %v145, 0
    %v261 = vsel %vm253, %v146, 0
    %v264 = vsel %vm253, %v147, 0
    %v267 = vsel %vm253, %v148, 0
    %v270 = vsel %vm253, %v149, 0
    %v273 = vsel %vm253, %v150, 0
    %v276 = vsel %vm253, %v151, 0
    %v279 = vsel %vm253, %v152, 0
    %v282 = vsel %vm253, %v153, 0
    %v285 = vsel %vm253, %v154, 0
    %v288 = vsel %vm253, %v155, 0
    %v291 = vsel %vm253, %v156, 0
    %v294 = vsel %vm253, %v157, 0
    %v297 = vsel %vm253, %v158, 0
    %v300 = vsel %vm253, %v159, 0
    %302 = vmatpush.msra.mxu0 0.0
    %303 = vmatpush.msra.mxu0 0.0
    %304 = vmatpush.msra.mxu0 0.0
    %305 = vmatpush.msra.mxu0 0.0
    %306 = vmatpush.msra.mxu0 0.0
    %307 = vmatpush.msra.mxu0 0.0
    %308 = vmatpush.msra.mxu0 0.0
    %309 = vmatpush.msra.mxu0 0.0
    %310 = vmatpush.msra.mxu0 0.0
    %311 = vmatpush.msra.mxu0 0.0
    %312 = vmatpush.msra.mxu0 0.0
    %313 = vmatpush.msra.mxu0 0.0
    %314 = vmatpush.msra.mxu0 %v248
    %315 = vmatpush.msra.mxu0 %v247
    %316 = vmatpush.msra.mxu0 %v246
    %317 = vmatpush.msra.mxu0 %v245
    %318 = vmatmul.f32.gmra.mxu0 %v255
    %v319 = vpop.f32.mrf.mxu0
    %v320 = vadd.f32 %v251, %v319
    %321 = vmatmul.f32.gmra.mxu0 %v258
    %v322 = vpop.f32.mrf.mxu0
    %v323 = vadd.f32 %v251, %v322
    %324 = vmatmul.f32.gmra.mxu0 %v261
    %v325 = vpop.f32.mrf.mxu0
    %v326 = vadd.f32 %v251, %v325
    %327 = vmatmul.f32.gmra.mxu0 %v264
    %v328 = vpop.f32.mrf.mxu0
    %v329 = vadd.f32 %v251, %v328
    %330 = vmatmul.f32.gmra.mxu0 %v267
    %v331 = vpop.f32.mrf.mxu0
    %v332 = vadd.f32 %v251, %v331
    %333 = vmatmul.f32.gmra.mxu0 %v270
    %v334 = vpop.f32.mrf.mxu0
    %v335 = vadd.f32 %v251, %v334
    %336 = vmatmul.f32.gmra.mxu0 %v273
    %v337 = vpop.f32.mrf.mxu0
    %v338 = vadd.f32 %v251, %v337
    %339 = vmatmul.f32.gmra.mxu0 %v276
    %v340 = vpop.f32.mrf.mxu0
    %v341 = vadd.f32 %v251, %v340
    %342 = vmatmul.f32.gmra.mxu0 %v279
    %v343 = vpop.f32.mrf.mxu0
    %v344 = vadd.f32 %v251, %v343
    %345 = vmatmul.f32.gmra.mxu0 %v282
    %v346 = vpop.f32.mrf.mxu0
    %v347 = vadd.f32 %v251, %v346
    %348 = vmatmul.f32.gmra.mxu0 %v285
    %v349 = vpop.f32.mrf.mxu0
    %v350 = vadd.f32 %v251, %v349
    %351 = vmatmul.f32.gmra.mxu0 %v288
    %v352 = vpop.f32.mrf.mxu0
    %v353 = vadd.f32 %v251, %v352
    %354 = vmatmul.f32.gmra.mxu0 %v291
    %v355 = vpop.f32.mrf.mxu0
    %v356 = vadd.f32 %v251, %v355
    %357 = vmatmul.f32.gmra.mxu0 %v294
    %v358 = vpop.f32.mrf.mxu0
    %v359 = vadd.f32 %v251, %v358
    %360 = vmatmul.f32.gmra.mxu0 %v297
    %v361 = vpop.f32.mrf.mxu0
    %v362 = vadd.f32 %v251, %v361
    %363 = vmatmul.f32.gmra.mxu0 %v300
    %v364 = vpop.f32.mrf.mxu0
    %v365 = vadd.f32 %v251, %v364
    %366 = vdwg.mxu0
    %v367 = vadd.f32 %v198, %v320
    %v368 = vadd.f32 %v201, %v323
    %v369 = vadd.f32 %v204, %v326
    %v370 = vadd.f32 %v207, %v329
    %v371 = vadd.f32 %v210, %v332
    %v372 = vadd.f32 %v213, %v335
    %v373 = vadd.f32 %v216, %v338
    %v374 = vadd.f32 %v219, %v341
    %v375 = vadd.f32 %v222, %v344
    %v376 = vadd.f32 %v225, %v347
    %v377 = vadd.f32 %v228, %v350
    %v378 = vadd.f32 %v231, %v353
    %v379 = vadd.f32 %v234, %v356
    %v380 = vadd.f32 %v237, %v359
    %v381 = vadd.f32 %v240, %v362
    %v382 = vadd.f32 %v243, %v365
    %v383 = vsub.f32 0.0, %v367
    %v384 = vsub.f32 0.0, %v368
    %v385 = vsub.f32 0.0, %v369
    %v386 = vsub.f32 0.0, %v370
    %v387 = vsub.f32 0.0, %v371
    %v388 = vsub.f32 0.0, %v372
    %v389 = vsub.f32 0.0, %v373
    %v390 = vsub.f32 0.0, %v374
    %v391 = vsub.f32 0.0, %v375
    %v392 = vsub.f32 0.0, %v376
    %v393 = vsub.f32 0.0, %v377
    %v394 = vsub.f32 0.0, %v378
    %v395 = vsub.f32 0.0, %v379
    %v396 = vsub.f32 0.0, %v380
    %v397 = vsub.f32 0.0, %v381
    %v398 = vsub.f32 0.0, %v382
    %v399 = vmul.f32 %v383, 1.442695
    %v400 = vpow.pop %v399
    %v401 = vmul.f32 %v384, 1.442695
    %v402 = vpow.pop %v401
    %v403 = vmul.f32 %v385, 1.442695
    %v404 = vpow.pop %v403
    %v405 = vmul.f32 %v386, 1.442695
    %v406 = vpow.pop %v405
    %v407 = vmul.f32 %v387, 1.442695
    %v408 = vpow.pop %v407
    %v409 = vmul.f32 %v388, 1.442695
    %v410 = vpow.pop %v409
    %v411 = vmul.f32 %v389, 1.442695
    %v412 = vpow.pop %v411
    %v413 = vmul.f32 %v390, 1.442695
    %v414 = vpow.pop %v413
    %v415 = vmul.f32 %v391, 1.442695
    %v416 = vpow.pop %v415
    %v417 = vmul.f32 %v392, 1.442695
    %v418 = vpow.pop %v417
    %v419 = vmul.f32 %v393, 1.442695
    %v420 = vpow.pop %v419
    %v421 = vmul.f32 %v394, 1.442695
    %v422 = vpow.pop %v421
    %v423 = vmul.f32 %v395, 1.442695
    %v424 = vpow.pop %v423
    %v425 = vmul.f32 %v396, 1.442695
    %v426 = vpow.pop %v425
    %v427 = vmul.f32 %v397, 1.442695
    %v428 = vpow.pop %v427
    %v429 = vmul.f32 %v398, 1.442695
    %v430 = vpow.pop %v429
    %v431 = vadd.f32 %v400, 1.0
    %v432 = vadd.f32 %v402, 1.0
    %v433 = vadd.f32 %v404, 1.0
    %v434 = vadd.f32 %v406, 1.0
    %v435 = vadd.f32 %v408, 1.0
    %v436 = vadd.f32 %v410, 1.0
    %v437 = vadd.f32 %v412, 1.0
    %v438 = vadd.f32 %v414, 1.0
    %v439 = vadd.f32 %v416, 1.0
    %v440 = vadd.f32 %v418, 1.0
    %v441 = vadd.f32 %v420, 1.0
    %v442 = vadd.f32 %v422, 1.0
    %v443 = vadd.f32 %v424, 1.0
    %v444 = vadd.f32 %v426, 1.0
    %v445 = vadd.f32 %v428, 1.0
    %v446 = vadd.f32 %v430, 1.0
    %v447 = vrcp.pop %v431
    %v448 = vmul.f32 %v431, %v447
    %v449 = vsub.f32 1.0, %v448
    %v450 = vmul.f32 %v447, %v449
    %v451 = vadd.f32 %v447, %v450
    %vm452 = vweird.f32 %v431
    %vm453 = vweird.f32 %v447
    %vm454 = vmor %vm452, %vm453
    %v455 = vsel %vm454, %v447, %v451
    %v456 = vand.u32 2147483647, %v431
    %vm457 = vcmp.eq.f32.partialorder %v456, 8.507059e+37
    %v458 = vand.u32 %v431, 2147483648
    %v459 = vor.u32 1.1754944e-38, %v458
    %v460 = vsel %vm457, %v459, %v455
    %v461 = vmul.f32 1.0, %v460
    %v462 = vrcp.pop %v432
    %v463 = vmul.f32 %v432, %v462
    %v464 = vsub.f32 1.0, %v463
    %v465 = vmul.f32 %v462, %v464
    %v466 = vadd.f32 %v462, %v465
    %vm467 = vweird.f32 %v432
    %vm468 = vweird.f32 %v462
    %vm469 = vmor %vm467, %vm468
    %v470 = vsel %vm469, %v462, %v466
    %v471 = vand.u32 2147483647, %v432
    %vm472 = vcmp.eq.f32.partialorder %v471, 8.507059e+37
    %v473 = vand.u32 %v432, 2147483648
    %v474 = vor.u32 1.1754944e-38, %v473
    %v475 = vsel %vm472, %v474, %v470
    %v476 = vmul.f32 1.0, %v475
    %v477 = vrcp.pop %v433
    %v478 = vmul.f32 %v433, %v477
    %v479 = vsub.f32 1.0, %v478
    %v480 = vmul.f32 %v477, %v479
    %v481 = vadd.f32 %v477, %v480
    %vm482 = vweird.f32 %v433
    %vm483 = vweird.f32 %v477
    %vm484 = vmor %vm482, %vm483
    %v485 = vsel %vm484, %v477, %v481
    %v486 = vand.u32 2147483647, %v433
    %vm487 = vcmp.eq.f32.partialorder %v486, 8.507059e+37
    %v488 = vand.u32 %v433, 2147483648
    %v489 = vor.u32 1.1754944e-38, %v488
    %v490 = vsel %vm487, %v489, %v485
    %v491 = vmul.f32 1.0, %v490
    %v492 = vrcp.pop %v434
    %v493 = vmul.f32 %v434, %v492
    %v494 = vsub.f32 1.0, %v493
    %v495 = vmul.f32 %v492, %v494
    %v496 = vadd.f32 %v492, %v495
    %vm497 = vweird.f32 %v434
    %vm498 = vweird.f32 %v492
    %vm499 = vmor %vm497, %vm498
    %v500 = vsel %vm499, %v492, %v496
    %v501 = vand.u32 2147483647, %v434
    %vm502 = vcmp.eq.f32.partialorder %v501, 8.507059e+37
    %v503 = vand.u32 %v434, 2147483648
    %v504 = vor.u32 1.1754944e-38, %v503
    %v505 = vsel %vm502, %v504, %v500
    %v506 = vmul.f32 1.0, %v505
    %v507 = vrcp.pop %v435
    %v508 = vmul.f32 %v435, %v507
    %v509 = vsub.f32 1.0, %v508
    %v510 = vmul.f32 %v507, %v509
    %v511 = vadd.f32 %v507, %v510
    %vm512 = vweird.f32 %v435
    %vm513 = vweird.f32 %v507
    %vm514 = vmor %vm512, %vm513
    %v515 = vsel %vm514, %v507, %v511
    %v516 = vand.u32 2147483647, %v435
    %vm517 = vcmp.eq.f32.partialorder %v516, 8.507059e+37
    %v518 = vand.u32 %v435, 2147483648
    %v519 = vor.u32 1.1754944e-38, %v518
    %v520 = vsel %vm517, %v519, %v515
    %v521 = vmul.f32 1.0, %v520
    %v522 = vrcp.pop %v436
    %v523 = vmul.f32 %v436, %v522
    %v524 = vsub.f32 1.0, %v523
    %v525 = vmul.f32 %v522, %v524
    %v526 = vadd.f32 %v522, %v525
    %vm527 = vweird.f32 %v436
    %vm528 = vweird.f32 %v522
    %vm529 = vmor %vm527, %vm528
    %v530 = vsel %vm529, %v522, %v526
    %v531 = vand.u32 2147483647, %v436
    %vm532 = vcmp.eq.f32.partialorder %v531, 8.507059e+37
    %v533 = vand.u32 %v436, 2147483648
    %v534 = vor.u32 1.1754944e-38, %v533
    %v535 = vsel %vm532, %v534, %v530
    %v536 = vmul.f32 1.0, %v535
    %v537 = vrcp.pop %v437
    %v538 = vmul.f32 %v437, %v537
    %v539 = vsub.f32 1.0, %v538
    %v540 = vmul.f32 %v537, %v539
    %v541 = vadd.f32 %v537, %v540
    %vm542 = vweird.f32 %v437
    %vm543 = vweird.f32 %v537
    %vm544 = vmor %vm542, %vm543
    %v545 = vsel %vm544, %v537, %v541
    %v546 = vand.u32 2147483647, %v437
    %vm547 = vcmp.eq.f32.partialorder %v546, 8.507059e+37
    %v548 = vand.u32 %v437, 2147483648
    %v549 = vor.u32 1.1754944e-38, %v548
    %v550 = vsel %vm547, %v549, %v545
    %v551 = vmul.f32 1.0, %v550
    %v552 = vrcp.pop %v438
    %v553 = vmul.f32 %v438, %v552
    %v554 = vsub.f32 1.0, %v553
    %v555 = vmul.f32 %v552, %v554
    %v556 = vadd.f32 %v552, %v555
    %vm557 = vweird.f32 %v438
    %vm558 = vweird.f32 %v552
    %vm559 = vmor %vm557, %vm558
    %v560 = vsel %vm559, %v552, %v556
    %v561 = vand.u32 2147483647, %v438
    %vm562 = vcmp.eq.f32.partialorder %v561, 8.507059e+37
    %v563 = vand.u32 %v438, 2147483648
    %v564 = vor.u32 1.1754944e-38, %v563
    %v565 = vsel %vm562, %v564, %v560
    %v566 = vmul.f32 1.0, %v565
    %v567 = vrcp.pop %v439
    %v568 = vmul.f32 %v439, %v567
    %v569 = vsub.f32 1.0, %v568
    %v570 = vmul.f32 %v567, %v569
    %v571 = vadd.f32 %v567, %v570
    %vm572 = vweird.f32 %v439
    %vm573 = vweird.f32 %v567
    %vm574 = vmor %vm572, %vm573
    %v575 = vsel %vm574, %v567, %v571
    %v576 = vand.u32 2147483647, %v439
    %vm577 = vcmp.eq.f32.partialorder %v576, 8.507059e+37
    %v578 = vand.u32 %v439, 2147483648
    %v579 = vor.u32 1.1754944e-38, %v578
    %v580 = vsel %vm577, %v579, %v575
    %v581 = vmul.f32 1.0, %v580
    %v582 = vrcp.pop %v440
    %v583 = vmul.f32 %v440, %v582
    %v584 = vsub.f32 1.0, %v583
    %v585 = vmul.f32 %v582, %v584
    %v586 = vadd.f32 %v582, %v585
    %vm587 = vweird.f32 %v440
    %vm588 = vweird.f32 %v582
    %vm589 = vmor %vm587, %vm588
    %v590 = vsel %vm589, %v582, %v586
    %v591 = vand.u32 2147483647, %v440
    %vm592 = vcmp.eq.f32.partialorder %v591, 8.507059e+37
    %v593 = vand.u32 %v440, 2147483648
    %v594 = vor.u32 1.1754944e-38, %v593
    %v595 = vsel %vm592, %v594, %v590
    %v596 = vmul.f32 1.0, %v595
    %v597 = vrcp.pop %v441
    %v598 = vmul.f32 %v441, %v597
    %v599 = vsub.f32 1.0, %v598
    %v600 = vmul.f32 %v597, %v599
    %v601 = vadd.f32 %v597, %v600
    %vm602 = vweird.f32 %v441
    %vm603 = vweird.f32 %v597
    %vm604 = vmor %vm602, %vm603
    %v605 = vsel %vm604, %v597, %v601
    %v606 = vand.u32 2147483647, %v441
    %vm607 = vcmp.eq.f32.partialorder %v606, 8.507059e+37
    %v608 = vand.u32 %v441, 2147483648
    %v609 = vor.u32 1.1754944e-38, %v608
    %v610 = vsel %vm607, %v609, %v605
    %v611 = vmul.f32 1.0, %v610
    %v612 = vrcp.pop %v442
    %v613 = vmul.f32 %v442, %v612
    %v614 = vsub.f32 1.0, %v613
    %v615 = vmul.f32 %v612, %v614
    %v616 = vadd.f32 %v612, %v615
    %vm617 = vweird.f32 %v442
    %vm618 = vweird.f32 %v612
    %vm619 = vmor %vm617, %vm618
    %v620 = vsel %vm619, %v612, %v616
    %v621 = vand.u32 2147483647, %v442
    %vm622 = vcmp.eq.f32.partialorder %v621, 8.507059e+37
    %v623 = vand.u32 %v442, 2147483648
    %v624 = vor.u32 1.1754944e-38, %v623
    %v625 = vsel %vm622, %v624, %v620
    %v626 = vmul.f32 1.0, %v625
    %v627 = vrcp.pop %v443
    %v628 = vmul.f32 %v443, %v627
    %v629 = vsub.f32 1.0, %v628
    %v630 = vmul.f32 %v627, %v629
    %v631 = vadd.f32 %v627, %v630
    %vm632 = vweird.f32 %v443
    %vm633 = vweird.f32 %v627
    %vm634 = vmor %vm632, %vm633
    %v635 = vsel %vm634, %v627, %v631
    %v636 = vand.u32 2147483647, %v443
    %vm637 = vcmp.eq.f32.partialorder %v636, 8.507059e+37
    %v638 = vand.u32 %v443, 2147483648
    %v639 = vor.u32 1.1754944e-38, %v638
    %v640 = vsel %vm637, %v639, %v635
    %v641 = vmul.f32 1.0, %v640
    %v642 = vrcp.pop %v444
    %v643 = vmul.f32 %v444, %v642
    %v644 = vsub.f32 1.0, %v643
    %v645 = vmul.f32 %v642, %v644
    %v646 = vadd.f32 %v642, %v645
    %vm647 = vweird.f32 %v444
    %vm648 = vweird.f32 %v642
    %vm649 = vmor %vm647, %vm648
    %v650 = vsel %vm649, %v642, %v646
    %v651 = vand.u32 2147483647, %v444
    %vm652 = vcmp.eq.f32.partialorder %v651, 8.507059e+37
    %v653 = vand.u32 %v444, 2147483648
    %v654 = vor.u32 1.1754944e-38, %v653
    %v655 = vsel %vm652, %v654, %v650
    %v656 = vmul.f32 1.0, %v655
    %v657 = vrcp.pop %v445
    %v658 = vmul.f32 %v445, %v657
    %v659 = vsub.f32 1.0, %v658
    %v660 = vmul.f32 %v657, %v659
    %v661 = vadd.f32 %v657, %v660
    %vm662 = vweird.f32 %v445
    %vm663 = vweird.f32 %v657
    %vm664 = vmor %vm662, %vm663
    %v665 = vsel %vm664, %v657, %v661
    %v666 = vand.u32 2147483647, %v445
    %vm667 = vcmp.eq.f32.partialorder %v666, 8.507059e+37
    %v668 = vand.u32 %v445, 2147483648
    %v669 = vor.u32 1.1754944e-38, %v668
    %v670 = vsel %vm667, %v669, %v665
    %v671 = vmul.f32 1.0, %v670
    %v672 = vrcp.pop %v446
    %v673 = vmul.f32 %v446, %v672
    %v674 = vsub.f32 1.0, %v673
    %v675 = vmul.f32 %v672, %v674
    %v676 = vadd.f32 %v672, %v675
    %vm677 = vweird.f32 %v446
    %vm678 = vweird.f32 %v672
    %vm679 = vmor %vm677, %vm678
    %v680 = vsel %vm679, %v672, %v676
    %v681 = vand.u32 2147483647, %v446
    %vm682 = vcmp.eq.f32.partialorder %v681, 8.507059e+37
    %v683 = vand.u32 %v446, 2147483648
    %v684 = vor.u32 1.1754944e-38, %v683
    %v685 = vsel %vm682, %v684, %v680
    %v686 = vmul.f32 1.0, %v685
    %703 = vrot.lane.b32.xlu0 %v320, 64
    %v704 = vpop.permute.xlu0 %703
    %705 = vrot.lane.b32.xlu0 %v323, 64
    %v706 = vpop.permute.xlu0 %705
    %707 = vrot.lane.b32.xlu0 %v326, 64
    %v708 = vpop.permute.xlu0 %707
    %709 = vrot.lane.b32.xlu0 %v329, 64
    %v710 = vpop.permute.xlu0 %709
    %711 = vrot.lane.b32.xlu0 %v332, 64
    %v712 = vpop.permute.xlu0 %711
    %713 = vrot.lane.b32.xlu0 %v335, 64
    %v714 = vpop.permute.xlu0 %713
    %715 = vrot.lane.b32.xlu0 %v338, 64
    %v716 = vpop.permute.xlu0 %715
    %717 = vrot.lane.b32.xlu0 %v341, 64
    %v718 = vpop.permute.xlu0 %717
    %719 = vrot.lane.b32.xlu0 %v344, 64
    %v720 = vpop.permute.xlu0 %719
    %721 = vrot.lane.b32.xlu0 %v347, 64
    %v722 = vpop.permute.xlu0 %721
    %723 = vrot.lane.b32.xlu0 %v350, 64
    %v724 = vpop.permute.xlu0 %723
    %725 = vrot.lane.b32.xlu0 %v353, 64
    %v726 = vpop.permute.xlu0 %725
    %727 = vrot.lane.b32.xlu0 %v356, 64
    %v728 = vpop.permute.xlu0 %727
    %729 = vrot.lane.b32.xlu0 %v359, 64
    %v730 = vpop.permute.xlu0 %729
    %731 = vrot.lane.b32.xlu0 %v362, 64
    %v732 = vpop.permute.xlu0 %731
    %733 = vrot.lane.b32.xlu0 %v365, 64
    %v734 = vpop.permute.xlu0 %733
    %v751 = vmul.f32 %v461, %v704
    %v752 = vmul.f32 %v476, %v706
    %v753 = vmul.f32 %v491, %v708
    %v754 = vmul.f32 %v506, %v710
    %v755 = vmul.f32 %v521, %v712
    %v756 = vmul.f32 %v536, %v714
    %v757 = vmul.f32 %v551, %v716
    %v758 = vmul.f32 %v566, %v718
    %v759 = vmul.f32 %v581, %v720
    %v760 = vmul.f32 %v596, %v722
    %v761 = vmul.f32 %v611, %v724
    %v762 = vmul.f32 %v626, %v726
    %v763 = vmul.f32 %v641, %v728
    %v764 = vmul.f32 %v656, %v730
    %v765 = vmul.f32 %v671, %v732
    %v766 = vmul.f32 %v686, %v734
    %783 = vrot.lane.b32.xlu0 %v751, 64
    %v784 = vpop.permute.xlu0 %783
    %785 = vrot.lane.b32.xlu0 %v752, 64
    %v786 = vpop.permute.xlu0 %785
    %787 = vrot.lane.b32.xlu0 %v753, 64
    %v788 = vpop.permute.xlu0 %787
    %789 = vrot.lane.b32.xlu0 %v754, 64
    %v790 = vpop.permute.xlu0 %789
    %791 = vrot.lane.b32.xlu0 %v755, 64
    %v792 = vpop.permute.xlu0 %791
    %793 = vrot.lane.b32.xlu0 %v756, 64
    %v794 = vpop.permute.xlu0 %793
    %795 = vrot.lane.b32.xlu0 %v757, 64
    %v796 = vpop.permute.xlu0 %795
    %797 = vrot.lane.b32.xlu0 %v758, 64
    %v798 = vpop.permute.xlu0 %797
    %799 = vrot.lane.b32.xlu0 %v759, 64
    %v800 = vpop.permute.xlu0 %799
    %801 = vrot.lane.b32.xlu0 %v760, 64
    %v802 = vpop.permute.xlu0 %801
    %803 = vrot.lane.b32.xlu0 %v761, 64
    %v804 = vpop.permute.xlu0 %803
    %805 = vrot.lane.b32.xlu0 %v762, 64
    %v806 = vpop.permute.xlu0 %805
    %807 = vrot.lane.b32.xlu0 %v763, 64
    %v808 = vpop.permute.xlu0 %807
    %809 = vrot.lane.b32.xlu0 %v764, 64
    %v810 = vpop.permute.xlu0 %809
    %811 = vrot.lane.b32.xlu0 %v765, 64
    %v812 = vpop.permute.xlu0 %811
    %813 = vrot.lane.b32.xlu0 %v766, 64
    %v814 = vpop.permute.xlu0 %813
    %v831 = vadd.f32 %v198, %v784
    %v832 = vadd.f32 %v201, %v786
    %v833 = vadd.f32 %v204, %v788
    %v834 = vadd.f32 %v207, %v790
    %v835 = vadd.f32 %v210, %v792
    %v836 = vadd.f32 %v213, %v794
    %v837 = vadd.f32 %v216, %v796
    %v838 = vadd.f32 %v219, %v798
    %v839 = vadd.f32 %v222, %v800
    %v840 = vadd.f32 %v225, %v802
    %v841 = vadd.f32 %v228, %v804
    %v842 = vadd.f32 %v231, %v806
    %v843 = vadd.f32 %v234, %v808
    %v844 = vadd.f32 %v237, %v810
    %v845 = vadd.f32 %v240, %v812
    %v846 = vadd.f32 %v243, %v814
    %v847 = vtanh.pop %v831
    %v848 = vtanh.pop %v832
    %v849 = vtanh.pop %v833
    %v850 = vtanh.pop %v834
    %v851 = vtanh.pop %v835
    %v852 = vtanh.pop %v836
    %v853 = vtanh.pop %v837
    %v854 = vtanh.pop %v838
    %v855 = vtanh.pop %v839
    %v856 = vtanh.pop %v840
    %v857 = vtanh.pop %v841
    %v858 = vtanh.pop %v842
    %v859 = vtanh.pop %v843
    %v860 = vtanh.pop %v844
    %v861 = vtanh.pop %v845
    %v862 = vtanh.pop %v846
    %v863 = vsub.f32 1.0, %v461
    %v864 = vsub.f32 1.0, %v476
    %v865 = vsub.f32 1.0, %v491
    %v866 = vsub.f32 1.0, %v506
    %v867 = vsub.f32 1.0, %v521
    %v868 = vsub.f32 1.0, %v536
    %v869 = vsub.f32 1.0, %v551
    %v870 = vsub.f32 1.0, %v566
    %v871 = vsub.f32 1.0, %v581
    %v872 = vsub.f32 1.0, %v596
    %v873 = vsub.f32 1.0, %v611
    %v874 = vsub.f32 1.0, %v626
    %v875 = vsub.f32 1.0, %v641
    %v876 = vsub.f32 1.0, %v656
    %v877 = vsub.f32 1.0, %v671
    %v878 = vsub.f32 1.0, %v686
    %895 = vrot.lane.b32.xlu0 %v847, 96
    %v896 = vpop.permute.xlu0 %895
    %897 = vrot.lane.b32.xlu0 %v848, 96
    %v898 = vpop.permute.xlu0 %897
    %899 = vrot.lane.b32.xlu0 %v849, 96
    %v900 = vpop.permute.xlu0 %899
    %901 = vrot.lane.b32.xlu0 %v850, 96
    %v902 = vpop.permute.xlu0 %901
    %903 = vrot.lane.b32.xlu0 %v851, 96
    %v904 = vpop.permute.xlu0 %903
    %905 = vrot.lane.b32.xlu0 %v852, 96
    %v906 = vpop.permute.xlu0 %905
    %907 = vrot.lane.b32.xlu0 %v853, 96
    %v908 = vpop.permute.xlu0 %907
    %909 = vrot.lane.b32.xlu0 %v854, 96
    %v910 = vpop.permute.xlu0 %909
    %911 = vrot.lane.b32.xlu0 %v855, 96
    %v912 = vpop.permute.xlu0 %911
    %913 = vrot.lane.b32.xlu0 %v856, 96
    %v914 = vpop.permute.xlu0 %913
    %915 = vrot.lane.b32.xlu0 %v857, 96
    %v916 = vpop.permute.xlu0 %915
    %917 = vrot.lane.b32.xlu0 %v858, 96
    %v918 = vpop.permute.xlu0 %917
    %919 = vrot.lane.b32.xlu0 %v859, 96
    %v920 = vpop.permute.xlu0 %919
    %921 = vrot.lane.b32.xlu0 %v860, 96
    %v922 = vpop.permute.xlu0 %921
    %923 = vrot.lane.b32.xlu0 %v861, 96
    %v924 = vpop.permute.xlu0 %923
    %925 = vrot.lane.b32.xlu0 %v862, 96
    %v926 = vpop.permute.xlu0 %925
    %v943 = vmul.f32 %v863, %v896
    %v944 = vmul.f32 %v864, %v898
    %v945 = vmul.f32 %v865, %v900
    %v946 = vmul.f32 %v866, %v902
    %v947 = vmul.f32 %v867, %v904
    %v948 = vmul.f32 %v868, %v906
    %v949 = vmul.f32 %v869, %v908
    %v950 = vmul.f32 %v870, %v910
    %v951 = vmul.f32 %v871, %v912
    %v952 = vmul.f32 %v872, %v914
    %v953 = vmul.f32 %v873, %v916
    %v954 = vmul.f32 %v874, %v918
    %v955 = vmul.f32 %v875, %v920
    %v956 = vmul.f32 %v876, %v922
    %v957 = vmul.f32 %v877, %v924
    %v958 = vmul.f32 %v878, %v926
    %959 = vrot.lane.b32.xlu0 %v144, 32
    %v960 = vpop.permute.xlu0 %959
    %961 = vrot.lane.b32.xlu0 %v145, 32
    %v962 = vpop.permute.xlu0 %961
    %963 = vrot.lane.b32.xlu0 %v146, 32
    %v964 = vpop.permute.xlu0 %963
    %965 = vrot.lane.b32.xlu0 %v147, 32
    %v966 = vpop.permute.xlu0 %965
    %967 = vrot.lane.b32.xlu0 %v148, 32
    %v968 = vpop.permute.xlu0 %967
    %969 = vrot.lane.b32.xlu0 %v149, 32
    %v970 = vpop.permute.xlu0 %969
    %971 = vrot.lane.b32.xlu0 %v150, 32
    %v972 = vpop.permute.xlu0 %971
    %973 = vrot.lane.b32.xlu0 %v151, 32
    %v974 = vpop.permute.xlu0 %973
    %975 = vrot.lane.b32.xlu0 %v152, 32
    %v976 = vpop.permute.xlu0 %975
    %977 = vrot.lane.b32.xlu0 %v153, 32
    %v978 = vpop.permute.xlu0 %977
    %979 = vrot.lane.b32.xlu0 %v154, 32
    %v980 = vpop.permute.xlu0 %979
    %981 = vrot.lane.b32.xlu0 %v155, 32
    %v982 = vpop.permute.xlu0 %981
    %983 = vrot.lane.b32.xlu0 %v156, 32
    %v984 = vpop.permute.xlu0 %983
    %985 = vrot.lane.b32.xlu0 %v157, 32
    %v986 = vpop.permute.xlu0 %985
    %987 = vrot.lane.b32.xlu0 %v158, 32
    %v988 = vpop.permute.xlu0 %987
    %989 = vrot.lane.b32.xlu0 %v159, 32
    %v990 = vpop.permute.xlu0 %989
    %v1007 = vmul.f32 %v461, %v960
    %v1008 = vmul.f32 %v476, %v962
    %v1009 = vmul.f32 %v491, %v964
    %v1010 = vmul.f32 %v506, %v966
    %v1011 = vmul.f32 %v521, %v968
    %v1012 = vmul.f32 %v536, %v970
    %v1013 = vmul.f32 %v551, %v972
    %v1014 = vmul.f32 %v566, %v974
    %v1015 = vmul.f32 %v581, %v976
    %v1016 = vmul.f32 %v596, %v978
    %v1017 = vmul.f32 %v611, %v980
    %v1018 = vmul.f32 %v626, %v982
    %v1019 = vmul.f32 %v641, %v984
    %v1020 = vmul.f32 %v656, %v986
    %v1021 = vmul.f32 %v671, %v988
    %v1022 = vmul.f32 %v686, %v990
    %v1023 = vadd.f32 %v943, %v1007
    %v1024 = vadd.f32 %v944, %v1008
    %v1025 = vadd.f32 %v945, %v1009
    %v1026 = vadd.f32 %v946, %v1010
    %v1027 = vadd.f32 %v947, %v1011
    %v1028 = vadd.f32 %v948, %v1012
    %v1029 = vadd.f32 %v949, %v1013
    %v1030 = vadd.f32 %v950, %v1014
    %v1031 = vadd.f32 %v951, %v1015
    %v1032 = vadd.f32 %v952, %v1016
    %v1033 = vadd.f32 %v953, %v1017
    %v1034 = vadd.f32 %v954, %v1018
    %v1035 = vadd.f32 %v955, %v1019
    %v1036 = vadd.f32 %v956, %v1020
    %v1037 = vadd.f32 %v957, %v1021
    %v1038 = vadd.f32 %v958, %v1022
    %v1039 = vld [vmem:[%s15] sm:$0xff]
    %v1040 = vld [vmem:[%s15 + $0x8] sm:$0xff]
    %v1041 = vld [vmem:[%s15 + $0x10] sm:$0xff]
    %v1042 = vld [vmem:[%s15 + $0x18] sm:$0xff]
    %v1043 = vld [vmem:[%s19] sm:$0x1]
    %v1045 = vperm.slane %v1043, 0
    %1063 = vrot.lane.b32.xlu0 %v1023, 96
    %v1064 = vpop.permute.xlu0 %1063
    %1065 = vrot.lane.b32.xlu0 %v1024, 96
    %v1066 = vpop.permute.xlu0 %1065
    %1067 = vrot.lane.b32.xlu0 %v1025, 96
    %v1068 = vpop.permute.xlu0 %1067
    %1069 = vrot.lane.b32.xlu0 %v1026, 96
    %v1070 = vpop.permute.xlu0 %1069
    %1071 = vrot.lane.b32.xlu0 %v1027, 96
    %v1072 = vpop.permute.xlu0 %1071
    %1073 = vrot.lane.b32.xlu0 %v1028, 96
    %v1074 = vpop.permute.xlu0 %1073
    %1075 = vrot.lane.b32.xlu0 %v1029, 96
    %v1076 = vpop.permute.xlu0 %1075
    %1077 = vrot.lane.b32.xlu0 %v1030, 96
    %v1078 = vpop.permute.xlu0 %1077
    %1079 = vrot.lane.b32.xlu0 %v1031, 96
    %v1080 = vpop.permute.xlu0 %1079
    %1081 = vrot.lane.b32.xlu0 %v1032, 96
    %v1082 = vpop.permute.xlu0 %1081
    %1083 = vrot.lane.b32.xlu0 %v1033, 96
    %v1084 = vpop.permute.xlu0 %1083
    %1085 = vrot.lane.b32.xlu0 %v1034, 96
    %v1086 = vpop.permute.xlu0 %1085
    %1087 = vrot.lane.b32.xlu0 %v1035, 96
    %v1088 = vpop.permute.xlu0 %1087
    %1089 = vrot.lane.b32.xlu0 %v1036, 96
    %v1090 = vpop.permute.xlu0 %1089
    %1091 = vrot.lane.b32.xlu0 %v1037, 96
    %v1092 = vpop.permute.xlu0 %1091
    %1093 = vrot.lane.b32.xlu0 %v1038, 96
    %v1094 = vpop.permute.xlu0 %1093
    %v1095 = vsel %vm253, %v1064, 0
    %v1097 = vsel %vm253, %v1066, 0
    %v1099 = vsel %vm253, %v1068, 0
    %v1101 = vsel %vm253, %v1070, 0
    %v1103 = vsel %vm253, %v1072, 0
    %v1105 = vsel %vm253, %v1074, 0
    %v1107 = vsel %vm253, %v1076, 0
    %v1109 = vsel %vm253, %v1078, 0
    %v1111 = vsel %vm253, %v1080, 0
    %v1113 = vsel %vm253, %v1082, 0
    %v1115 = vsel %vm253, %v1084, 0
    %v1117 = vsel %vm253, %v1086, 0
    %v1119 = vsel %vm253, %v1088, 0
    %v1121 = vsel %vm253, %v1090, 0
    %v1123 = vsel %vm253, %v1092, 0
    %v1125 = vsel %vm253, %v1094, 0
    %1127 = vmatpush.msra.mxu0 0.0
    %1128 = vmatpush.msra.mxu0 0.0
    %1129 = vmatpush.msra.mxu0 0.0
    %1130 = vmatpush.msra.mxu0 0.0
    %1131 = vmatpush.msra.mxu0 0.0
    %1132 = vmatpush.msra.mxu0 0.0
    %1133 = vmatpush.msra.mxu0 0.0
    %1134 = vmatpush.msra.mxu0 0.0
    %1135 = vmatpush.msra.mxu0 0.0
    %1136 = vmatpush.msra.mxu0 0.0
    %1137 = vmatpush.msra.mxu0 0.0
    %1138 = vmatpush.msra.mxu0 0.0
    %1139 = vmatpush.msra.mxu0 %v1042
    %1140 = vmatpush.msra.mxu0 %v1041
    %1141 = vmatpush.msra.mxu0 %v1040
    %1142 = vmatpush.msra.mxu0 %v1039
    %1143 = vmatmul.f32.gmra.mxu0 %v1095
    %v1144 = vpop.f32.mrf.mxu0
    %v1145 = vadd.f32 %v1045, %v1144
    %1146 = vmatmul.f32.gmra.mxu0 %v1097
    %v1147 = vpop.f32.mrf.mxu0
    %v1148 = vadd.f32 %v1045, %v1147
    %1149 = vmatmul.f32.gmra.mxu0 %v1099
    %v1150 = vpop.f32.mrf.mxu0
    %v1151 = vadd.f32 %v1045, %v1150
    %1152 = vmatmul.f32.gmra.mxu0 %v1101
    %v1153 = vpop.f32.mrf.mxu0
    %v1154 = vadd.f32 %v1045, %v1153
    %1155 = vmatmul.f32.gmra.mxu0 %v1103
    %v1156 = vpop.f32.mrf.mxu0
    %v1157 = vadd.f32 %v1045, %v1156
    %1158 = vmatmul.f32.gmra.mxu0 %v1105
    %v1159 = vpop.f32.mrf.mxu0
    %v1160 = vadd.f32 %v1045, %v1159
    %1161 = vmatmul.f32.gmra.mxu0 %v1107
    %v1162 = vpop.f32.mrf.mxu0
    %v1163 = vadd.f32 %v1045, %v1162
    %1164 = vmatmul.f32.gmra.mxu0 %v1109
    %v1165 = vpop.f32.mrf.mxu0
    %v1166 = vadd.f32 %v1045, %v1165
    %1167 = vmatmul.f32.gmra.mxu0 %v1111
    %v1168 = vpop.f32.mrf.mxu0
    %v1169 = vadd.f32 %v1045, %v1168
    %1170 = vmatmul.f32.gmra.mxu0 %v1113
    %v1171 = vpop.f32.mrf.mxu0
    %v1172 = vadd.f32 %v1045, %v1171
    %1173 = vmatmul.f32.gmra.mxu0 %v1115
    %v1174 = vpop.f32.mrf.mxu0
    %v1175 = vadd.f32 %v1045, %v1174
    %1176 = vmatmul.f32.gmra.mxu0 %v1117
    %v1177 = vpop.f32.mrf.mxu0
    %v1178 = vadd.f32 %v1045, %v1177
    %1179 = vmatmul.f32.gmra.mxu0 %v1119
    %v1180 = vpop.f32.mrf.mxu0
    %v1181 = vadd.f32 %v1045, %v1180
    %1182 = vmatmul.f32.gmra.mxu0 %v1121
    %v1183 = vpop.f32.mrf.mxu0
    %v1184 = vadd.f32 %v1045, %v1183
    %1185 = vmatmul.f32.gmra.mxu0 %v1123
    %v1186 = vpop.f32.mrf.mxu0
    %v1187 = vadd.f32 %v1045, %v1186
    %1188 = vmatmul.f32.gmra.mxu0 %v1125
    %v1189 = vpop.f32.mrf.mxu0
    %v1190 = vadd.f32 %v1045, %v1189
    %1191 = vdwg.mxu0
    %v1192 = vld [vmem:[%s17] sm:$0xff]
    %v1193 = vld [vmem:[%s17 + $0x8] sm:$0xff]
    %v1194 = vld [vmem:[%s17 + $0x10] sm:$0xff]
    %v1195 = vld [vmem:[%s17 + $0x18] sm:$0xff]
    %v1196 = vld [vmem:[%s21] sm:$0x1]
    %v1198 = vperm.slane %v1196, 0
    %1200 = vrot.lane.b32.xlu0 %v144, 96
    %v1201 = vpop.permute.xlu0 %1200
    %1202 = vrot.lane.b32.xlu0 %v145, 96
    %v1203 = vpop.permute.xlu0 %1202
    %1204 = vrot.lane.b32.xlu0 %v146, 96
    %v1205 = vpop.permute.xlu0 %1204
    %1206 = vrot.lane.b32.xlu0 %v147, 96
    %v1207 = vpop.permute.xlu0 %1206
    %1208 = vrot.lane.b32.xlu0 %v148, 96
    %v1209 = vpop.permute.xlu0 %1208
    %1210 = vrot.lane.b32.xlu0 %v149, 96
    %v1211 = vpop.permute.xlu0 %1210
    %1212 = vrot.lane.b32.xlu0 %v150, 96
    %v1213 = vpop.permute.xlu0 %1212
    %1214 = vrot.lane.b32.xlu0 %v151, 96
    %v1215 = vpop.permute.xlu0 %1214
    %1216 = vrot.lane.b32.xlu0 %v152, 96
    %v1217 = vpop.permute.xlu0 %1216
    %1218 = vrot.lane.b32.xlu0 %v153, 96
    %v1219 = vpop.permute.xlu0 %1218
    %1220 = vrot.lane.b32.xlu0 %v154, 96
    %v1221 = vpop.permute.xlu0 %1220
    %1222 = vrot.lane.b32.xlu0 %v155, 96
    %v1223 = vpop.permute.xlu0 %1222
    %1224 = vrot.lane.b32.xlu0 %v156, 96
    %v1225 = vpop.permute.xlu0 %1224
    %1226 = vrot.lane.b32.xlu0 %v157, 96
    %v1227 = vpop.permute.xlu0 %1226
    %1228 = vrot.lane.b32.xlu0 %v158, 96
    %v1229 = vpop.permute.xlu0 %1228
    %1230 = vrot.lane.b32.xlu0 %v159, 96
    %v1231 = vpop.permute.xlu0 %1230
    %v1232 = vsel %vm253, %v1201, 0
    %v1234 = vsel %vm253, %v1203, 0
    %v1236 = vsel %vm253, %v1205, 0
    %v1238 = vsel %vm253, %v1207, 0
    %v1240 = vsel %vm253, %v1209, 0
    %v1242 = vsel %vm253, %v1211, 0
    %v1244 = vsel %vm253, %v1213, 0
    %v1246 = vsel %vm253, %v1215, 0
    %v1248 = vsel %vm253, %v1217, 0
    %v1250 = vsel %vm253, %v1219, 0
    %v1252 = vsel %vm253, %v1221, 0
    %v1254 = vsel %vm253, %v1223, 0
    %v1256 = vsel %vm253, %v1225, 0
    %v1258 = vsel %vm253, %v1227, 0
    %v1260 = vsel %vm253, %v1229, 0
    %v1262 = vsel %vm253, %v1231, 0
    %1264 = vmatpush.msra.mxu0 0.0
    %1265 = vmatpush.msra.mxu0 0.0
    %1266 = vmatpush.msra.mxu0 0.0
    %1267 = vmatpush.msra.mxu0 0.0
    %1268 = vmatpush.msra.mxu0 0.0
    %1269 = vmatpush.msra.mxu0 0.0
    %1270 = vmatpush.msra.mxu0 0.0
    %1271 = vmatpush.msra.mxu0 0.0
    %1272 = vmatpush.msra.mxu0 0.0
    %1273 = vmatpush.msra.mxu0 0.0
    %1274 = vmatpush.msra.mxu0 0.0
    %1275 = vmatpush.msra.mxu0 0.0
    %1276 = vmatpush.msra.mxu0 %v1195
    %1277 = vmatpush.msra.mxu0 %v1194
    %1278 = vmatpush.msra.mxu0 %v1193
    %1279 = vmatpush.msra.mxu0 %v1192
    %1280 = vmatmul.f32.gmra.mxu0 %v1232
    %v1281 = vpop.f32.mrf.mxu0
    %v1282 = vadd.f32 %v1198, %v1281
    %1283 = vmatmul.f32.gmra.mxu0 %v1234
    %v1284 = vpop.f32.mrf.mxu0
    %v1285 = vadd.f32 %v1198, %v1284
    %1286 = vmatmul.f32.gmra.mxu0 %v1236
    %v1287 = vpop.f32.mrf.mxu0
    %v1288 = vadd.f32 %v1198, %v1287
    %1289 = vmatmul.f32.gmra.mxu0 %v1238
    %v1290 = vpop.f32.mrf.mxu0
    %v1291 = vadd.f32 %v1198, %v1290
    %1292 = vmatmul.f32.gmra.mxu0 %v1240
    %v1293 = vpop.f32.mrf.mxu0
    %v1294 = vadd.f32 %v1198, %v1293
    %1295 = vmatmul.f32.gmra.mxu0 %v1242
    %v1296 = vpop.f32.mrf.mxu0
    %v1297 = vadd.f32 %v1198, %v1296
    %1298 = vmatmul.f32.gmra.mxu0 %v1244
    %v1299 = vpop.f32.mrf.mxu0
    %v1300 = vadd.f32 %v1198, %v1299
    %1301 = vmatmul.f32.gmra.mxu0 %v1246
    %v1302 = vpop.f32.mrf.mxu0
    %v1303 = vadd.f32 %v1198, %v1302
    %1304 = vmatmul.f32.gmra.mxu0 %v1248
    %v1305 = vpop.f32.mrf.mxu0
    %v1306 = vadd.f32 %v1198, %v1305
    %1307 = vmatmul.f32.gmra.mxu0 %v1250
    %v1308 = vpop.f32.mrf.mxu0
    %v1309 = vadd.f32 %v1198, %v1308
    %1310 = vmatmul.f32.gmra.mxu0 %v1252
    %v1311 = vpop.f32.mrf.mxu0
    %v1312 = vadd.f32 %v1198, %v1311
    %1313 = vmatmul.f32.gmra.mxu0 %v1254
    %v1314 = vpop.f32.mrf.mxu0
    %v1315 = vadd.f32 %v1198, %v1314
    %1316 = vmatmul.f32.gmra.mxu0 %v1256
    %v1317 = vpop.f32.mrf.mxu0
    %v1318 = vadd.f32 %v1198, %v1317
    %1319 = vmatmul.f32.gmra.mxu0 %v1258
    %v1320 = vpop.f32.mrf.mxu0
    %v1321 = vadd.f32 %v1198, %v1320
    %1322 = vmatmul.f32.gmra.mxu0 %v1260
    %v1323 = vpop.f32.mrf.mxu0
    %v1324 = vadd.f32 %v1198, %v1323
    %1325 = vmatmul.f32.gmra.mxu0 %v1262
    %v1326 = vpop.f32.mrf.mxu0
    %v1327 = vadd.f32 %v1198, %v1326
    %1328 = vdwg.mxu0
    %v1329 = vadd.f32 %v1145, %v1282
    %v1330 = vadd.f32 %v1148, %v1285
    %v1331 = vadd.f32 %v1151, %v1288
    %v1332 = vadd.f32 %v1154, %v1291
    %v1333 = vadd.f32 %v1157, %v1294
    %v1334 = vadd.f32 %v1160, %v1297
    %v1335 = vadd.f32 %v1163, %v1300
    %v1336 = vadd.f32 %v1166, %v1303
    %v1337 = vadd.f32 %v1169, %v1306
    %v1338 = vadd.f32 %v1172, %v1309
    %v1339 = vadd.f32 %v1175, %v1312
    %v1340 = vadd.f32 %v1178, %v1315
    %v1341 = vadd.f32 %v1181, %v1318
    %v1342 = vadd.f32 %v1184, %v1321
    %v1343 = vadd.f32 %v1187, %v1324
    %v1344 = vadd.f32 %v1190, %v1327
    %v1345 = vsub.f32 0.0, %v1329
    %v1346 = vsub.f32 0.0, %v1330
    %v1347 = vsub.f32 0.0, %v1331
    %v1348 = vsub.f32 0.0, %v1332
    %v1349 = vsub.f32 0.0, %v1333
    %v1350 = vsub.f32 0.0, %v1334
    %v1351 = vsub.f32 0.0, %v1335
    %v1352 = vsub.f32 0.0, %v1336
    %v1353 = vsub.f32 0.0, %v1337
    %v1354 = vsub.f32 0.0, %v1338
    %v1355 = vsub.f32 0.0, %v1339
    %v1356 = vsub.f32 0.0, %v1340
    %v1357 = vsub.f32 0.0, %v1341
    %v1358 = vsub.f32 0.0, %v1342
    %v1359 = vsub.f32 0.0, %v1343
    %v1360 = vsub.f32 0.0, %v1344
    %v1361 = vmul.f32 %v1345, 1.442695
    %v1362 = vpow.pop %v1361
    %v1363 = vmul.f32 %v1346, 1.442695
    %v1364 = vpow.pop %v1363
    %v1365 = vmul.f32 %v1347, 1.442695
    %v1366 = vpow.pop %v1365
    %v1367 = vmul.f32 %v1348, 1.442695
    %v1368 = vpow.pop %v1367
    %v1369 = vmul.f32 %v1349, 1.442695
    %v1370 = vpow.pop %v1369
    %v1371 = vmul.f32 %v1350, 1.442695
    %v1372 = vpow.pop %v1371
    %v1373 = vmul.f32 %v1351, 1.442695
    %v1374 = vpow.pop %v1373
    %v1375 = vmul.f32 %v1352, 1.442695
    %v1376 = vpow.pop %v1375
    %v1377 = vmul.f32 %v1353, 1.442695
    %v1378 = vpow.pop %v1377
    %v1379 = vmul.f32 %v1354, 1.442695
    %v1380 = vpow.pop %v1379
    %v1381 = vmul.f32 %v1355, 1.442695
    %v1382 = vpow.pop %v1381
    %v1383 = vmul.f32 %v1356, 1.442695
    %v1384 = vpow.pop %v1383
    %v1385 = vmul.f32 %v1357, 1.442695
    %v1386 = vpow.pop %v1385
    %v1387 = vmul.f32 %v1358, 1.442695
    %v1388 = vpow.pop %v1387
    %v1389 = vmul.f32 %v1359, 1.442695
    %v1390 = vpow.pop %v1389
    %v1391 = vmul.f32 %v1360, 1.442695
    %v1392 = vpow.pop %v1391
    %v1393 = vadd.f32 %v1362, 1.0
    %v1394 = vadd.f32 %v1364, 1.0
    %v1395 = vadd.f32 %v1366, 1.0
    %v1396 = vadd.f32 %v1368, 1.0
    %v1397 = vadd.f32 %v1370, 1.0
    %v1398 = vadd.f32 %v1372, 1.0
    %v1399 = vadd.f32 %v1374, 1.0
    %v1400 = vadd.f32 %v1376, 1.0
    %v1401 = vadd.f32 %v1378, 1.0
    %v1402 = vadd.f32 %v1380, 1.0
    %v1403 = vadd.f32 %v1382, 1.0
    %v1404 = vadd.f32 %v1384, 1.0
    %v1405 = vadd.f32 %v1386, 1.0
    %v1406 = vadd.f32 %v1388, 1.0
    %v1407 = vadd.f32 %v1390, 1.0
    %v1408 = vadd.f32 %v1392, 1.0
    %v1409 = vrcp.pop %v1393
    %v1410 = vmul.f32 %v1393, %v1409
    %v1411 = vsub.f32 1.0, %v1410
    %v1412 = vmul.f32 %v1409, %v1411
    %v1413 = vadd.f32 %v1409, %v1412
    %vm1414 = vweird.f32 %v1393
    %vm1415 = vweird.f32 %v1409
    %vm1416 = vmor %vm1414, %vm1415
    %v1417 = vsel %vm1416, %v1409, %v1413
    %v1418 = vand.u32 2147483647, %v1393
    %vm1419 = vcmp.eq.f32.partialorder %v1418, 8.507059e+37
    %v1420 = vand.u32 %v1393, 2147483648
    %v1421 = vor.u32 1.1754944e-38, %v1420
    %v1422 = vsel %vm1419, %v1421, %v1417
    %v1423 = vmul.f32 1.0, %v1422
    %v1424 = vrcp.pop %v1394
    %v1425 = vmul.f32 %v1394, %v1424
    %v1426 = vsub.f32 1.0, %v1425
    %v1427 = vmul.f32 %v1424, %v1426
    %v1428 = vadd.f32 %v1424, %v1427
    %vm1429 = vweird.f32 %v1394
    %vm1430 = vweird.f32 %v1424
    %vm1431 = vmor %vm1429, %vm1430
    %v1432 = vsel %vm1431, %v1424, %v1428
    %v1433 = vand.u32 2147483647, %v1394
    %vm1434 = vcmp.eq.f32.partialorder %v1433, 8.507059e+37
    %v1435 = vand.u32 %v1394, 2147483648
    %v1436 = vor.u32 1.1754944e-38, %v1435
    %v1437 = vsel %vm1434, %v1436, %v1432
    %v1438 = vmul.f32 1.0, %v1437
    %v1439 = vrcp.pop %v1395
    %v1440 = vmul.f32 %v1395, %v1439
    %v1441 = vsub.f32 1.0, %v1440
    %v1442 = vmul.f32 %v1439, %v1441
    %v1443 = vadd.f32 %v1439, %v1442
    %vm1444 = vweird.f32 %v1395
    %vm1445 = vweird.f32 %v1439
    %vm1446 = vmor %vm1444, %vm1445
    %v1447 = vsel %vm1446, %v1439, %v1443
    %v1448 = vand.u32 2147483647, %v1395
    %vm1449 = vcmp.eq.f32.partialorder %v1448, 8.507059e+37
    %v1450 = vand.u32 %v1395, 2147483648
    %v1451 = vor.u32 1.1754944e-38, %v1450
    %v1452 = vsel %vm1449, %v1451, %v1447
    %v1453 = vmul.f32 1.0, %v1452
    %v1454 = vrcp.pop %v1396
    %v1455 = vmul.f32 %v1396, %v1454
    %v1456 = vsub.f32 1.0, %v1455
    %v1457 = vmul.f32 %v1454, %v1456
    %v1458 = vadd.f32 %v1454, %v1457
    %vm1459 = vweird.f32 %v1396
    %vm1460 = vweird.f32 %v1454
    %vm1461 = vmor %vm1459, %vm1460
    %v1462 = vsel %vm1461, %v1454, %v1458
    %v1463 = vand.u32 2147483647, %v1396
    %vm1464 = vcmp.eq.f32.partialorder %v1463, 8.507059e+37
    %v1465 = vand.u32 %v1396, 2147483648
    %v1466 = vor.u32 1.1754944e-38, %v1465
    %v1467 = vsel %vm1464, %v1466, %v1462
    %v1468 = vmul.f32 1.0, %v1467
    %v1469 = vrcp.pop %v1397
    %v1470 = vmul.f32 %v1397, %v1469
    %v1471 = vsub.f32 1.0, %v1470
    %v1472 = vmul.f32 %v1469, %v1471
    %v1473 = vadd.f32 %v1469, %v1472
    %vm1474 = vweird.f32 %v1397
    %vm1475 = vweird.f32 %v1469
    %vm1476 = vmor %vm1474, %vm1475
    %v1477 = vsel %vm1476, %v1469, %v1473
    %v1478 = vand.u32 2147483647, %v1397
    %vm1479 = vcmp.eq.f32.partialorder %v1478, 8.507059e+37
    %v1480 = vand.u32 %v1397, 2147483648
    %v1481 = vor.u32 1.1754944e-38, %v1480
    %v1482 = vsel %vm1479, %v1481, %v1477
    %v1483 = vmul.f32 1.0, %v1482
    %v1484 = vrcp.pop %v1398
    %v1485 = vmul.f32 %v1398, %v1484
    %v1486 = vsub.f32 1.0, %v1485
    %v1487 = vmul.f32 %v1484, %v1486
    %v1488 = vadd.f32 %v1484, %v1487
    %vm1489 = vweird.f32 %v1398
    %vm1490 = vweird.f32 %v1484
    %vm1491 = vmor %vm1489, %vm1490
    %v1492 = vsel %vm1491, %v1484, %v1488
    %v1493 = vand.u32 2147483647, %v1398
    %vm1494 = vcmp.eq.f32.partialorder %v1493, 8.507059e+37
    %v1495 = vand.u32 %v1398, 2147483648
    %v1496 = vor.u32 1.1754944e-38, %v1495
    %v1497 = vsel %vm1494, %v1496, %v1492
    %v1498 = vmul.f32 1.0, %v1497
    %v1499 = vrcp.pop %v1399
    %v1500 = vmul.f32 %v1399, %v1499
    %v1501 = vsub.f32 1.0, %v1500
    %v1502 = vmul.f32 %v1499, %v1501
    %v1503 = vadd.f32 %v1499, %v1502
    %vm1504 = vweird.f32 %v1399
    %vm1505 = vweird.f32 %v1499
    %vm1506 = vmor %vm1504, %vm1505
    %v1507 = vsel %vm1506, %v1499, %v1503
    %v1508 = vand.u32 2147483647, %v1399
    %vm1509 = vcmp.eq.f32.partialorder %v1508, 8.507059e+37
    %v1510 = vand.u32 %v1399, 2147483648
    %v1511 = vor.u32 1.1754944e-38, %v1510
    %v1512 = vsel %vm1509, %v1511, %v1507
    %v1513 = vmul.f32 1.0, %v1512
    %v1514 = vrcp.pop %v1400
    %v1515 = vmul.f32 %v1400, %v1514
    %v1516 = vsub.f32 1.0, %v1515
    %v1517 = vmul.f32 %v1514, %v1516
    %v1518 = vadd.f32 %v1514, %v1517
    %vm1519 = vweird.f32 %v1400
    %vm1520 = vweird.f32 %v1514
    %vm1521 = vmor %vm1519, %vm1520
    %v1522 = vsel %vm1521, %v1514, %v1518
    %v1523 = vand.u32 2147483647, %v1400
    %vm1524 = vcmp.eq.f32.partialorder %v1523, 8.507059e+37
    %v1525 = vand.u32 %v1400, 2147483648
    %v1526 = vor.u32 1.1754944e-38, %v1525
    %v1527 = vsel %vm1524, %v1526, %v1522
    %v1528 = vmul.f32 1.0, %v1527
    %v1529 = vrcp.pop %v1401
    %v1530 = vmul.f32 %v1401, %v1529
    %v1531 = vsub.f32 1.0, %v1530
    %v1532 = vmul.f32 %v1529, %v1531
    %v1533 = vadd.f32 %v1529, %v1532
    %vm1534 = vweird.f32 %v1401
    %vm1535 = vweird.f32 %v1529
    %vm1536 = vmor %vm1534, %vm1535
    %v1537 = vsel %vm1536, %v1529, %v1533
    %v1538 = vand.u32 2147483647, %v1401
    %vm1539 = vcmp.eq.f32.partialorder %v1538, 8.507059e+37
    %v1540 = vand.u32 %v1401, 2147483648
    %v1541 = vor.u32 1.1754944e-38, %v1540
    %v1542 = vsel %vm1539, %v1541, %v1537
    %v1543 = vmul.f32 1.0, %v1542
    %v1544 = vrcp.pop %v1402
    %v1545 = vmul.f32 %v1402, %v1544
    %v1546 = vsub.f32 1.0, %v1545
    %v1547 = vmul.f32 %v1544, %v1546
    %v1548 = vadd.f32 %v1544, %v1547
    %vm1549 = vweird.f32 %v1402
    %vm1550 = vweird.f32 %v1544
    %vm1551 = vmor %vm1549, %vm1550
    %v1552 = vsel %vm1551, %v1544, %v1548
    %v1553 = vand.u32 2147483647, %v1402
    %vm1554 = vcmp.eq.f32.partialorder %v1553, 8.507059e+37
    %v1555 = vand.u32 %v1402, 2147483648
    %v1556 = vor.u32 1.1754944e-38, %v1555
    %v1557 = vsel %vm1554, %v1556, %v1552
    %v1558 = vmul.f32 1.0, %v1557
    %v1559 = vrcp.pop %v1403
    %v1560 = vmul.f32 %v1403, %v1559
    %v1561 = vsub.f32 1.0, %v1560
    %v1562 = vmul.f32 %v1559, %v1561
    %v1563 = vadd.f32 %v1559, %v1562
    %vm1564 = vweird.f32 %v1403
    %vm1565 = vweird.f32 %v1559
    %vm1566 = vmor %vm1564, %vm1565
    %v1567 = vsel %vm1566, %v1559, %v1563
    %v1568 = vand.u32 2147483647, %v1403
    %vm1569 = vcmp.eq.f32.partialorder %v1568, 8.507059e+37
    %v1570 = vand.u32 %v1403, 2147483648
    %v1571 = vor.u32 1.1754944e-38, %v1570
    %v1572 = vsel %vm1569, %v1571, %v1567
    %v1573 = vmul.f32 1.0, %v1572
    %v1574 = vrcp.pop %v1404
    %v1575 = vmul.f32 %v1404, %v1574
    %v1576 = vsub.f32 1.0, %v1575
    %v1577 = vmul.f32 %v1574, %v1576
    %v1578 = vadd.f32 %v1574, %v1577
    %vm1579 = vweird.f32 %v1404
    %vm1580 = vweird.f32 %v1574
    %vm1581 = vmor %vm1579, %vm1580
    %v1582 = vsel %vm1581, %v1574, %v1578
    %v1583 = vand.u32 2147483647, %v1404
    %vm1584 = vcmp.eq.f32.partialorder %v1583, 8.507059e+37
    %v1585 = vand.u32 %v1404, 2147483648
    %v1586 = vor.u32 1.1754944e-38, %v1585
    %v1587 = vsel %vm1584, %v1586, %v1582
    %v1588 = vmul.f32 1.0, %v1587
    %v1589 = vrcp.pop %v1405
    %v1590 = vmul.f32 %v1405, %v1589
    %v1591 = vsub.f32 1.0, %v1590
    %v1592 = vmul.f32 %v1589, %v1591
    %v1593 = vadd.f32 %v1589, %v1592
    %vm1594 = vweird.f32 %v1405
    %vm1595 = vweird.f32 %v1589
    %vm1596 = vmor %vm1594, %vm1595
    %v1597 = vsel %vm1596, %v1589, %v1593
    %v1598 = vand.u32 2147483647, %v1405
    %vm1599 = vcmp.eq.f32.partialorder %v1598, 8.507059e+37
    %v1600 = vand.u32 %v1405, 2147483648
    %v1601 = vor.u32 1.1754944e-38, %v1600
    %v1602 = vsel %vm1599, %v1601, %v1597
    %v1603 = vmul.f32 1.0, %v1602
    %v1604 = vrcp.pop %v1406
    %v1605 = vmul.f32 %v1406, %v1604
    %v1606 = vsub.f32 1.0, %v1605
    %v1607 = vmul.f32 %v1604, %v1606
    %v1608 = vadd.f32 %v1604, %v1607
    %vm1609 = vweird.f32 %v1406
    %vm1610 = vweird.f32 %v1604
    %vm1611 = vmor %vm1609, %vm1610
    %v1612 = vsel %vm1611, %v1604, %v1608
    %v1613 = vand.u32 2147483647, %v1406
    %vm1614 = vcmp.eq.f32.partialorder %v1613, 8.507059e+37
    %v1615 = vand.u32 %v1406, 2147483648
    %v1616 = vor.u32 1.1754944e-38, %v1615
    %v1617 = vsel %vm1614, %v1616, %v1612
    %v1618 = vmul.f32 1.0, %v1617
    %v1619 = vrcp.pop %v1407
    %v1620 = vmul.f32 %v1407, %v1619
    %v1621 = vsub.f32 1.0, %v1620
    %v1622 = vmul.f32 %v1619, %v1621
    %v1623 = vadd.f32 %v1619, %v1622
    %vm1624 = vweird.f32 %v1407
    %vm1625 = vweird.f32 %v1619
    %vm1626 = vmor %vm1624, %vm1625
    %v1627 = vsel %vm1626, %v1619, %v1623
    %v1628 = vand.u32 2147483647, %v1407
    %vm1629 = vcmp.eq.f32.partialorder %v1628, 8.507059e+37
    %v1630 = vand.u32 %v1407, 2147483648
    %v1631 = vor.u32 1.1754944e-38, %v1630
    %v1632 = vsel %vm1629, %v1631, %v1627
    %v1633 = vmul.f32 1.0, %v1632
    %v1634 = vrcp.pop %v1408
    %v1635 = vmul.f32 %v1408, %v1634
    %v1636 = vsub.f32 1.0, %v1635
    %v1637 = vmul.f32 %v1634, %v1636
    %v1638 = vadd.f32 %v1634, %v1637
    %vm1639 = vweird.f32 %v1408
    %vm1640 = vweird.f32 %v1634
    %vm1641 = vmor %vm1639, %vm1640
    %v1642 = vsel %vm1641, %v1634, %v1638
    %v1643 = vand.u32 2147483647, %v1408
    %vm1644 = vcmp.eq.f32.partialorder %v1643, 8.507059e+37
    %v1645 = vand.u32 %v1408, 2147483648
    %v1646 = vor.u32 1.1754944e-38, %v1645
    %v1647 = vsel %vm1644, %v1646, %v1642
    %v1648 = vmul.f32 1.0, %v1647
    %1665 = vrot.lane.b32.xlu0 %v1282, 64
    %v1666 = vpop.permute.xlu0 %1665
    %1667 = vrot.lane.b32.xlu0 %v1285, 64
    %v1668 = vpop.permute.xlu0 %1667
    %1669 = vrot.lane.b32.xlu0 %v1288, 64
    %v1670 = vpop.permute.xlu0 %1669
    %1671 = vrot.lane.b32.xlu0 %v1291, 64
    %v1672 = vpop.permute.xlu0 %1671
    %1673 = vrot.lane.b32.xlu0 %v1294, 64
    %v1674 = vpop.permute.xlu0 %1673
    %1675 = vrot.lane.b32.xlu0 %v1297, 64
    %v1676 = vpop.permute.xlu0 %1675
    %1677 = vrot.lane.b32.xlu0 %v1300, 64
    %v1678 = vpop.permute.xlu0 %1677
    %1679 = vrot.lane.b32.xlu0 %v1303, 64
    %v1680 = vpop.permute.xlu0 %1679
    %1681 = vrot.lane.b32.xlu0 %v1306, 64
    %v1682 = vpop.permute.xlu0 %1681
    %1683 = vrot.lane.b32.xlu0 %v1309, 64
    %v1684 = vpop.permute.xlu0 %1683
    %1685 = vrot.lane.b32.xlu0 %v1312, 64
    %v1686 = vpop.permute.xlu0 %1685
    %1687 = vrot.lane.b32.xlu0 %v1315, 64
    %v1688 = vpop.permute.xlu0 %1687
    %1689 = vrot.lane.b32.xlu0 %v1318, 64
    %v1690 = vpop.permute.xlu0 %1689
    %1691 = vrot.lane.b32.xlu0 %v1321, 64
    %v1692 = vpop.permute.xlu0 %1691
    %1693 = vrot.lane.b32.xlu0 %v1324, 64
    %v1694 = vpop.permute.xlu0 %1693
    %1695 = vrot.lane.b32.xlu0 %v1327, 64
    %v1696 = vpop.permute.xlu0 %1695
    %v1713 = vmul.f32 %v1423, %v1666
    %v1714 = vmul.f32 %v1438, %v1668
    %v1715 = vmul.f32 %v1453, %v1670
    %v1716 = vmul.f32 %v1468, %v1672
    %v1717 = vmul.f32 %v1483, %v1674
    %v1718 = vmul.f32 %v1498, %v1676
    %v1719 = vmul.f32 %v1513, %v1678
    %v1720 = vmul.f32 %v1528, %v1680
    %v1721 = vmul.f32 %v1543, %v1682
    %v1722 = vmul.f32 %v1558, %v1684
    %v1723 = vmul.f32 %v1573, %v1686
    %v1724 = vmul.f32 %v1588, %v1688
    %v1725 = vmul.f32 %v1603, %v1690
    %v1726 = vmul.f32 %v1618, %v1692
    %v1727 = vmul.f32 %v1633, %v1694
    %v1728 = vmul.f32 %v1648, %v1696
    %1745 = vrot.lane.b32.xlu0 %v1713, 64
    %v1746 = vpop.permute.xlu0 %1745
    %1747 = vrot.lane.b32.xlu0 %v1714, 64
    %v1748 = vpop.permute.xlu0 %1747
    %1749 = vrot.lane.b32.xlu0 %v1715, 64
    %v1750 = vpop.permute.xlu0 %1749
    %1751 = vrot.lane.b32.xlu0 %v1716, 64
    %v1752 = vpop.permute.xlu0 %1751
    %1753 = vrot.lane.b32.xlu0 %v1717, 64
    %v1754 = vpop.permute.xlu0 %1753
    %1755 = vrot.lane.b32.xlu0 %v1718, 64
    %v1756 = vpop.permute.xlu0 %1755
    %1757 = vrot.lane.b32.xlu0 %v1719, 64
    %v1758 = vpop.permute.xlu0 %1757
    %1759 = vrot.lane.b32.xlu0 %v1720, 64
    %v1760 = vpop.permute.xlu0 %1759
    %1761 = vrot.lane.b32.xlu0 %v1721, 64
    %v1762 = vpop.permute.xlu0 %1761
    %1763 = vrot.lane.b32.xlu0 %v1722, 64
    %v1764 = vpop.permute.xlu0 %1763
    %1765 = vrot.lane.b32.xlu0 %v1723, 64
    %v1766 = vpop.permute.xlu0 %1765
    %1767 = vrot.lane.b32.xlu0 %v1724, 64
    %v1768 = vpop.permute.xlu0 %1767
    %1769 = vrot.lane.b32.xlu0 %v1725, 64
    %v1770 = vpop.permute.xlu0 %1769
    %1771 = vrot.lane.b32.xlu0 %v1726, 64
    %v1772 = vpop.permute.xlu0 %1771
    %1773 = vrot.lane.b32.xlu0 %v1727, 64
    %v1774 = vpop.permute.xlu0 %1773
    %1775 = vrot.lane.b32.xlu0 %v1728, 64
    %v1776 = vpop.permute.xlu0 %1775
    %v1793 = vadd.f32 %v1145, %v1746
    %v1794 = vadd.f32 %v1148, %v1748
    %v1795 = vadd.f32 %v1151, %v1750
    %v1796 = vadd.f32 %v1154, %v1752
    %v1797 = vadd.f32 %v1157, %v1754
    %v1798 = vadd.f32 %v1160, %v1756
    %v1799 = vadd.f32 %v1163, %v1758
    %v1800 = vadd.f32 %v1166, %v1760
    %v1801 = vadd.f32 %v1169, %v1762
    %v1802 = vadd.f32 %v1172, %v1764
    %v1803 = vadd.f32 %v1175, %v1766
    %v1804 = vadd.f32 %v1178, %v1768
    %v1805 = vadd.f32 %v1181, %v1770
    %v1806 = vadd.f32 %v1184, %v1772
    %v1807 = vadd.f32 %v1187, %v1774
    %v1808 = vadd.f32 %v1190, %v1776
    %v1809 = vtanh.pop %v1793
    %v1810 = vtanh.pop %v1794
    %v1811 = vtanh.pop %v1795
    %v1812 = vtanh.pop %v1796
    %v1813 = vtanh.pop %v1797
    %v1814 = vtanh.pop %v1798
    %v1815 = vtanh.pop %v1799
    %v1816 = vtanh.pop %v1800
    %v1817 = vtanh.pop %v1801
    %v1818 = vtanh.pop %v1802
    %v1819 = vtanh.pop %v1803
    %v1820 = vtanh.pop %v1804
    %v1821 = vtanh.pop %v1805
    %v1822 = vtanh.pop %v1806
    %v1823 = vtanh.pop %v1807
    %v1824 = vtanh.pop %v1808
    %v1825 = vsub.f32 1.0, %v1423
    %v1826 = vsub.f32 1.0, %v1438
    %v1827 = vsub.f32 1.0, %v1453
    %v1828 = vsub.f32 1.0, %v1468
    %v1829 = vsub.f32 1.0, %v1483
    %v1830 = vsub.f32 1.0, %v1498
    %v1831 = vsub.f32 1.0, %v1513
    %v1832 = vsub.f32 1.0, %v1528
    %v1833 = vsub.f32 1.0, %v1543
    %v1834 = vsub.f32 1.0, %v1558
    %v1835 = vsub.f32 1.0, %v1573
    %v1836 = vsub.f32 1.0, %v1588
    %v1837 = vsub.f32 1.0, %v1603
    %v1838 = vsub.f32 1.0, %v1618
    %v1839 = vsub.f32 1.0, %v1633
    %v1840 = vsub.f32 1.0, %v1648
    %1857 = vrot.lane.b32.xlu0 %v1809, 96
    %v1858 = vpop.permute.xlu0 %1857
    %1859 = vrot.lane.b32.xlu0 %v1810, 96
    %v1860 = vpop.permute.xlu0 %1859
    %1861 = vrot.lane.b32.xlu0 %v1811, 96
    %v1862 = vpop.permute.xlu0 %1861
    %1863 = vrot.lane.b32.xlu0 %v1812, 96
    %v1864 = vpop.permute.xlu0 %1863
    %1865 = vrot.lane.b32.xlu0 %v1813, 96
    %v1866 = vpop.permute.xlu0 %1865
    %1867 = vrot.lane.b32.xlu0 %v1814, 96
    %v1868 = vpop.permute.xlu0 %1867
    %1869 = vrot.lane.b32.xlu0 %v1815, 96
    %v1870 = vpop.permute.xlu0 %1869
    %1871 = vrot.lane.b32.xlu0 %v1816, 96
    %v1872 = vpop.permute.xlu0 %1871
    %1873 = vrot.lane.b32.xlu0 %v1817, 96
    %v1874 = vpop.permute.xlu0 %1873
    %1875 = vrot.lane.b32.xlu0 %v1818, 96
    %v1876 = vpop.permute.xlu0 %1875
    %1877 = vrot.lane.b32.xlu0 %v1819, 96
    %v1878 = vpop.permute.xlu0 %1877
    %1879 = vrot.lane.b32.xlu0 %v1820, 96
    %v1880 = vpop.permute.xlu0 %1879
    %1881 = vrot.lane.b32.xlu0 %v1821, 96
    %v1882 = vpop.permute.xlu0 %1881
    %1883 = vrot.lane.b32.xlu0 %v1822, 96
    %v1884 = vpop.permute.xlu0 %1883
    %1885 = vrot.lane.b32.xlu0 %v1823, 96
    %v1886 = vpop.permute.xlu0 %1885
    %1887 = vrot.lane.b32.xlu0 %v1824, 96
    %v1888 = vpop.permute.xlu0 %1887
    %v1905 = vmul.f32 %v1825, %v1858
    %v1906 = vmul.f32 %v1826, %v1860
    %v1907 = vmul.f32 %v1827, %v1862
    %v1908 = vmul.f32 %v1828, %v1864
    %v1909 = vmul.f32 %v1829, %v1866
    %v1910 = vmul.f32 %v1830, %v1868
    %v1911 = vmul.f32 %v1831, %v1870
    %v1912 = vmul.f32 %v1832, %v1872
    %v1913 = vmul.f32 %v1833, %v1874
    %v1914 = vmul.f32 %v1834, %v1876
    %v1915 = vmul.f32 %v1835, %v1878
    %v1916 = vmul.f32 %v1836, %v1880
    %v1917 = vmul.f32 %v1837, %v1882
    %v1918 = vmul.f32 %v1838, %v1884
    %v1919 = vmul.f32 %v1839, %v1886
    %v1920 = vmul.f32 %v1840, %v1888
    %v1921 = vmul.f32 %v1423, %v144
    %v1922 = vmul.f32 %v1438, %v145
    %v1923 = vmul.f32 %v1453, %v146
    %v1924 = vmul.f32 %v1468, %v147
    %v1925 = vmul.f32 %v1483, %v148
    %v1926 = vmul.f32 %v1498, %v149
    %v1927 = vmul.f32 %v1513, %v150
    %v1928 = vmul.f32 %v1528, %v151
    %v1929 = vmul.f32 %v1543, %v152
    %v1930 = vmul.f32 %v1558, %v153
    %v1931 = vmul.f32 %v1573, %v154
    %v1932 = vmul.f32 %v1588, %v155
    %v1933 = vmul.f32 %v1603, %v156
    %v1934 = vmul.f32 %v1618, %v157
    %v1935 = vmul.f32 %v1633, %v158
    %v1936 = vmul.f32 %v1648, %v159
    %v1937 = vadd.f32 %v1905, %v1921
    %v1938 = vadd.f32 %v1906, %v1922
    %v1939 = vadd.f32 %v1907, %v1923
    %v1940 = vadd.f32 %v1908, %v1924
    %v1941 = vadd.f32 %v1909, %v1925
    %v1942 = vadd.f32 %v1910, %v1926
    %v1943 = vadd.f32 %v1911, %v1927
    %v1944 = vadd.f32 %v1912, %v1928
    %v1945 = vadd.f32 %v1913, %v1929
    %v1946 = vadd.f32 %v1914, %v1930
    %v1947 = vadd.f32 %v1915, %v1931
    %v1948 = vadd.f32 %v1916, %v1932
    %v1949 = vadd.f32 %v1917, %v1933
    %v1950 = vadd.f32 %v1918, %v1934
    %v1951 = vadd.f32 %v1919, %v1935
    %v1952 = vadd.f32 %v1920, %v1936
    %v1953 = vld [vmem:[%s23] sm:$0xff]
    %v1954 = vld [vmem:[%s23 + $0x8] sm:$0xff]
    %v1955 = vld [vmem:[%s23 + $0x10] sm:$0xff]
    %v1956 = vld [vmem:[%s23 + $0x18] sm:$0xff]
    %v1957 = vld [vmem:[%s25] sm:$0x1]
    %v1959 = vperm.slane %v1957, 0
    %1977 = vrot.lane.b32.xlu0 %v1937, 96
    %v1978 = vpop.permute.xlu0 %1977
    %1979 = vrot.lane.b32.xlu0 %v1938, 96
    %v1980 = vpop.permute.xlu0 %1979
    %1981 = vrot.lane.b32.xlu0 %v1939, 96
    %v1982 = vpop.permute.xlu0 %1981
    %1983 = vrot.lane.b32.xlu0 %v1940, 96
    %v1984 = vpop.permute.xlu0 %1983
    %1985 = vrot.lane.b32.xlu0 %v1941, 96
    %v1986 = vpop.permute.xlu0 %1985
    %1987 = vrot.lane.b32.xlu0 %v1942, 96
    %v1988 = vpop.permute.xlu0 %1987
    %1989 = vrot.lane.b32.xlu0 %v1943, 96
    %v1990 = vpop.permute.xlu0 %1989
    %1991 = vrot.lane.b32.xlu0 %v1944, 96
    %v1992 = vpop.permute.xlu0 %1991
    %1993 = vrot.lane.b32.xlu0 %v1945, 96
    %v1994 = vpop.permute.xlu0 %1993
    %1995 = vrot.lane.b32.xlu0 %v1946, 96
    %v1996 = vpop.permute.xlu0 %1995
    %1997 = vrot.lane.b32.xlu0 %v1947, 96
    %v1998 = vpop.permute.xlu0 %1997
    %1999 = vrot.lane.b32.xlu0 %v1948, 96
    %v2000 = vpop.permute.xlu0 %1999
    %2001 = vrot.lane.b32.xlu0 %v1949, 96
    %v2002 = vpop.permute.xlu0 %2001
    %2003 = vrot.lane.b32.xlu0 %v1950, 96
    %v2004 = vpop.permute.xlu0 %2003
    %2005 = vrot.lane.b32.xlu0 %v1951, 96
    %v2006 = vpop.permute.xlu0 %2005
    %2007 = vrot.lane.b32.xlu0 %v1952, 96
    %v2008 = vpop.permute.xlu0 %2007
    %v2009 = vsel %vm253, %v1978, 0
    %v2011 = vsel %vm253, %v1980, 0
    %v2013 = vsel %vm253, %v1982, 0
    %v2015 = vsel %vm253, %v1984, 0
    %v2017 = vsel %vm253, %v1986, 0
    %v2019 = vsel %vm253, %v1988, 0
    %v2021 = vsel %vm253, %v1990, 0
    %v2023 = vsel %vm253, %v1992, 0
    %v2025 = vsel %vm253, %v1994, 0
    %v2027 = vsel %vm253, %v1996, 0
    %v2029 = vsel %vm253, %v1998, 0
    %v2031 = vsel %vm253, %v2000, 0
    %v2033 = vsel %vm253, %v2002, 0
    %v2035 = vsel %vm253, %v2004, 0
    %v2037 = vsel %vm253, %v2006, 0
    %v2039 = vsel %vm253, %v2008, 0
    %2041 = vmatpush.msra.mxu0 0.0
    %2042 = vmatpush.msra.mxu0 0.0
    %2043 = vmatpush.msra.mxu0 0.0
    %2044 = vmatpush.msra.mxu0 0.0
    %2045 = vmatpush.msra.mxu0 0.0
    %2046 = vmatpush.msra.mxu0 0.0
    %2047 = vmatpush.msra.mxu0 0.0
    %2048 = vmatpush.msra.mxu0 0.0
    %2049 = vmatpush.msra.mxu0 0.0
    %2050 = vmatpush.msra.mxu0 0.0
    %2051 = vmatpush.msra.mxu0 0.0
    %2052 = vmatpush.msra.mxu0 0.0
    %2053 = vmatpush.msra.mxu0 %v1956
    %2054 = vmatpush.msra.mxu0 %v1955
    %2055 = vmatpush.msra.mxu0 %v1954
    %2056 = vmatpush.msra.mxu0 %v1953
    %2057 = vmatmul.f32.gmra.mxu0 %v2009
    %v2058 = vpop.f32.mrf.mxu0
    %v2059 = vadd.f32 %v1959, %v2058
    %2060 = vmatmul.f32.gmra.mxu0 %v2011
    %v2061 = vpop.f32.mrf.mxu0
    %v2062 = vadd.f32 %v1959, %v2061
    %2063 = vmatmul.f32.gmra.mxu0 %v2013
    %v2064 = vpop.f32.mrf.mxu0
    %v2065 = vadd.f32 %v1959, %v2064
    %2066 = vmatmul.f32.gmra.mxu0 %v2015
    %v2067 = vpop.f32.mrf.mxu0
    %v2068 = vadd.f32 %v1959, %v2067
    %2069 = vmatmul.f32.gmra.mxu0 %v2017
    %v2070 = vpop.f32.mrf.mxu0
    %v2071 = vadd.f32 %v1959, %v2070
    %2072 = vmatmul.f32.gmra.mxu0 %v2019
    %v2073 = vpop.f32.mrf.mxu0
    %v2074 = vadd.f32 %v1959, %v2073
    %2075 = vmatmul.f32.gmra.mxu0 %v2021
    %v2076 = vpop.f32.mrf.mxu0
    %v2077 = vadd.f32 %v1959, %v2076
    %2078 = vmatmul.f32.gmra.mxu0 %v2023
    %v2079 = vpop.f32.mrf.mxu0
    %v2080 = vadd.f32 %v1959, %v2079
    %2081 = vmatmul.f32.gmra.mxu0 %v2025
    %v2082 = vpop.f32.mrf.mxu0
    %v2083 = vadd.f32 %v1959, %v2082
    %2084 = vmatmul.f32.gmra.mxu0 %v2027
    %v2085 = vpop.f32.mrf.mxu0
    %v2086 = vadd.f32 %v1959, %v2085
    %2087 = vmatmul.f32.gmra.mxu0 %v2029
    %v2088 = vpop.f32.mrf.mxu0
    %v2089 = vadd.f32 %v1959, %v2088
    %2090 = vmatmul.f32.gmra.mxu0 %v2031
    %v2091 = vpop.f32.mrf.mxu0
    %v2092 = vadd.f32 %v1959, %v2091
    %2093 = vmatmul.f32.gmra.mxu0 %v2033
    %v2094 = vpop.f32.mrf.mxu0
    %v2095 = vadd.f32 %v1959, %v2094
    %2096 = vmatmul.f32.gmra.mxu0 %v2035
    %v2097 = vpop.f32.mrf.mxu0
    %v2098 = vadd.f32 %v1959, %v2097
    %2099 = vmatmul.f32.gmra.mxu0 %v2037
    %v2100 = vpop.f32.mrf.mxu0
    %v2101 = vadd.f32 %v1959, %v2100
    %2102 = vmatmul.f32.gmra.mxu0 %v2039
    %v2103 = vpop.f32.mrf.mxu0
    %v2104 = vadd.f32 %v1959, %v2103
    %2105 = vdwg.mxu0
    %v2106 = vld [vmem:[#allocation2] sm:$0x1]
    %vm2107 = vcmp.ge.f32.partialorder %v2059, 0.0
    %vm2108 = vcmp.ge.f32.partialorder %v2062, 0.0
    %vm2109 = vcmp.ge.f32.partialorder %v2065, 0.0
    %vm2110 = vcmp.ge.f32.partialorder %v2068, 0.0
    %vm2111 = vcmp.ge.f32.partialorder %v2071, 0.0
    %vm2112 = vcmp.ge.f32.partialorder %v2074, 0.0
    %vm2113 = vcmp.ge.f32.partialorder %v2077, 0.0
    %vm2114 = vcmp.ge.f32.partialorder %v2080, 0.0
    %vm2115 = vcmp.ge.f32.partialorder %v2083, 0.0
    %vm2116 = vcmp.ge.f32.partialorder %v2086, 0.0
    %vm2117 = vcmp.ge.f32.partialorder %v2089, 0.0
    %vm2118 = vcmp.ge.f32.partialorder %v2092, 0.0
    %vm2119 = vcmp.ge.f32.partialorder %v2095, 0.0
    %vm2120 = vcmp.ge.f32.partialorder %v2098, 0.0
    %vm2121 = vcmp.ge.f32.partialorder %v2101, 0.0
    %vm2122 = vcmp.ge.f32.partialorder %v2104, 0.0
    %v2124 = vperm.slane %v2106, 0
    %2125 = vset.pattern.permute.xlu0 0
    %2126 = vperm.xlu0 %2125, %v2124
    %v2127 = vpop.permute.xlu0 %2126
    %v2129 = vmul.f32 %v2127, %v2059
    %v2130 = vmul.f32 %v2127, %v2062
    %v2131 = vmul.f32 %v2127, %v2065
    %v2132 = vmul.f32 %v2127, %v2068
    %v2133 = vmul.f32 %v2127, %v2071
    %v2134 = vmul.f32 %v2127, %v2074
    %v2135 = vmul.f32 %v2127, %v2077
    %v2136 = vmul.f32 %v2127, %v2080
    %v2137 = vmul.f32 %v2127, %v2083
    %v2138 = vmul.f32 %v2127, %v2086
    %v2139 = vmul.f32 %v2127, %v2089
    %v2140 = vmul.f32 %v2127, %v2092
    %v2141 = vmul.f32 %v2127, %v2095
    %v2142 = vmul.f32 %v2127, %v2098
    %v2143 = vmul.f32 %v2127, %v2101
    %v2144 = vmul.f32 %v2127, %v2104
    %v2145 = vsel %vm2107, %v2059, %v2129
    %v2146 = vsel %vm2108, %v2062, %v2130
    %v2147 = vsel %vm2109, %v2065, %v2131
    %v2148 = vsel %vm2110, %v2068, %v2132
    %v2149 = vsel %vm2111, %v2071, %v2133
    %v2150 = vsel %vm2112, %v2074, %v2134
    %v2151 = vsel %vm2113, %v2077, %v2135
    %v2152 = vsel %vm2114, %v2080, %v2136
    %v2153 = vsel %vm2115, %v2083, %v2137
    %v2154 = vsel %vm2116, %v2086, %v2138
    %v2155 = vsel %vm2117, %v2089, %v2139
    %v2156 = vsel %vm2118, %v2092, %v2140
    %v2157 = vsel %vm2119, %v2095, %v2141
    %v2158 = vsel %vm2120, %v2098, %v2142
    %v2159 = vsel %vm2121, %v2101, %v2143
    %v2160 = vsel %vm2122, %v2104, %v2144
    %v2161 = vld [vmem:[%s27] sm:$0xff]
    %v2162 = vld [vmem:[%s27 + $0x8] sm:$0xff]
    %v2163 = vld [vmem:[%s27 + $0x10] sm:$0xff]
    %v2164 = vld [vmem:[%s27 + $0x18] sm:$0xff]
    %v2165 = vld [vmem:[%s29] sm:$0x1]
    %v2167 = vperm.slane %v2165, 0
    %v2170 = vsel %vm253, %v2145, 0
    %v2173 = vsel %vm253, %v2146, 0
    %v2176 = vsel %vm253, %v2147, 0
    %v2179 = vsel %vm253, %v2148, 0
    %v2182 = vsel %vm253, %v2149, 0
    %v2185 = vsel %vm253, %v2150, 0
    %v2188 = vsel %vm253, %v2151, 0
    %v2191 = vsel %vm253, %v2152, 0
    %v2194 = vsel %vm253, %v2153, 0
    %v2197 = vsel %vm253, %v2154, 0
    %v2200 = vsel %vm253, %v2155, 0
    %v2203 = vsel %vm253, %v2156, 0
    %v2206 = vsel %vm253, %v2157, 0
    %v2209 = vsel %vm253, %v2158, 0
    %v2212 = vsel %vm253, %v2159, 0
    %v2215 = vsel %vm253, %v2160, 0
    %2217 = vmatpush.msra.mxu0 0.0
    %2218 = vmatpush.msra.mxu0 0.0
    %2219 = vmatpush.msra.mxu0 0.0
    %2220 = vmatpush.msra.mxu0 0.0
    %2221 = vmatpush.msra.mxu0 0.0
    %2222 = vmatpush.msra.mxu0 0.0
    %2223 = vmatpush.msra.mxu0 0.0
    %2224 = vmatpush.msra.mxu0 0.0
    %2225 = vmatpush.msra.mxu0 0.0
    %2226 = vmatpush.msra.mxu0 0.0
    %2227 = vmatpush.msra.mxu0 0.0
    %2228 = vmatpush.msra.mxu0 0.0
    %2229 = vmatpush.msra.mxu0 %v2164
    %2230 = vmatpush.msra.mxu0 %v2163
    %2231 = vmatpush.msra.mxu0 %v2162
    %2232 = vmatpush.msra.mxu0 %v2161
    %2233 = vmatmul.f32.gmra.mxu0 %v2170
    %v2234 = vpop.f32.mrf.mxu0
    %v2235 = vadd.f32 %v2167, %v2234
    %2236 = vmatmul.f32.gmra.mxu0 %v2173
    %v2237 = vpop.f32.mrf.mxu0
    %v2238 = vadd.f32 %v2167, %v2237
    %2239 = vmatmul.f32.gmra.mxu0 %v2176
    %v2240 = vpop.f32.mrf.mxu0
    %v2241 = vadd.f32 %v2167, %v2240
    %2242 = vmatmul.f32.gmra.mxu0 %v2179
    %v2243 = vpop.f32.mrf.mxu0
    %v2244 = vadd.f32 %v2167, %v2243
    %2245 = vmatmul.f32.gmra.mxu0 %v2182
    %v2246 = vpop.f32.mrf.mxu0
    %v2247 = vadd.f32 %v2167, %v2246
    %2248 = vmatmul.f32.gmra.mxu0 %v2185
    %v2249 = vpop.f32.mrf.mxu0
    %v2250 = vadd.f32 %v2167, %v2249
    %2251 = vmatmul.f32.gmra.mxu0 %v2188
    %v2252 = vpop.f32.mrf.mxu0
    %v2253 = vadd.f32 %v2167, %v2252
    %2254 = vmatmul.f32.gmra.mxu0 %v2191
    %v2255 = vpop.f32.mrf.mxu0
    %v2256 = vadd.f32 %v2167, %v2255
    %2257 = vmatmul.f32.gmra.mxu0 %v2194
    %v2258 = vpop.f32.mrf.mxu0
    %v2259 = vadd.f32 %v2167, %v2258
    %2260 = vmatmul.f32.gmra.mxu0 %v2197
    %v2261 = vpop.f32.mrf.mxu0
    %v2262 = vadd.f32 %v2167, %v2261
    %2263 = vmatmul.f32.gmra.mxu0 %v2200
    %v2264 = vpop.f32.mrf.mxu0
    %v2265 = vadd.f32 %v2167, %v2264
    %2266 = vmatmul.f32.gmra.mxu0 %v2203
    %v2267 = vpop.f32.mrf.mxu0
    %v2268 = vadd.f32 %v2167, %v2267
    %2269 = vmatmul.f32.gmra.mxu0 %v2206
    %v2270 = vpop.f32.mrf.mxu0
    %v2271 = vadd.f32 %v2167, %v2270
    %2272 = vmatmul.f32.gmra.mxu0 %v2209
    %v2273 = vpop.f32.mrf.mxu0
    %v2274 = vadd.f32 %v2167, %v2273
    %2275 = vmatmul.f32.gmra.mxu0 %v2212
    %v2276 = vpop.f32.mrf.mxu0
    %v2277 = vadd.f32 %v2167, %v2276
    %2278 = vmatmul.f32.gmra.mxu0 %v2215
    %v2279 = vpop.f32.mrf.mxu0
    %v2280 = vadd.f32 %v2167, %v2279
    %2281 = vdwg.mxu0
    %v2282 = vld [vmem:[#allocation3] sm:$0x1]
    %vm2283 = vcmp.ge.f32.partialorder %v2235, 0.0
    %vm2284 = vcmp.ge.f32.partialorder %v2238, 0.0
    %vm2285 = vcmp.ge.f32.partialorder %v2241, 0.0
    %vm2286 = vcmp.ge.f32.partialorder %v2244, 0.0
    %vm2287 = vcmp.ge.f32.partialorder %v2247, 0.0
    %vm2288 = vcmp.ge.f32.partialorder %v2250, 0.0
    %vm2289 = vcmp.ge.f32.partialorder %v2253, 0.0
    %vm2290 = vcmp.ge.f32.partialorder %v2256, 0.0
    %vm2291 = vcmp.ge.f32.partialorder %v2259, 0.0
    %vm2292 = vcmp.ge.f32.partialorder %v2262, 0.0
    %vm2293 = vcmp.ge.f32.partialorder %v2265, 0.0
    %vm2294 = vcmp.ge.f32.partialorder %v2268, 0.0
    %vm2295 = vcmp.ge.f32.partialorder %v2271, 0.0
    %vm2296 = vcmp.ge.f32.partialorder %v2274, 0.0
    %vm2297 = vcmp.ge.f32.partialorder %v2277, 0.0
    %vm2298 = vcmp.ge.f32.partialorder %v2280, 0.0
    %v2300 = vperm.slane %v2282, 0
    %2301 = vset.pattern.permute.xlu0 0
    %2302 = vperm.xlu0 %2301, %v2300
    %v2303 = vpop.permute.xlu0 %2302
    %v2305 = vmul.f32 %v2303, %v2235
    %v2306 = vmul.f32 %v2303, %v2238
    %v2307 = vmul.f32 %v2303, %v2241
    %v2308 = vmul.f32 %v2303, %v2244
    %v2309 = vmul.f32 %v2303, %v2247
    %v2310 = vmul.f32 %v2303, %v2250
    %v2311 = vmul.f32 %v2303, %v2253
    %v2312 = vmul.f32 %v2303, %v2256
    %v2313 = vmul.f32 %v2303, %v2259
    %v2314 = vmul.f32 %v2303, %v2262
    %v2315 = vmul.f32 %v2303, %v2265
    %v2316 = vmul.f32 %v2303, %v2268
    %v2317 = vmul.f32 %v2303, %v2271
    %v2318 = vmul.f32 %v2303, %v2274
    %v2319 = vmul.f32 %v2303, %v2277
    %v2320 = vmul.f32 %v2303, %v2280
    %v2321 = vsel %vm2283, %v2235, %v2305
    %v2322 = vsel %vm2284, %v2238, %v2306
    %v2323 = vsel %vm2285, %v2241, %v2307
    %v2324 = vsel %vm2286, %v2244, %v2308
    %v2325 = vsel %vm2287, %v2247, %v2309
    %v2326 = vsel %vm2288, %v2250, %v2310
    %v2327 = vsel %vm2289, %v2253, %v2311
    %v2328 = vsel %vm2290, %v2256, %v2312
    %v2329 = vsel %vm2291, %v2259, %v2313
    %v2330 = vsel %vm2292, %v2262, %v2314
    %v2331 = vsel %vm2293, %v2265, %v2315
    %v2332 = vsel %vm2294, %v2268, %v2316
    %v2333 = vsel %vm2295, %v2271, %v2317
    %v2334 = vsel %vm2296, %v2274, %v2318
    %v2335 = vsel %vm2297, %v2277, %v2319
    %v2336 = vsel %vm2298, %v2280, %v2320
    %v2337 = vld [vmem:[%s31] sm:$0xff]
    %v2338 = vld [vmem:[%s31 + $0x8] sm:$0xff]
    %v2339 = vld [vmem:[%s31 + $0x10] sm:$0xff]
    %v2340 = vld [vmem:[%s31 + $0x18] sm:$0xff]
    %v2341 = vld [vmem:[%s33] sm:$0x1]
    %v2343 = vperm.slane %v2341, 0
    %v2346 = vsel %vm253, %v2321, 0
    %v2349 = vsel %vm253, %v2322, 0
    %v2352 = vsel %vm253, %v2323, 0
    %v2355 = vsel %vm253, %v2324, 0
    %v2358 = vsel %vm253, %v2325, 0
    %v2361 = vsel %vm253, %v2326, 0
    %v2364 = vsel %vm253, %v2327, 0
    %v2367 = vsel %vm253, %v2328, 0
    %v2370 = vsel %vm253, %v2329, 0
    %v2373 = vsel %vm253, %v2330, 0
    %v2376 = vsel %vm253, %v2331, 0
    %v2379 = vsel %vm253, %v2332, 0
    %v2382 = vsel %vm253, %v2333, 0
    %v2385 = vsel %vm253, %v2334, 0
    %v2388 = vsel %vm253, %v2335, 0
    %v2391 = vsel %vm253, %v2336, 0
    %2393 = vmatpush.msra.mxu0 0.0
    %2394 = vmatpush.msra.mxu0 0.0
    %2395 = vmatpush.msra.mxu0 0.0
    %2396 = vmatpush.msra.mxu0 0.0
    %2397 = vmatpush.msra.mxu0 0.0
    %2398 = vmatpush.msra.mxu0 0.0
    %2399 = vmatpush.msra.mxu0 0.0
    %2400 = vmatpush.msra.mxu0 0.0
    %2401 = vmatpush.msra.mxu0 0.0
    %2402 = vmatpush.msra.mxu0 0.0
    %2403 = vmatpush.msra.mxu0 0.0
    %2404 = vmatpush.msra.mxu0 0.0
    %2405 = vmatpush.msra.mxu0 %v2340
    %2406 = vmatpush.msra.mxu0 %v2339
    %2407 = vmatpush.msra.mxu0 %v2338
    %2408 = vmatpush.msra.mxu0 %v2337
    %2409 = vmatmul.f32.gmra.mxu0 %v2346
    %v2410 = vpop.f32.mrf.mxu0
    %v2411 = vadd.f32 %v2343, %v2410
    %2412 = vmatmul.f32.gmra.mxu0 %v2349
    %v2413 = vpop.f32.mrf.mxu0
    %v2414 = vadd.f32 %v2343, %v2413
    %2415 = vmatmul.f32.gmra.mxu0 %v2352
    %v2416 = vpop.f32.mrf.mxu0
    %v2417 = vadd.f32 %v2343, %v2416
    %2418 = vmatmul.f32.gmra.mxu0 %v2355
    %v2419 = vpop.f32.mrf.mxu0
    %v2420 = vadd.f32 %v2343, %v2419
    %2421 = vmatmul.f32.gmra.mxu0 %v2358
    %v2422 = vpop.f32.mrf.mxu0
    %v2423 = vadd.f32 %v2343, %v2422
    %2424 = vmatmul.f32.gmra.mxu0 %v2361
    %v2425 = vpop.f32.mrf.mxu0
    %v2426 = vadd.f32 %v2343, %v2425
    %2427 = vmatmul.f32.gmra.mxu0 %v2364
    %v2428 = vpop.f32.mrf.mxu0
    %v2429 = vadd.f32 %v2343, %v2428
    %2430 = vmatmul.f32.gmra.mxu0 %v2367
    %v2431 = vpop.f32.mrf.mxu0
    %v2432 = vadd.f32 %v2343, %v2431
    %2433 = vmatmul.f32.gmra.mxu0 %v2370
    %v2434 = vpop.f32.mrf.mxu0
    %v2435 = vadd.f32 %v2343, %v2434
    %2436 = vmatmul.f32.gmra.mxu0 %v2373
    %v2437 = vpop.f32.mrf.mxu0
    %v2438 = vadd.f32 %v2343, %v2437
    %2439 = vmatmul.f32.gmra.mxu0 %v2376
    %v2440 = vpop.f32.mrf.mxu0
    %v2441 = vadd.f32 %v2343, %v2440
    %2442 = vmatmul.f32.gmra.mxu0 %v2379
    %v2443 = vpop.f32.mrf.mxu0
    %v2444 = vadd.f32 %v2343, %v2443
    %2445 = vmatmul.f32.gmra.mxu0 %v2382
    %v2446 = vpop.f32.mrf.mxu0
    %v2447 = vadd.f32 %v2343, %v2446
    %2448 = vmatmul.f32.gmra.mxu0 %v2385
    %v2449 = vpop.f32.mrf.mxu0
    %v2450 = vadd.f32 %v2343, %v2449
    %2451 = vmatmul.f32.gmra.mxu0 %v2388
    %v2452 = vpop.f32.mrf.mxu0
    %v2453 = vadd.f32 %v2343, %v2452
    %2454 = vmatmul.f32.gmra.mxu0 %v2391
    %v2455 = vpop.f32.mrf.mxu0
    %v2456 = vadd.f32 %v2343, %v2455
    %2457 = vdwg.mxu0
    %v2458 = vld [vmem:[%s5] sm:$0xff]
    %v2459 = vld [vmem:[%s5 + $0x8] sm:$0xff]
    %v2460 = vld [vmem:[%s5 + $0x10] sm:$0xff]
    %v2461 = vld [vmem:[%s5 + $0x18] sm:$0xff]
    %v2462 = vld [vmem:[%s5 + $0x20] sm:$0xff]
    %v2463 = vld [vmem:[%s5 + $0x28] sm:$0xff]
    %v2464 = vld [vmem:[%s5 + $0x30] sm:$0xff]
    %v2465 = vld [vmem:[%s5 + $0x38] sm:$0xff]
    %v2466 = vld [vmem:[%s5 + $0x40] sm:$0xff]
    %v2467 = vld [vmem:[%s5 + $0x48] sm:$0xff]
    %v2468 = vld [vmem:[%s5 + $0x50] sm:$0xff]
    %v2469 = vld [vmem:[%s5 + $0x58] sm:$0xff]
    %v2470 = vld [vmem:[%s5 + $0x60] sm:$0xff]
    %v2471 = vld [vmem:[%s5 + $0x68] sm:$0xff]
    %v2472 = vld [vmem:[%s5 + $0x70] sm:$0xff]
    %v2473 = vld [vmem:[%s5 + $0x78] sm:$0xff]
    %v2474 = vmul.f32 %v2411, 0.5
    %v2475 = vmul.f32 %v2414, 0.5
    %v2476 = vmul.f32 %v2417, 0.5
    %v2477 = vmul.f32 %v2420, 0.5
    %v2478 = vmul.f32 %v2423, 0.5
    %v2479 = vmul.f32 %v2426, 0.5
    %v2480 = vmul.f32 %v2429, 0.5
    %v2481 = vmul.f32 %v2432, 0.5
    %v2482 = vmul.f32 %v2435, 0.5
    %v2483 = vmul.f32 %v2438, 0.5
    %v2484 = vmul.f32 %v2441, 0.5
    %v2485 = vmul.f32 %v2444, 0.5
    %v2486 = vmul.f32 %v2447, 0.5
    %v2487 = vmul.f32 %v2450, 0.5
    %v2488 = vmul.f32 %v2453, 0.5
    %v2489 = vmul.f32 %v2456, 0.5
    %v2490 = vmul.f32 %v2474, 1.442695
    %v2491 = vpow.pop %v2490
    %v2492 = vmul.f32 %v2475, 1.442695
    %v2493 = vpow.pop %v2492
    %v2494 = vmul.f32 %v2476, 1.442695
    %v2495 = vpow.pop %v2494
    %v2496 = vmul.f32 %v2477, 1.442695
    %v2497 = vpow.pop %v2496
    %v2498 = vmul.f32 %v2478, 1.442695
    %v2499 = vpow.pop %v2498
    %v2500 = vmul.f32 %v2479, 1.442695
    %v2501 = vpow.pop %v2500
    %v2502 = vmul.f32 %v2480, 1.442695
    %v2503 = vpow.pop %v2502
    %v2504 = vmul.f32 %v2481, 1.442695
    %v2505 = vpow.pop %v2504
    %v2506 = vmul.f32 %v2482, 1.442695
    %v2507 = vpow.pop %v2506
    %v2508 = vmul.f32 %v2483, 1.442695
    %v2509 = vpow.pop %v2508
    %v2510 = vmul.f32 %v2484, 1.442695
    %v2511 = vpow.pop %v2510
    %v2512 = vmul.f32 %v2485, 1.442695
    %v2513 = vpow.pop %v2512
    %v2514 = vmul.f32 %v2486, 1.442695
    %v2515 = vpow.pop %v2514
    %v2516 = vmul.f32 %v2487, 1.442695
    %v2517 = vpow.pop %v2516
    %v2518 = vmul.f32 %v2488, 1.442695
    %v2519 = vpow.pop %v2518
    %v2520 = vmul.f32 %v2489, 1.442695
    %v2521 = vpow.pop %v2520
    %2538 = vrot.lane.b32.xlu0 %v2491, 120
    %v2539 = vpop.permute.xlu0 %2538
    %2540 = vrot.lane.b32.xlu0 %v2493, 120
    %v2541 = vpop.permute.xlu0 %2540
    %2542 = vrot.lane.b32.xlu0 %v2495, 120
    %v2543 = vpop.permute.xlu0 %2542
    %2544 = vrot.lane.b32.xlu0 %v2497, 120
    %v2545 = vpop.permute.xlu0 %2544
    %2546 = vrot.lane.b32.xlu0 %v2499, 120
    %v2547 = vpop.permute.xlu0 %2546
    %2548 = vrot.lane.b32.xlu0 %v2501, 120
    %v2549 = vpop.permute.xlu0 %2548
    %2550 = vrot.lane.b32.xlu0 %v2503, 120
    %v2551 = vpop.permute.xlu0 %2550
    %2552 = vrot.lane.b32.xlu0 %v2505, 120
    %v2553 = vpop.permute.xlu0 %2552
    %2554 = vrot.lane.b32.xlu0 %v2507, 120
    %v2555 = vpop.permute.xlu0 %2554
    %2556 = vrot.lane.b32.xlu0 %v2509, 120
    %v2557 = vpop.permute.xlu0 %2556
    %2558 = vrot.lane.b32.xlu0 %v2511, 120
    %v2559 = vpop.permute.xlu0 %2558
    %2560 = vrot.lane.b32.xlu0 %v2513, 120
    %v2561 = vpop.permute.xlu0 %2560
    %2562 = vrot.lane.b32.xlu0 %v2515, 120
    %v2563 = vpop.permute.xlu0 %2562
    %2564 = vrot.lane.b32.xlu0 %v2517, 120
    %v2565 = vpop.permute.xlu0 %2564
    %2566 = vrot.lane.b32.xlu0 %v2519, 120
    %v2567 = vpop.permute.xlu0 %2566
    %2568 = vrot.lane.b32.xlu0 %v2521, 120
    %v2569 = vpop.permute.xlu0 %2568
    %v2586 = vmul.f32 %v2458, %v2539
    %v2587 = vmul.f32 %v2459, %v2541
    %v2588 = vmul.f32 %v2460, %v2543
    %v2589 = vmul.f32 %v2461, %v2545
    %v2590 = vmul.f32 %v2462, %v2547
    %v2591 = vmul.f32 %v2463, %v2549
    %v2592 = vmul.f32 %v2464, %v2551
    %v2593 = vmul.f32 %v2465, %v2553
    %v2594 = vmul.f32 %v2466, %v2555
    %v2595 = vmul.f32 %v2467, %v2557
    %v2596 = vmul.f32 %v2468, %v2559
    %v2597 = vmul.f32 %v2469, %v2561
    %v2598 = vmul.f32 %v2470, %v2563
    %v2599 = vmul.f32 %v2471, %v2565
    %v2600 = vmul.f32 %v2472, %v2567
    %v2601 = vmul.f32 %v2473, %v2569
    %v2602 = vadd.f32 %v2411, %v2586
    %v2603 = vadd.f32 %v2414, %v2587
    %v2604 = vadd.f32 %v2417, %v2588
    %v2605 = vadd.f32 %v2420, %v2589
    %v2606 = vadd.f32 %v2423, %v2590
    %v2607 = vadd.f32 %v2426, %v2591
    %v2608 = vadd.f32 %v2429, %v2592
    %v2609 = vadd.f32 %v2432, %v2593
    %v2610 = vadd.f32 %v2435, %v2594
    %v2611 = vadd.f32 %v2438, %v2595
    %v2612 = vadd.f32 %v2441, %v2596
    %v2613 = vadd.f32 %v2444, %v2597
    %v2614 = vadd.f32 %v2447, %v2598
    %v2615 = vadd.f32 %v2450, %v2599
    %v2616 = vadd.f32 %v2453, %v2600
    %v2617 = vadd.f32 %v2456, %v2601
    %v2618 = vld [vmem:[%s39] sm:$0xff]
    %v2619 = vld [vmem:[%s41] sm:$0x1]
    %v2621 = vperm.slane %v2619, 0
    %vm2623 = vcmask 64512
    %v2625 = vsel %vm2623, %v2602, 0
    %v2628 = vsel %vm2623, %v2603, 0
    %v2631 = vsel %vm2623, %v2604, 0
    %v2634 = vsel %vm2623, %v2605, 0
    %v2637 = vsel %vm2623, %v2606, 0
    %v2640 = vsel %vm2623, %v2607, 0
    %v2643 = vsel %vm2623, %v2608, 0
    %v2646 = vsel %vm2623, %v2609, 0
    %v2649 = vsel %vm2623, %v2610, 0
    %v2652 = vsel %vm2623, %v2611, 0
    %v2655 = vsel %vm2623, %v2612, 0
    %v2658 = vsel %vm2623, %v2613, 0
    %v2661 = vsel %vm2623, %v2614, 0
    %v2664 = vsel %vm2623, %v2615, 0
    %v2667 = vsel %vm2623, %v2616, 0
    %v2670 = vsel %vm2623, %v2617, 0
    %2672 = vmatpush.msra.mxu0 0.0
    %2673 = vmatpush.msra.mxu0 0.0
    %2674 = vmatpush.msra.mxu0 0.0
    %2675 = vmatpush.msra.mxu0 0.0
    %2676 = vmatpush.msra.mxu0 0.0
    %2677 = vmatpush.msra.mxu0 0.0
    %2678 = vmatpush.msra.mxu0 0.0
    %2679 = vmatpush.msra.mxu0 0.0
    %2680 = vmatpush.msra.mxu0 0.0
    %2681 = vmatpush.msra.mxu0 0.0
    %2682 = vmatpush.msra.mxu0 0.0
    %2683 = vmatpush.msra.mxu0 0.0
    %2684 = vmatpush.msra.mxu0 0.0
    %2685 = vmatpush.msra.mxu0 0.0
    %2686 = vmatpush.msra.mxu0 0.0
    %2687 = vmatpush.msra.mxu0 %v2618
    %2688 = vmatmul.f32.gmra.mxu0 %v2625
    %v2689 = vpop.f32.mrf.mxu0
    %v2690 = vadd.f32 %v2621, %v2689
    %2691 = vmatmul.f32.gmra.mxu0 %v2628
    %v2692 = vpop.f32.mrf.mxu0
    %v2693 = vadd.f32 %v2621, %v2692
    %2694 = vmatmul.f32.gmra.mxu0 %v2631
    %v2695 = vpop.f32.mrf.mxu0
    %v2696 = vadd.f32 %v2621, %v2695
    %2697 = vmatmul.f32.gmra.mxu0 %v2634
    %v2698 = vpop.f32.mrf.mxu0
    %v2699 = vadd.f32 %v2621, %v2698
    %2700 = vmatmul.f32.gmra.mxu0 %v2637
    %v2701 = vpop.f32.mrf.mxu0
    %v2702 = vadd.f32 %v2621, %v2701
    %2703 = vmatmul.f32.gmra.mxu0 %v2640
    %v2704 = vpop.f32.mrf.mxu0
    %v2705 = vadd.f32 %v2621, %v2704
    %2706 = vmatmul.f32.gmra.mxu0 %v2643
    %v2707 = vpop.f32.mrf.mxu0
    %v2708 = vadd.f32 %v2621, %v2707
    %2709 = vmatmul.f32.gmra.mxu0 %v2646
    %v2710 = vpop.f32.mrf.mxu0
    %v2711 = vadd.f32 %v2621, %v2710
    %2712 = vmatmul.f32.gmra.mxu0 %v2649
    %v2713 = vpop.f32.mrf.mxu0
    %v2714 = vadd.f32 %v2621, %v2713
    %2715 = vmatmul.f32.gmra.mxu0 %v2652
    %v2716 = vpop.f32.mrf.mxu0
    %v2717 = vadd.f32 %v2621, %v2716
    %2718 = vmatmul.f32.gmra.mxu0 %v2655
    %v2719 = vpop.f32.mrf.mxu0
    %v2720 = vadd.f32 %v2621, %v2719
    %2721 = vmatmul.f32.gmra.mxu0 %v2658
    %v2722 = vpop.f32.mrf.mxu0
    %v2723 = vadd.f32 %v2621, %v2722
    %2724 = vmatmul.f32.gmra.mxu0 %v2661
    %v2725 = vpop.f32.mrf.mxu0
    %v2726 = vadd.f32 %v2621, %v2725
    %2727 = vmatmul.f32.gmra.mxu0 %v2664
    %v2728 = vpop.f32.mrf.mxu0
    %v2729 = vadd.f32 %v2621, %v2728
    %2730 = vmatmul.f32.gmra.mxu0 %v2667
    %v2731 = vpop.f32.mrf.mxu0
    %v2732 = vadd.f32 %v2621, %v2731
    %2733 = vmatmul.f32.gmra.mxu0 %v2670
    %v2734 = vpop.f32.mrf.mxu0
    %v2735 = vadd.f32 %v2621, %v2734
    %2736 = vdwg.mxu0
    %v2737 = vld [vmem:[#allocation4] sm:$0x1]
    %vm2738 = vcmp.ge.f32.partialorder %v2690, 0.0
    %vm2739 = vcmp.ge.f32.partialorder %v2693, 0.0
    %vm2740 = vcmp.ge.f32.partialorder %v2696, 0.0
    %vm2741 = vcmp.ge.f32.partialorder %v2699, 0.0
    %vm2742 = vcmp.ge.f32.partialorder %v2702, 0.0
    %vm2743 = vcmp.ge.f32.partialorder %v2705, 0.0
    %vm2744 = vcmp.ge.f32.partialorder %v2708, 0.0
    %vm2745 = vcmp.ge.f32.partialorder %v2711, 0.0
    %vm2746 = vcmp.ge.f32.partialorder %v2714, 0.0
    %vm2747 = vcmp.ge.f32.partialorder %v2717, 0.0
    %vm2748 = vcmp.ge.f32.partialorder %v2720, 0.0
    %vm2749 = vcmp.ge.f32.partialorder %v2723, 0.0
    %vm2750 = vcmp.ge.f32.partialorder %v2726, 0.0
    %vm2751 = vcmp.ge.f32.partialorder %v2729, 0.0
    %vm2752 = vcmp.ge.f32.partialorder %v2732, 0.0
    %vm2753 = vcmp.ge.f32.partialorder %v2735, 0.0
    %v2755 = vperm.slane %v2737, 0
    %2756 = vset.pattern.permute.xlu0 0
    %2757 = vperm.xlu0 %2756, %v2755
    %v2758 = vpop.permute.xlu0 %2757
    %v2760 = vmul.f32 %v2758, %v2690
    %v2761 = vmul.f32 %v2758, %v2693
    %v2762 = vmul.f32 %v2758, %v2696
    %v2763 = vmul.f32 %v2758, %v2699
    %v2764 = vmul.f32 %v2758, %v2702
    %v2765 = vmul.f32 %v2758, %v2705
    %v2766 = vmul.f32 %v2758, %v2708
    %v2767 = vmul.f32 %v2758, %v2711
    %v2768 = vmul.f32 %v2758, %v2714
    %v2769 = vmul.f32 %v2758, %v2717
    %v2770 = vmul.f32 %v2758, %v2720
    %v2771 = vmul.f32 %v2758, %v2723
    %v2772 = vmul.f32 %v2758, %v2726
    %v2773 = vmul.f32 %v2758, %v2729
    %v2774 = vmul.f32 %v2758, %v2732
    %v2775 = vmul.f32 %v2758, %v2735
    %v2776 = vsel %vm2738, %v2690, %v2760
    %v2777 = vsel %vm2739, %v2693, %v2761
    %v2778 = vsel %vm2740, %v2696, %v2762
    %v2779 = vsel %vm2741, %v2699, %v2763
    %v2780 = vsel %vm2742, %v2702, %v2764
    %v2781 = vsel %vm2743, %v2705, %v2765
    %v2782 = vsel %vm2744, %v2708, %v2766
    %v2783 = vsel %vm2745, %v2711, %v2767
    %v2784 = vsel %vm2746, %v2714, %v2768
    %v2785 = vsel %vm2747, %v2717, %v2769
    %v2786 = vsel %vm2748, %v2720, %v2770
    %v2787 = vsel %vm2749, %v2723, %v2771
    %v2788 = vsel %vm2750, %v2726, %v2772
    %v2789 = vsel %vm2751, %v2729, %v2773
    %v2790 = vsel %vm2752, %v2732, %v2774
    %v2791 = vsel %vm2753, %v2735, %v2775
    %v2792 = vld [vmem:[%s43] sm:$0xff]
    %v2793 = vld [vmem:[%s43 + $0x8] sm:$0xff]
    %v2794 = vld [vmem:[%s43 + $0x10] sm:$0xff]
    %v2795 = vld [vmem:[%s43 + $0x18] sm:$0xff]
    %v2796 = vld [vmem:[%s45] sm:$0x1]
    %v2798 = vperm.slane %v2796, 0
    %v2801 = vsel %vm253, %v2776, 0
    %v2804 = vsel %vm253, %v2777, 0
    %v2807 = vsel %vm253, %v2778, 0
    %v2810 = vsel %vm253, %v2779, 0
    %v2813 = vsel %vm253, %v2780, 0
    %v2816 = vsel %vm253, %v2781, 0
    %v2819 = vsel %vm253, %v2782, 0
    %v2822 = vsel %vm253, %v2783, 0
    %v2825 = vsel %vm253, %v2784, 0
    %v2828 = vsel %vm253, %v2785, 0
    %v2831 = vsel %vm253, %v2786, 0
    %v2834 = vsel %vm253, %v2787, 0
    %v2837 = vsel %vm253, %v2788, 0
    %v2840 = vsel %vm253, %v2789, 0
    %v2843 = vsel %vm253, %v2790, 0
    %v2846 = vsel %vm253, %v2791, 0
    %2848 = vmatpush.msra.mxu0 0.0
    %2849 = vmatpush.msra.mxu0 0.0
    %2850 = vmatpush.msra.mxu0 0.0
    %2851 = vmatpush.msra.mxu0 0.0
    %2852 = vmatpush.msra.mxu0 0.0
    %2853 = vmatpush.msra.mxu0 0.0
    %2854 = vmatpush.msra.mxu0 0.0
    %2855 = vmatpush.msra.mxu0 0.0
    %2856 = vmatpush.msra.mxu0 0.0
    %2857 = vmatpush.msra.mxu0 0.0
    %2858 = vmatpush.msra.mxu0 0.0
    %2859 = vmatpush.msra.mxu0 0.0
    %2860 = vmatpush.msra.mxu0 %v2795
    %2861 = vmatpush.msra.mxu0 %v2794
    %2862 = vmatpush.msra.mxu0 %v2793
    %2863 = vmatpush.msra.mxu0 %v2792
    %2864 = vmatmul.f32.gmra.mxu0 %v2801
    %v2865 = vpop.f32.mrf.mxu0
    %v2866 = vadd.f32 %v2798, %v2865
    %2867 = vmatmul.f32.gmra.mxu0 %v2804
    %v2868 = vpop.f32.mrf.mxu0
    %v2869 = vadd.f32 %v2798, %v2868
    %2870 = vmatmul.f32.gmra.mxu0 %v2807
    %v2871 = vpop.f32.mrf.mxu0
    %v2872 = vadd.f32 %v2798, %v2871
    %2873 = vmatmul.f32.gmra.mxu0 %v2810
    %v2874 = vpop.f32.mrf.mxu0
    %v2875 = vadd.f32 %v2798, %v2874
    %2876 = vmatmul.f32.gmra.mxu0 %v2813
    %v2877 = vpop.f32.mrf.mxu0
    %v2878 = vadd.f32 %v2798, %v2877
    %2879 = vmatmul.f32.gmra.mxu0 %v2816
    %v2880 = vpop.f32.mrf.mxu0
    %v2881 = vadd.f32 %v2798, %v2880
    %2882 = vmatmul.f32.gmra.mxu0 %v2819
    %v2883 = vpop.f32.mrf.mxu0
    %v2884 = vadd.f32 %v2798, %v2883
    %2885 = vmatmul.f32.gmra.mxu0 %v2822
    %v2886 = vpop.f32.mrf.mxu0
    %v2887 = vadd.f32 %v2798, %v2886
    %2888 = vmatmul.f32.gmra.mxu0 %v2825
    %v2889 = vpop.f32.mrf.mxu0
    %v2890 = vadd.f32 %v2798, %v2889
    %2891 = vmatmul.f32.gmra.mxu0 %v2828
    %v2892 = vpop.f32.mrf.mxu0
    %v2893 = vadd.f32 %v2798, %v2892
    %2894 = vmatmul.f32.gmra.mxu0 %v2831
    %v2895 = vpop.f32.mrf.mxu0
    %v2896 = vadd.f32 %v2798, %v2895
    %2897 = vmatmul.f32.gmra.mxu0 %v2834
    %v2898 = vpop.f32.mrf.mxu0
    %v2899 = vadd.f32 %v2798, %v2898
    %2900 = vmatmul.f32.gmra.mxu0 %v2837
    %v2901 = vpop.f32.mrf.mxu0
    %v2902 = vadd.f32 %v2798, %v2901
    %2903 = vmatmul.f32.gmra.mxu0 %v2840
    %v2904 = vpop.f32.mrf.mxu0
    %v2905 = vadd.f32 %v2798, %v2904
    %2906 = vmatmul.f32.gmra.mxu0 %v2843
    %v2907 = vpop.f32.mrf.mxu0
    %v2908 = vadd.f32 %v2798, %v2907
    %2909 = vmatmul.f32.gmra.mxu0 %v2846
    %v2910 = vpop.f32.mrf.mxu0
    %v2911 = vadd.f32 %v2798, %v2910
    %2912 = vdwg.mxu0
    %v2913 = vld [vmem:[#allocation5] sm:$0x1]
    %vm2914 = vcmp.ge.f32.partialorder %v2866, 0.0
    %vm2915 = vcmp.ge.f32.partialorder %v2869, 0.0
    %vm2916 = vcmp.ge.f32.partialorder %v2872, 0.0
    %vm2917 = vcmp.ge.f32.partialorder %v2875, 0.0
    %vm2918 = vcmp.ge.f32.partialorder %v2878, 0.0
    %vm2919 = vcmp.ge.f32.partialorder %v2881, 0.0
    %vm2920 = vcmp.ge.f32.partialorder %v2884, 0.0
    %vm2921 = vcmp.ge.f32.partialorder %v2887, 0.0
    %vm2922 = vcmp.ge.f32.partialorder %v2890, 0.0
    %vm2923 = vcmp.ge.f32.partialorder %v2893, 0.0
    %vm2924 = vcmp.ge.f32.partialorder %v2896, 0.0
    %vm2925 = vcmp.ge.f32.partialorder %v2899, 0.0
    %vm2926 = vcmp.ge.f32.partialorder %v2902, 0.0
    %vm2927 = vcmp.ge.f32.partialorder %v2905, 0.0
    %vm2928 = vcmp.ge.f32.partialorder %v2908, 0.0
    %vm2929 = vcmp.ge.f32.partialorder %v2911, 0.0
    %v2931 = vperm.slane %v2913, 0
    %2932 = vset.pattern.permute.xlu0 0
    %2933 = vperm.xlu0 %2932, %v2931
    %v2934 = vpop.permute.xlu0 %2933
    %v2936 = vmul.f32 %v2934, %v2866
    %v2937 = vmul.f32 %v2934, %v2869
    %v2938 = vmul.f32 %v2934, %v2872
    %v2939 = vmul.f32 %v2934, %v2875
    %v2940 = vmul.f32 %v2934, %v2878
    %v2941 = vmul.f32 %v2934, %v2881
    %v2942 = vmul.f32 %v2934, %v2884
    %v2943 = vmul.f32 %v2934, %v2887
    %v2944 = vmul.f32 %v2934, %v2890
    %v2945 = vmul.f32 %v2934, %v2893
    %v2946 = vmul.f32 %v2934, %v2896
    %v2947 = vmul.f32 %v2934, %v2899
    %v2948 = vmul.f32 %v2934, %v2902
    %v2949 = vmul.f32 %v2934, %v2905
    %v2950 = vmul.f32 %v2934, %v2908
    %v2951 = vmul.f32 %v2934, %v2911
    %v2952 = vsel %vm2914, %v2866, %v2936
    %v2953 = vsel %vm2915, %v2869, %v2937
    %v2954 = vsel %vm2916, %v2872, %v2938
    %v2955 = vsel %vm2917, %v2875, %v2939
    %v2956 = vsel %vm2918, %v2878, %v2940
    %v2957 = vsel %vm2919, %v2881, %v2941
    %v2958 = vsel %vm2920, %v2884, %v2942
    %v2959 = vsel %vm2921, %v2887, %v2943
    %v2960 = vsel %vm2922, %v2890, %v2944
    %v2961 = vsel %vm2923, %v2893, %v2945
    %v2962 = vsel %vm2924, %v2896, %v2946
    %v2963 = vsel %vm2925, %v2899, %v2947
    %v2964 = vsel %vm2926, %v2902, %v2948
    %v2965 = vsel %vm2927, %v2905, %v2949
    %v2966 = vsel %vm2928, %v2908, %v2950
    %v2967 = vsel %vm2929, %v2911, %v2951
    %v2968 = vld [vmem:[%s47] sm:$0xff]
    %v2969 = vld [vmem:[%s47 + $0x8] sm:$0xff]
    %v2970 = vld [vmem:[%s47 + $0x10] sm:$0xff]
    %v2971 = vld [vmem:[%s47 + $0x18] sm:$0xff]
    %v2972 = vld [vmem:[%s49] sm:$0x1]
    %v2974 = vperm.slane %v2972, 0
    %v2977 = vsel %vm253, %v2952, 0
    %v2980 = vsel %vm253, %v2953, 0
    %v2983 = vsel %vm253, %v2954, 0
    %v2986 = vsel %vm253, %v2955, 0
    %v2989 = vsel %vm253, %v2956, 0
    %v2992 = vsel %vm253, %v2957, 0
    %v2995 = vsel %vm253, %v2958, 0
    %v2998 = vsel %vm253, %v2959, 0
    %v3001 = vsel %vm253, %v2960, 0
    %v3004 = vsel %vm253, %v2961, 0
    %v3007 = vsel %vm253, %v2962, 0
    %v3010 = vsel %vm253, %v2963, 0
    %v3013 = vsel %vm253, %v2964, 0
    %v3016 = vsel %vm253, %v2965, 0
    %v3019 = vsel %vm253, %v2966, 0
    %v3022 = vsel %vm253, %v2967, 0
    %3024 = vmatpush.msra.mxu0 0.0
    %3025 = vmatpush.msra.mxu0 0.0
    %3026 = vmatpush.msra.mxu0 0.0
    %3027 = vmatpush.msra.mxu0 0.0
    %3028 = vmatpush.msra.mxu0 0.0
    %3029 = vmatpush.msra.mxu0 0.0
    %3030 = vmatpush.msra.mxu0 0.0
    %3031 = vmatpush.msra.mxu0 0.0
    %3032 = vmatpush.msra.mxu0 0.0
    %3033 = vmatpush.msra.mxu0 0.0
    %3034 = vmatpush.msra.mxu0 0.0
    %3035 = vmatpush.msra.mxu0 0.0
    %3036 = vmatpush.msra.mxu0 %v2971
    %3037 = vmatpush.msra.mxu0 %v2970
    %3038 = vmatpush.msra.mxu0 %v2969
    %3039 = vmatpush.msra.mxu0 %v2968
    %3040 = vmatmul.f32.gmra.mxu0 %v2977
    %v3041 = vpop.f32.mrf.mxu0
    %v3042 = vadd.f32 %v2974, %v3041
    %3043 = vmatmul.f32.gmra.mxu0 %v2980
    %v3044 = vpop.f32.mrf.mxu0
    %v3045 = vadd.f32 %v2974, %v3044
    %3046 = vmatmul.f32.gmra.mxu0 %v2983
    %v3047 = vpop.f32.mrf.mxu0
    %v3048 = vadd.f32 %v2974, %v3047
    %3049 = vmatmul.f32.gmra.mxu0 %v2986
    %v3050 = vpop.f32.mrf.mxu0
    %v3051 = vadd.f32 %v2974, %v3050
    %3052 = vmatmul.f32.gmra.mxu0 %v2989
    %v3053 = vpop.f32.mrf.mxu0
    %v3054 = vadd.f32 %v2974, %v3053
    %3055 = vmatmul.f32.gmra.mxu0 %v2992
    %v3056 = vpop.f32.mrf.mxu0
    %v3057 = vadd.f32 %v2974, %v3056
    %3058 = vmatmul.f32.gmra.mxu0 %v2995
    %v3059 = vpop.f32.mrf.mxu0
    %v3060 = vadd.f32 %v2974, %v3059
    %3061 = vmatmul.f32.gmra.mxu0 %v2998
    %v3062 = vpop.f32.mrf.mxu0
    %v3063 = vadd.f32 %v2974, %v3062
    %3064 = vmatmul.f32.gmra.mxu0 %v3001
    %v3065 = vpop.f32.mrf.mxu0
    %v3066 = vadd.f32 %v2974, %v3065
    %3067 = vmatmul.f32.gmra.mxu0 %v3004
    %v3068 = vpop.f32.mrf.mxu0
    %v3069 = vadd.f32 %v2974, %v3068
    %3070 = vmatmul.f32.gmra.mxu0 %v3007
    %v3071 = vpop.f32.mrf.mxu0
    %v3072 = vadd.f32 %v2974, %v3071
    %3073 = vmatmul.f32.gmra.mxu0 %v3010
    %v3074 = vpop.f32.mrf.mxu0
    %v3075 = vadd.f32 %v2974, %v3074
    %3076 = vmatmul.f32.gmra.mxu0 %v3013
    %v3077 = vpop.f32.mrf.mxu0
    %v3078 = vadd.f32 %v2974, %v3077
    %3079 = vmatmul.f32.gmra.mxu0 %v3016
    %v3080 = vpop.f32.mrf.mxu0
    %v3081 = vadd.f32 %v2974, %v3080
    %3082 = vmatmul.f32.gmra.mxu0 %v3019
    %v3083 = vpop.f32.mrf.mxu0
    %v3084 = vadd.f32 %v2974, %v3083
    %3085 = vmatmul.f32.gmra.mxu0 %v3022
    %v3086 = vpop.f32.mrf.mxu0
    %v3087 = vadd.f32 %v2974, %v3086
    %3088 = vdwg.mxu0
    %v3089 = vsub.f32 0.0, %v3042
    %v3090 = vsub.f32 0.0, %v3045
    %v3091 = vsub.f32 0.0, %v3048
    %v3092 = vsub.f32 0.0, %v3051
    %v3093 = vsub.f32 0.0, %v3054
    %v3094 = vsub.f32 0.0, %v3057
    %v3095 = vsub.f32 0.0, %v3060
    %v3096 = vsub.f32 0.0, %v3063
    %v3097 = vsub.f32 0.0, %v3066
    %v3098 = vsub.f32 0.0, %v3069
    %v3099 = vsub.f32 0.0, %v3072
    %v3100 = vsub.f32 0.0, %v3075
    %v3101 = vsub.f32 0.0, %v3078
    %v3102 = vsub.f32 0.0, %v3081
    %v3103 = vsub.f32 0.0, %v3084
    %v3104 = vsub.f32 0.0, %v3087
    %v3105 = vmul.f32 %v3089, 1.442695
    %v3106 = vpow.pop %v3105
    %v3107 = vmul.f32 %v3090, 1.442695
    %v3108 = vpow.pop %v3107
    %v3109 = vmul.f32 %v3091, 1.442695
    %v3110 = vpow.pop %v3109
    %v3111 = vmul.f32 %v3092, 1.442695
    %v3112 = vpow.pop %v3111
    %v3113 = vmul.f32 %v3093, 1.442695
    %v3114 = vpow.pop %v3113
    %v3115 = vmul.f32 %v3094, 1.442695
    %v3116 = vpow.pop %v3115
    %v3117 = vmul.f32 %v3095, 1.442695
    %v3118 = vpow.pop %v3117
    %v3119 = vmul.f32 %v3096, 1.442695
    %v3120 = vpow.pop %v3119
    %v3121 = vmul.f32 %v3097, 1.442695
    %v3122 = vpow.pop %v3121
    %v3123 = vmul.f32 %v3098, 1.442695
    %v3124 = vpow.pop %v3123
    %v3125 = vmul.f32 %v3099, 1.442695
    %v3126 = vpow.pop %v3125
    %v3127 = vmul.f32 %v3100, 1.442695
    %v3128 = vpow.pop %v3127
    %v3129 = vmul.f32 %v3101, 1.442695
    %v3130 = vpow.pop %v3129
    %v3131 = vmul.f32 %v3102, 1.442695
    %v3132 = vpow.pop %v3131
    %v3133 = vmul.f32 %v3103, 1.442695
    %v3134 = vpow.pop %v3133
    %v3135 = vmul.f32 %v3104, 1.442695
    %v3136 = vpow.pop %v3135
    %v3137 = vadd.f32 %v3106, 1.0
    %v3138 = vadd.f32 %v3108, 1.0
    %v3139 = vadd.f32 %v3110, 1.0
    %v3140 = vadd.f32 %v3112, 1.0
    %v3141 = vadd.f32 %v3114, 1.0
    %v3142 = vadd.f32 %v3116, 1.0
    %v3143 = vadd.f32 %v3118, 1.0
    %v3144 = vadd.f32 %v3120, 1.0
    %v3145 = vadd.f32 %v3122, 1.0
    %v3146 = vadd.f32 %v3124, 1.0
    %v3147 = vadd.f32 %v3126, 1.0
    %v3148 = vadd.f32 %v3128, 1.0
    %v3149 = vadd.f32 %v3130, 1.0
    %v3150 = vadd.f32 %v3132, 1.0
    %v3151 = vadd.f32 %v3134, 1.0
    %v3152 = vadd.f32 %v3136, 1.0
    %v3153 = vrcp.pop %v3137
    %v3154 = vmul.f32 %v3137, %v3153
    %v3155 = vsub.f32 1.0, %v3154
    %v3156 = vmul.f32 %v3153, %v3155
    %v3157 = vadd.f32 %v3153, %v3156
    %vm3158 = vweird.f32 %v3137
    %vm3159 = vweird.f32 %v3153
    %vm3160 = vmor %vm3158, %vm3159
    %v3161 = vsel %vm3160, %v3153, %v3157
    %v3162 = vand.u32 2147483647, %v3137
    %vm3163 = vcmp.eq.f32.partialorder %v3162, 8.507059e+37
    %v3164 = vand.u32 %v3137, 2147483648
    %v3165 = vor.u32 1.1754944e-38, %v3164
    %v3166 = vsel %vm3163, %v3165, %v3161
    %v3167 = vmul.f32 1.0, %v3166
    %v3168 = vrcp.pop %v3138
    %v3169 = vmul.f32 %v3138, %v3168
    %v3170 = vsub.f32 1.0, %v3169
    %v3171 = vmul.f32 %v3168, %v3170
    %v3172 = vadd.f32 %v3168, %v3171
    %vm3173 = vweird.f32 %v3138
    %vm3174 = vweird.f32 %v3168
    %vm3175 = vmor %vm3173, %vm3174
    %v3176 = vsel %vm3175, %v3168, %v3172
    %v3177 = vand.u32 2147483647, %v3138
    %vm3178 = vcmp.eq.f32.partialorder %v3177, 8.507059e+37
    %v3179 = vand.u32 %v3138, 2147483648
    %v3180 = vor.u32 1.1754944e-38, %v3179
    %v3181 = vsel %vm3178, %v3180, %v3176
    %v3182 = vmul.f32 1.0, %v3181
    %v3183 = vrcp.pop %v3139
    %v3184 = vmul.f32 %v3139, %v3183
    %v3185 = vsub.f32 1.0, %v3184
    %v3186 = vmul.f32 %v3183, %v3185
    %v3187 = vadd.f32 %v3183, %v3186
    %vm3188 = vweird.f32 %v3139
    %vm3189 = vweird.f32 %v3183
    %vm3190 = vmor %vm3188, %vm3189
    %v3191 = vsel %vm3190, %v3183, %v3187
    %v3192 = vand.u32 2147483647, %v3139
    %vm3193 = vcmp.eq.f32.partialorder %v3192, 8.507059e+37
    %v3194 = vand.u32 %v3139, 2147483648
    %v3195 = vor.u32 1.1754944e-38, %v3194
    %v3196 = vsel %vm3193, %v3195, %v3191
    %v3197 = vmul.f32 1.0, %v3196
    %v3198 = vrcp.pop %v3140
    %v3199 = vmul.f32 %v3140, %v3198
    %v3200 = vsub.f32 1.0, %v3199
    %v3201 = vmul.f32 %v3198, %v3200
    %v3202 = vadd.f32 %v3198, %v3201
    %vm3203 = vweird.f32 %v3140
    %vm3204 = vweird.f32 %v3198
    %vm3205 = vmor %vm3203, %vm3204
    %v3206 = vsel %vm3205, %v3198, %v3202
    %v3207 = vand.u32 2147483647, %v3140
    %vm3208 = vcmp.eq.f32.partialorder %v3207, 8.507059e+37
    %v3209 = vand.u32 %v3140, 2147483648
    %v3210 = vor.u32 1.1754944e-38, %v3209
    %v3211 = vsel %vm3208, %v3210, %v3206
    %v3212 = vmul.f32 1.0, %v3211
    %v3213 = vrcp.pop %v3141
    %v3214 = vmul.f32 %v3141, %v3213
    %v3215 = vsub.f32 1.0, %v3214
    %v3216 = vmul.f32 %v3213, %v3215
    %v3217 = vadd.f32 %v3213, %v3216
    %vm3218 = vweird.f32 %v3141
    %vm3219 = vweird.f32 %v3213
    %vm3220 = vmor %vm3218, %vm3219
    %v3221 = vsel %vm3220, %v3213, %v3217
    %v3222 = vand.u32 2147483647, %v3141
    %vm3223 = vcmp.eq.f32.partialorder %v3222, 8.507059e+37
    %v3224 = vand.u32 %v3141, 2147483648
    %v3225 = vor.u32 1.1754944e-38, %v3224
    %v3226 = vsel %vm3223, %v3225, %v3221
    %v3227 = vmul.f32 1.0, %v3226
    %v3228 = vrcp.pop %v3142
    %v3229 = vmul.f32 %v3142, %v3228
    %v3230 = vsub.f32 1.0, %v3229
    %v3231 = vmul.f32 %v3228, %v3230
    %v3232 = vadd.f32 %v3228, %v3231
    %vm3233 = vweird.f32 %v3142
    %vm3234 = vweird.f32 %v3228
    %vm3235 = vmor %vm3233, %vm3234
    %v3236 = vsel %vm3235, %v3228, %v3232
    %v3237 = vand.u32 2147483647, %v3142
    %vm3238 = vcmp.eq.f32.partialorder %v3237, 8.507059e+37
    %v3239 = vand.u32 %v3142, 2147483648
    %v3240 = vor.u32 1.1754944e-38, %v3239
    %v3241 = vsel %vm3238, %v3240, %v3236
    %v3242 = vmul.f32 1.0, %v3241
    %v3243 = vrcp.pop %v3143
    %v3244 = vmul.f32 %v3143, %v3243
    %v3245 = vsub.f32 1.0, %v3244
    %v3246 = vmul.f32 %v3243, %v3245
    %v3247 = vadd.f32 %v3243, %v3246
    %vm3248 = vweird.f32 %v3143
    %vm3249 = vweird.f32 %v3243
    %vm3250 = vmor %vm3248, %vm3249
    %v3251 = vsel %vm3250, %v3243, %v3247
    %v3252 = vand.u32 2147483647, %v3143
    %vm3253 = vcmp.eq.f32.partialorder %v3252, 8.507059e+37
    %v3254 = vand.u32 %v3143, 2147483648
    %v3255 = vor.u32 1.1754944e-38, %v3254
    %v3256 = vsel %vm3253, %v3255, %v3251
    %v3257 = vmul.f32 1.0, %v3256
    %v3258 = vrcp.pop %v3144
    %v3259 = vmul.f32 %v3144, %v3258
    %v3260 = vsub.f32 1.0, %v3259
    %v3261 = vmul.f32 %v3258, %v3260
    %v3262 = vadd.f32 %v3258, %v3261
    %vm3263 = vweird.f32 %v3144
    %vm3264 = vweird.f32 %v3258
    %vm3265 = vmor %vm3263, %vm3264
    %v3266 = vsel %vm3265, %v3258, %v3262
    %v3267 = vand.u32 2147483647, %v3144
    %vm3268 = vcmp.eq.f32.partialorder %v3267, 8.507059e+37
    %v3269 = vand.u32 %v3144, 2147483648
    %v3270 = vor.u32 1.1754944e-38, %v3269
    %v3271 = vsel %vm3268, %v3270, %v3266
    %v3272 = vmul.f32 1.0, %v3271
    %v3273 = vrcp.pop %v3145
    %v3274 = vmul.f32 %v3145, %v3273
    %v3275 = vsub.f32 1.0, %v3274
    %v3276 = vmul.f32 %v3273, %v3275
    %v3277 = vadd.f32 %v3273, %v3276
    %vm3278 = vweird.f32 %v3145
    %vm3279 = vweird.f32 %v3273
    %vm3280 = vmor %vm3278, %vm3279
    %v3281 = vsel %vm3280, %v3273, %v3277
    %v3282 = vand.u32 2147483647, %v3145
    %vm3283 = vcmp.eq.f32.partialorder %v3282, 8.507059e+37
    %v3284 = vand.u32 %v3145, 2147483648
    %v3285 = vor.u32 1.1754944e-38, %v3284
    %v3286 = vsel %vm3283, %v3285, %v3281
    %v3287 = vmul.f32 1.0, %v3286
    %v3288 = vrcp.pop %v3146
    %v3289 = vmul.f32 %v3146, %v3288
    %v3290 = vsub.f32 1.0, %v3289
    %v3291 = vmul.f32 %v3288, %v3290
    %v3292 = vadd.f32 %v3288, %v3291
    %vm3293 = vweird.f32 %v3146
    %vm3294 = vweird.f32 %v3288
    %vm3295 = vmor %vm3293, %vm3294
    %v3296 = vsel %vm3295, %v3288, %v3292
    %v3297 = vand.u32 2147483647, %v3146
    %vm3298 = vcmp.eq.f32.partialorder %v3297, 8.507059e+37
    %v3299 = vand.u32 %v3146, 2147483648
    %v3300 = vor.u32 1.1754944e-38, %v3299
    %v3301 = vsel %vm3298, %v3300, %v3296
    %v3302 = vmul.f32 1.0, %v3301
    %v3303 = vrcp.pop %v3147
    %v3304 = vmul.f32 %v3147, %v3303
    %v3305 = vsub.f32 1.0, %v3304
    %v3306 = vmul.f32 %v3303, %v3305
    %v3307 = vadd.f32 %v3303, %v3306
    %vm3308 = vweird.f32 %v3147
    %vm3309 = vweird.f32 %v3303
    %vm3310 = vmor %vm3308, %vm3309
    %v3311 = vsel %vm3310, %v3303, %v3307
    %v3312 = vand.u32 2147483647, %v3147
    %vm3313 = vcmp.eq.f32.partialorder %v3312, 8.507059e+37
    %v3314 = vand.u32 %v3147, 2147483648
    %v3315 = vor.u32 1.1754944e-38, %v3314
    %v3316 = vsel %vm3313, %v3315, %v3311
    %v3317 = vmul.f32 1.0, %v3316
    %v3318 = vrcp.pop %v3148
    %v3319 = vmul.f32 %v3148, %v3318
    %v3320 = vsub.f32 1.0, %v3319
    %v3321 = vmul.f32 %v3318, %v3320
    %v3322 = vadd.f32 %v3318, %v3321
    %vm3323 = vweird.f32 %v3148
    %vm3324 = vweird.f32 %v3318
    %vm3325 = vmor %vm3323, %vm3324
    %v3326 = vsel %vm3325, %v3318, %v3322
    %v3327 = vand.u32 2147483647, %v3148
    %vm3328 = vcmp.eq.f32.partialorder %v3327, 8.507059e+37
    %v3329 = vand.u32 %v3148, 2147483648
    %v3330 = vor.u32 1.1754944e-38, %v3329
    %v3331 = vsel %vm3328, %v3330, %v3326
    %v3332 = vmul.f32 1.0, %v3331
    %v3333 = vrcp.pop %v3149
    %v3334 = vmul.f32 %v3149, %v3333
    %v3335 = vsub.f32 1.0, %v3334
    %v3336 = vmul.f32 %v3333, %v3335
    %v3337 = vadd.f32 %v3333, %v3336
    %vm3338 = vweird.f32 %v3149
    %vm3339 = vweird.f32 %v3333
    %vm3340 = vmor %vm3338, %vm3339
    %v3341 = vsel %vm3340, %v3333, %v3337
    %v3342 = vand.u32 2147483647, %v3149
    %vm3343 = vcmp.eq.f32.partialorder %v3342, 8.507059e+37
    %v3344 = vand.u32 %v3149, 2147483648
    %v3345 = vor.u32 1.1754944e-38, %v3344
    %v3346 = vsel %vm3343, %v3345, %v3341
    %v3347 = vmul.f32 1.0, %v3346
    %v3348 = vrcp.pop %v3150
    %v3349 = vmul.f32 %v3150, %v3348
    %v3350 = vsub.f32 1.0, %v3349
    %v3351 = vmul.f32 %v3348, %v3350
    %v3352 = vadd.f32 %v3348, %v3351
    %vm3353 = vweird.f32 %v3150
    %vm3354 = vweird.f32 %v3348
    %vm3355 = vmor %vm3353, %vm3354
    %v3356 = vsel %vm3355, %v3348, %v3352
    %v3357 = vand.u32 2147483647, %v3150
    %vm3358 = vcmp.eq.f32.partialorder %v3357, 8.507059e+37
    %v3359 = vand.u32 %v3150, 2147483648
    %v3360 = vor.u32 1.1754944e-38, %v3359
    %v3361 = vsel %vm3358, %v3360, %v3356
    %v3362 = vmul.f32 1.0, %v3361
    %v3363 = vrcp.pop %v3151
    %v3364 = vmul.f32 %v3151, %v3363
    %v3365 = vsub.f32 1.0, %v3364
    %v3366 = vmul.f32 %v3363, %v3365
    %v3367 = vadd.f32 %v3363, %v3366
    %vm3368 = vweird.f32 %v3151
    %vm3369 = vweird.f32 %v3363
    %vm3370 = vmor %vm3368, %vm3369
    %v3371 = vsel %vm3370, %v3363, %v3367
    %v3372 = vand.u32 2147483647, %v3151
    %vm3373 = vcmp.eq.f32.partialorder %v3372, 8.507059e+37
    %v3374 = vand.u32 %v3151, 2147483648
    %v3375 = vor.u32 1.1754944e-38, %v3374
    %v3376 = vsel %vm3373, %v3375, %v3371
    %v3377 = vmul.f32 1.0, %v3376
    %v3378 = vrcp.pop %v3152
    %v3379 = vmul.f32 %v3152, %v3378
    %v3380 = vsub.f32 1.0, %v3379
    %v3381 = vmul.f32 %v3378, %v3380
    %v3382 = vadd.f32 %v3378, %v3381
    %vm3383 = vweird.f32 %v3152
    %vm3384 = vweird.f32 %v3378
    %vm3385 = vmor %vm3383, %vm3384
    %v3386 = vsel %vm3385, %v3378, %v3382
    %v3387 = vand.u32 2147483647, %v3152
    %vm3388 = vcmp.eq.f32.partialorder %v3387, 8.507059e+37
    %v3389 = vand.u32 %v3152, 2147483648
    %v3390 = vor.u32 1.1754944e-38, %v3389
    %v3391 = vsel %vm3388, %v3390, %v3386
    %v3392 = vmul.f32 1.0, %v3391
    %3393 = vst [vmem:[#allocation6] sm:$0xff] %v3167
    %3394 = vst [vmem:[#allocation6 + $0x8] sm:$0xff] %v3182
    %3395 = vst [vmem:[#allocation6 + $0x10] sm:$0xff] %v3197
    %3396 = vst [vmem:[#allocation6 + $0x18] sm:$0xff] %v3212
    %3397 = vst [vmem:[#allocation6 + $0x20] sm:$0xff] %v3227
    %3398 = vst [vmem:[#allocation6 + $0x28] sm:$0xff] %v3242
    %3399 = vst [vmem:[#allocation6 + $0x30] sm:$0xff] %v3257
    %3400 = vst [vmem:[#allocation6 + $0x38] sm:$0xff] %v3272
    %3401 = vst [vmem:[#allocation6 + $0x40] sm:$0xff] %v3287
    %3402 = vst [vmem:[#allocation6 + $0x48] sm:$0xff] %v3302
    %3403 = vst [vmem:[#allocation6 + $0x50] sm:$0xff] %v3317
    %3404 = vst [vmem:[#allocation6 + $0x58] sm:$0xff] %v3332
    %3405 = vst [vmem:[#allocation6 + $0x60] sm:$0xff] %v3347
    %3406 = vst [vmem:[#allocation6 + $0x68] sm:$0xff] %v3362
    %3407 = vst [vmem:[#allocation6 + $0x70] sm:$0xff] %v3377
    %3408 = vst [vmem:[#allocation6 + $0x78] sm:$0xff] %v3392
    %vm3409 = vcmask 130048
    %3410 = vst.msk [vmem:[%s57] sm:$0xff] %vm3409, %v2411
    %3411 = vst.msk [vmem:[%s57 + $0x8] sm:$0xff] %vm3409, %v2414
    %3412 = vst.msk [vmem:[%s57 + $0x10] sm:$0xff] %vm3409, %v2417
    %3413 = vst.msk [vmem:[%s57 + $0x18] sm:$0xff] %vm3409, %v2420
    %3414 = vst.msk [vmem:[%s57 + $0x20] sm:$0xff] %vm3409, %v2423
    %3415 = vst.msk [vmem:[%s57 + $0x28] sm:$0xff] %vm3409, %v2426
    %3416 = vst.msk [vmem:[%s57 + $0x30] sm:$0xff] %vm3409, %v2429
    %3417 = vst.msk [vmem:[%s57 + $0x38] sm:$0xff] %vm3409, %v2432
    %3418 = vst.msk [vmem:[%s57 + $0x40] sm:$0xff] %vm3409, %v2435
    %3419 = vst.msk [vmem:[%s57 + $0x48] sm:$0xff] %vm3409, %v2438
    %3420 = vst.msk [vmem:[%s57 + $0x50] sm:$0xff] %vm3409, %v2441
    %3421 = vst.msk [vmem:[%s57 + $0x58] sm:$0xff] %vm3409, %v2444
    %3422 = vst.msk [vmem:[%s57 + $0x60] sm:$0xff] %vm3409, %v2447
    %3423 = vst.msk [vmem:[%s57 + $0x68] sm:$0xff] %vm3409, %v2450
    %3424 = vst.msk [vmem:[%s57 + $0x70] sm:$0xff] %vm3409, %v2453
    %3425 = vst.msk [vmem:[%s57 + $0x78] sm:$0xff] %vm3409, %v2456
    %3442 = vst.msk [vmem:[%s59] sm:$0xff] %vm253, %v1064
    %3443 = vst.msk [vmem:[%s59 + $0x8] sm:$0xff] %vm253, %v1066
    %3444 = vst.msk [vmem:[%s59 + $0x10] sm:$0xff] %vm253, %v1068
    %3445 = vst.msk [vmem:[%s59 + $0x18] sm:$0xff] %vm253, %v1070
    %3446 = vst.msk [vmem:[%s59 + $0x20] sm:$0xff] %vm253, %v1072
    %3447 = vst.msk [vmem:[%s59 + $0x28] sm:$0xff] %vm253, %v1074
    %3448 = vst.msk [vmem:[%s59 + $0x30] sm:$0xff] %vm253, %v1076
    %3449 = vst.msk [vmem:[%s59 + $0x38] sm:$0xff] %vm253, %v1078
    %3450 = vst.msk [vmem:[%s59 + $0x40] sm:$0xff] %vm253, %v1080
    %3451 = vst.msk [vmem:[%s59 + $0x48] sm:$0xff] %vm253, %v1082
    %3452 = vst.msk [vmem:[%s59 + $0x50] sm:$0xff] %vm253, %v1084
    %3453 = vst.msk [vmem:[%s59 + $0x58] sm:$0xff] %vm253, %v1086
    %3454 = vst.msk [vmem:[%s59 + $0x60] sm:$0xff] %vm253, %v1088
    %3455 = vst.msk [vmem:[%s59 + $0x68] sm:$0xff] %vm253, %v1090
    %3456 = vst.msk [vmem:[%s59 + $0x70] sm:$0xff] %vm253, %v1092
    %3457 = vst.msk [vmem:[%s59 + $0x78] sm:$0xff] %vm253, %v1094
    %vm3458 = vcmask 523520
    %3459 = vst.msk [vmem:[%s59] sm:$0xff] %vm3458, %v1937
    %3460 = vst.msk [vmem:[%s59 + $0x8] sm:$0xff] %vm3458, %v1938
    %3461 = vst.msk [vmem:[%s59 + $0x10] sm:$0xff] %vm3458, %v1939
    %3462 = vst.msk [vmem:[%s59 + $0x18] sm:$0xff] %vm3458, %v1940
    %3463 = vst.msk [vmem:[%s59 + $0x20] sm:$0xff] %vm3458, %v1941
    %3464 = vst.msk [vmem:[%s59 + $0x28] sm:$0xff] %vm3458, %v1942
    %3465 = vst.msk [vmem:[%s59 + $0x30] sm:$0xff] %vm3458, %v1943
    %3466 = vst.msk [vmem:[%s59 + $0x38] sm:$0xff] %vm3458, %v1944
    %3467 = vst.msk [vmem:[%s59 + $0x40] sm:$0xff] %vm3458, %v1945
    %3468 = vst.msk [vmem:[%s59 + $0x48] sm:$0xff] %vm3458, %v1946
    %3469 = vst.msk [vmem:[%s59 + $0x50] sm:$0xff] %vm3458, %v1947
    %3470 = vst.msk [vmem:[%s59 + $0x58] sm:$0xff] %vm3458, %v1948
    %3471 = vst.msk [vmem:[%s59 + $0x60] sm:$0xff] %vm3458, %v1949
    %3472 = vst.msk [vmem:[%s59 + $0x68] sm:$0xff] %vm3458, %v1950
    %3473 = vst.msk [vmem:[%s59 + $0x70] sm:$0xff] %vm3458, %v1951
    %3474 = vst.msk [vmem:[%s59 + $0x78] sm:$0xff] %vm3458, %v1952
    // Predicated region
    $region110: #{tpu_custom_call.1} parent=1 // pred_check
      _
    $region111: #{tpu_custom_call.1} parent=1 // pred_check_branch
      %3476 = sbr.rel (0) target = $region113
    $region112: #{tpu_custom_call.1} parent=1 // pred_region
      %3478 = vsyncadd [#allocation7], 0
      %s3479 = sshll.u32 [#allocation6], 4
      %s3480 = int_to_ptr.vmem [resolvable:$true] %s3479
      %s3481 = sshll.u32 %s55, 4
      %s3482 = int_to_ptr.hbm [resolvable:$true] %s3481
      %3487 = dma.vmem_to_hbm [thread:$0]  %s3480, 2048, %s3482, [#allocation7], 128, 128, 8
    $region113: #{tpu_custom_call.1} parent=1 // pred_fallthru
      _
    // Predicated region
    $region114: #{tpu_custom_call.1} parent=1 // pred_check
      _
    $region115: #{tpu_custom_call.1} parent=1 // pred_check_branch
      %3489 = sbr.rel (0) target = $region117
    $region116: #{tpu_custom_call.1} parent=1 // pred_region
      _
    $region117: #{tpu_custom_call.1} parent=1 // pred_fallthru
      _
    // Predicated region
    $region118: #{tpu_custom_call.1} parent=1 // pred_check
      _
    $region119: #{tpu_custom_call.1} parent=1 // pred_check_branch
      %3491 = sbr.rel (0) target = $region121
    $region120: #{tpu_custom_call.1} parent=1 // pred_region
      _
    $region121: #{tpu_custom_call.1} parent=1 // pred_fallthru
      _
    // Predicated region
    $region122: #{tpu_custom_call.1} parent=1 // pred_check
      _
    $region123: #{tpu_custom_call.1} parent=1 // pred_check_branch
      %3493 = sbr.rel (0) target = $region125
    $region124: #{tpu_custom_call.1} parent=1 // pred_region
      %3495 = dma.done [#allocation7], 2048
    $region125: #{tpu_custom_call.1} parent=1 // pred_fallthru
      _
    // Predicated region
    $region126: #{tpu_custom_call.1} parent=1 // pred_check
      _
    $region127: #{tpu_custom_call.1} parent=1 // pred_check_branch
      %3497 = sbr.rel (0) target = $region129
    $region128: #{tpu_custom_call.1} parent=1 // pred_region
      _
    $region129: #{tpu_custom_call.1} parent=1 // pred_fallthru
      _
    // Predicated region
    $region130: #{tpu_custom_call.1} parent=1 // pred_check
      _
    $region131: #{tpu_custom_call.1} parent=1 // pred_check_branch
      %3499 = sbr.rel (0) target = $region133
    $region132: #{tpu_custom_call.1} parent=1 // pred_region
      _
    $region133: #{tpu_custom_call.1} parent=1 // pred_fallthru
      _
    %3500 = vsyncpa [#allocation7], 1

</llo_original>
